<compile_context>
chip_gen: v6e
topology: v6e:2x2x1
jax: 0.10.0
libtpu: 0.0.40
codegen_flags: <defaults>
</compile_context>

<pallas_src>
import jax
import jax.numpy as jnp
from jax import lax
from jax.experimental import pallas as pl
from jax.experimental.pallas import tpu as pltpu

# ----- model hyper-parameters (small, consistent with the module) -----------
VOCAB = 32        # vocab_size
CTX = 16          # context_size
EMB = 32          # emb_dim
HEADS = 4         # n_heads
BLOCKS = 2        # n_blocks
HEAD_DIM = EMB // HEADS
FF = 4 * EMB
QKV_PAD = 128     # lane-dense padded fused-QKV output width (3*EMB=96 -> 128)
VPAD = 128        # lane-dense padded vocab for the LM head / output
NEG_INF = -1e30


def _layernorm(x, w, b, eps):
    # PyTorch LayerNorm: biased variance over the last dim (kept in f32).
    mu = jnp.mean(x, axis=-1, keepdims=True)
    var = jnp.mean((x - mu) ** 2, axis=-1, keepdims=True)
    return (x - mu) * lax.rsqrt(var + eps) * w + b


def _bf16(x):
    return x.astype(jnp.bfloat16)


def char_v6_kernel(x_ref,
                   wqkv_ref, wo_ref, bo_ref,
                   ln1w_ref, ln1b_ref, ln2w_ref, ln2b_ref,
                   w1_ref, b1_ref, w2_ref, b2_ref,
                   lnfw_ref, lnfb_ref, wout_ref, bout_ref,
                   out_ref):
    TB, S, _ = x_ref.shape
    M = TB * S                      # rows for all "dense" matmuls
    G = TB * HEADS                  # attention batch (one (S,S) block each)
    x = x_ref[...].reshape(M, EMB)  # (M, E) f32, leading dims collapsed
    scale = HEAD_DIM ** -0.5

    # Tiny (S, S) additive causal bias, built once per grid step.
    r = lax.broadcasted_iota(jnp.int32, (S, S), 0)
    c = lax.broadcasted_iota(jnp.int32, (S, S), 1)
    causal_bias = jnp.where(c <= r, 0.0, NEG_INF).astype(jnp.float32)

    for l in range(BLOCKS):                  # static unroll over decoder blocks
        # ---- causal multi-head self-attention (pre-LN, residual) ----
        h_in = _layernorm(x, ln1w_ref[l], ln1b_ref[l], 1e-5)
        qkv = jnp.dot(_bf16(h_in), wqkv_ref[l],
                      preferred_element_type=jnp.float32)    # (M, 128) f32

        # Head split: lane slices -> (TB, S, HD) -> stack along leading axis.
        # Leading-axis ordering is (head, batch); minor dims untouched.
        def split_heads(base):
            return jnp.concatenate(
                [qkv[:, base + h * HEAD_DIM: base + (h + 1) * HEAD_DIM]
                 .reshape(TB, S, HEAD_DIM) for h in range(HEADS)],
                axis=0)                                       # (G, S, HD) f32

        q = split_heads(0)
        k = split_heads(EMB)
        v = split_heads(2 * EMB)

        # Block-diagonal attention: batched (G, S, S) scores, softmax over S.
        s = jnp.einsum('gqd,gkd->gqk', _bf16(q), _bf16(k),
                       preferred_element_type=jnp.float32) * scale
        s = s + causal_bias[None, :, :]
        s = s - jnp.max(s, axis=-1, keepdims=True)
        p = jnp.exp(s)
        p = p * pl.reciprocal(jnp.sum(p, axis=-1, keepdims=True), approx=True)

        o = jnp.einsum('gqk,gkd->gqd', _bf16(p), _bf16(v),
                       preferred_element_type=jnp.float32)    # (G, S, HD)
        # Merge heads back to (M, E): head h -> lanes [h*HD, (h+1)*HD).
        o = o.reshape(HEADS, M, HEAD_DIM)
        attn_in = jnp.concatenate([o[h] for h in range(HEADS)], axis=-1)
        attn = jnp.dot(_bf16(attn_in), wo_ref[l],
                       preferred_element_type=jnp.float32) + bo_ref[l]
        x = x + attn

        # ---- feed-forward: Linear(E,4E) -> ReLU -> Linear(4E,E), residual ----
        f_in = _layernorm(x, ln2w_ref[l], ln2b_ref[l], 1e-5)
        hdn = jnp.dot(_bf16(f_in), w1_ref[l],
                      preferred_element_type=jnp.float32) + b1_ref[l]
        hdn = jnp.maximum(hdn, 0.0)
        ff = jnp.dot(_bf16(hdn), w2_ref[l],
                     preferred_element_type=jnp.float32) + b2_ref[l]
        x = x + ff

    # ---- final norm (eps = vocab_size, reproducing the original module) ----
    x = _layernorm(x, lnfw_ref[...], lnfb_ref[...], float(VOCAB))
    # ---- lm head (lane-dense: VOCAB zero-padded to 128 lanes) ----
    logits = jnp.dot(_bf16(x), wout_ref[...],
                     preferred_element_type=jnp.float32) + bout_ref[...]
    out_ref[...] = logits.reshape(TB, S, VPAD)


def init_params(key):
    ks = jax.random.split(key, 16)
    scale = 0.02
    p = {
        "tkn_emb": scale * jax.random.normal(ks[0], (VOCAB, EMB), jnp.float32),
        "pos_emb": scale * jax.random.normal(ks[1], (CTX, EMB), jnp.float32),
        "wq": scale * jax.random.normal(ks[2], (BLOCKS, EMB, EMB), jnp.float32),
        "wk": scale * jax.random.normal(ks[3], (BLOCKS, EMB, EMB), jnp.float32),
        "wv": scale * jax.random.normal(ks[4], (BLOCKS, EMB, EMB), jnp.float32),
        "wo": scale * jax.random.normal(ks[5], (BLOCKS, EMB, EMB), jnp.float32),
        "bo": jnp.zeros((BLOCKS, 1, EMB), jnp.float32),
        "ln1w": jnp.ones((BLOCKS, 1, EMB), jnp.float32),
        "ln1b": jnp.zeros((BLOCKS, 1, EMB), jnp.float32),
        "ln2w": jnp.ones((BLOCKS, 1, EMB), jnp.float32),
        "ln2b": jnp.zeros((BLOCKS, 1, EMB), jnp.float32),
        "w1": scale * jax.random.normal(ks[6], (BLOCKS, EMB, FF), jnp.float32),
        "b1": jnp.zeros((BLOCKS, 1, FF), jnp.float32),
        "w2": scale * jax.random.normal(ks[7], (BLOCKS, FF, EMB), jnp.float32),
        "b2": jnp.zeros((BLOCKS, 1, EMB), jnp.float32),
        "lnfw": jnp.ones((1, EMB), jnp.float32),
        "lnfb": jnp.zeros((1, EMB), jnp.float32),
        "wout": scale * jax.random.normal(ks[8], (EMB, VOCAB), jnp.float32),
        "bout": jnp.zeros((1, VOCAB), jnp.float32),
    }
    return p


def _prep_weights(params):
    """Fuse+pad QKV, cast matmul weights to bf16, pad LM head to 128 lanes."""
    wqkv = jnp.concatenate(
        [params["wq"], params["wk"], params["wv"]], axis=-1)      # (L, E, 96)
    wqkv_pad = jnp.zeros((BLOCKS, EMB, QKV_PAD), jnp.bfloat16)
    wqkv_pad = wqkv_pad.at[:, :, :3 * EMB].set(wqkv.astype(jnp.bfloat16))
    wout_pad = jnp.zeros((EMB, VPAD), jnp.bfloat16)
    wout_pad = wout_pad.at[:, :VOCAB].set(params["wout"].astype(jnp.bfloat16))
    bout_pad = jnp.zeros((1, VPAD), jnp.float32)
    bout_pad = bout_pad.at[:, :VOCAB].set(params["bout"])
    return [
        wqkv_pad,                                # (BLOCKS, E, 128) bf16
        params["wo"].astype(jnp.bfloat16),       # (BLOCKS, E, E)   bf16
        params["bo"],
        params["ln1w"], params["ln1b"], params["ln2w"], params["ln2b"],
        params["w1"].astype(jnp.bfloat16), params["b1"],
        params["w2"].astype(jnp.bfloat16), params["b2"],
        params["lnfw"], params["lnfb"],
        wout_pad, bout_pad,
    ]


def _pick_tb(B, seq_tile=None):
    """Sequences per grid step: >=2 grid steps when B>=2 (v7x dual TC), cap 4."""
    if seq_tile is not None:
        tb = min(seq_tile, B)
    else:
        tb = min(max(B // 2, 1), 4)
    while B % tb:                      # fall back to a divisor of B
        tb -= 1
    return tb


def char_v6_forward(tokens, params, targets=None, seq_tile=None):
    """tokens: (B, S) int32 in [0, VOCAB).  Returns (logits (B,S,V), loss)."""
    B, S = tokens.shape
    assert S <= CTX
    tb = _pick_tb(B, seq_tile)

    # glue: embedding gathers + positional add (cheap, data-dependent gather)
    tkn_emb = jnp.take(params["tkn_emb"], tokens, axis=0)            # (B, S, E)
    pos_emb = params["pos_emb"][:S]                                  # (S, E)
    x = (tkn_emb + pos_emb[None]).astype(jnp.float32)                # (B, S, E)

    weight_args = _prep_weights(params)
    weight_specs = [pl.BlockSpec(w.shape, lambda b, _r=w.ndim: (0,) * _r)
                    for w in weight_args]

    logits_pad = pl.pallas_call(
        char_v6_kernel,
        out_shape=jax.ShapeDtypeStruct((B, S, VPAD), jnp.float32),
        grid=(B // tb,),
        in_specs=[pl.BlockSpec((tb, S, EMB), lambda b: (b, 0, 0))] + weight_specs,
        out_specs=pl.BlockSpec((tb, S, VPAD), lambda b: (b, 0, 0)),
        compiler_params=pltpu.CompilerParams(
            dimension_semantics=("parallel",)),
    )(x, *weight_args)

    logits = logits_pad[..., :VOCAB]                                 # (B, S, V)

    loss = None
    if targets is not None:
        flat_logits = logits.reshape(B * S, VOCAB)
        flat_targets = targets.reshape(B * S)
        logz = jax.nn.logsumexp(flat_logits, axis=-1)
        nll = logz - jnp.take_along_axis(
            flat_logits, flat_targets[:, None], axis=-1)[:, 0]
        loss = jnp.mean(nll)
    return logits, loss


if __name__ == "__main__":
    key = jax.random.PRNGKey(0)
    pkey, tkey, ykey = jax.random.split(key, 3)
    params = init_params(pkey)

    B, S = 2, CTX
    tokens = jax.random.randint(tkey, (B, S), 0, VOCAB, dtype=jnp.int32)
    targets = jax.random.randint(ykey, (B, S), 0, VOCAB, dtype=jnp.int32)

    logits, loss = char_v6_forward(tokens, params, targets=targets)
    logits = jax.block_until_ready(logits)
    loss = jax.block_until_ready(loss)

    assert logits.shape == (B, S, VOCAB), logits.shape
    assert bool(jnp.all(jnp.isfinite(logits)))
    assert bool(jnp.isfinite(loss))
    print("KERNEL_OK")
</pallas_src>

<mosaic_0001>
module attributes {stable_mosaic.version = 11 : i64} {
  func.func @char_v6_kernel(%arg0: i32, %arg1: memref<1x16x32xf32, #tpu.memory_space<vmem>>, %arg2: memref<2x32x128xbf16, #tpu.memory_space<vmem>>, %arg3: memref<2x32x32xbf16, #tpu.memory_space<vmem>>, %arg4: memref<2x1x32xf32, #tpu.memory_space<vmem>>, %arg5: memref<2x1x32xf32, #tpu.memory_space<vmem>>, %arg6: memref<2x1x32xf32, #tpu.memory_space<vmem>>, %arg7: memref<2x1x32xf32, #tpu.memory_space<vmem>>, %arg8: memref<2x1x32xf32, #tpu.memory_space<vmem>>, %arg9: memref<2x32x128xbf16, #tpu.memory_space<vmem>>, %arg10: memref<2x1x128xf32, #tpu.memory_space<vmem>>, %arg11: memref<2x128x32xbf16, #tpu.memory_space<vmem>>, %arg12: memref<2x1x32xf32, #tpu.memory_space<vmem>>, %arg13: memref<1x32xf32, #tpu.memory_space<vmem>>, %arg14: memref<1x32xf32, #tpu.memory_space<vmem>>, %arg15: memref<32x128xbf16, #tpu.memory_space<vmem>>, %arg16: memref<1x128xf32, #tpu.memory_space<vmem>>, %arg17: memref<1x16x128xf32, #tpu.memory_space<vmem>>) attributes {dimension_semantics = [#tpu.dimension_semantics<parallel>], iteration_bounds = array<i64: 2>, scalar_prefetch = 0 : i64, scratch_operands = 0 : i64, tpu.core_type = #tpu.core_type<tc>, window_params = [{transform_indices = @transform_0, window_bounds = array<i64: 1, 16, 32>}, {pipeline_mode = #tpu.pipeline_mode<synchronous>, transform_indices = @transform_1, window_bounds = array<i64: 2, 32, 128>}, {pipeline_mode = #tpu.pipeline_mode<synchronous>, transform_indices = @transform_2, window_bounds = array<i64: 2, 32, 32>}, {pipeline_mode = #tpu.pipeline_mode<synchronous>, transform_indices = @transform_3, window_bounds = array<i64: 2, 1, 32>}, {pipeline_mode = #tpu.pipeline_mode<synchronous>, transform_indices = @transform_4, window_bounds = array<i64: 2, 1, 32>}, {pipeline_mode = #tpu.pipeline_mode<synchronous>, transform_indices = @transform_5, window_bounds = array<i64: 2, 1, 32>}, {pipeline_mode = #tpu.pipeline_mode<synchronous>, transform_indices = @transform_6, window_bounds = array<i64: 2, 1, 32>}, {pipeline_mode = #tpu.pipeline_mode<synchronous>, transform_indices = @transform_7, window_bounds = array<i64: 2, 1, 32>}, {pipeline_mode = #tpu.pipeline_mode<synchronous>, transform_indices = @transform_8, window_bounds = array<i64: 2, 32, 128>}, {pipeline_mode = #tpu.pipeline_mode<synchronous>, transform_indices = @transform_9, window_bounds = array<i64: 2, 1, 128>}, {pipeline_mode = #tpu.pipeline_mode<synchronous>, transform_indices = @transform_10, window_bounds = array<i64: 2, 128, 32>}, {pipeline_mode = #tpu.pipeline_mode<synchronous>, transform_indices = @transform_11, window_bounds = array<i64: 2, 1, 32>}, {pipeline_mode = #tpu.pipeline_mode<synchronous>, transform_indices = @transform_12, window_bounds = array<i64: 1, 32>}, {pipeline_mode = #tpu.pipeline_mode<synchronous>, transform_indices = @transform_13, window_bounds = array<i64: 1, 32>}, {pipeline_mode = #tpu.pipeline_mode<synchronous>, transform_indices = @transform_14, window_bounds = array<i64: 32, 128>}, {pipeline_mode = #tpu.pipeline_mode<synchronous>, transform_indices = @transform_15, window_bounds = array<i64: 1, 128>}, {transform_indices = @transform_16, window_bounds = array<i64: 1, 16, 128>}]} {
    %c0 = arith.constant 0 : index
    %c0_0 = arith.constant 0 : index
    %c0_1 = arith.constant 0 : index
    %0 = vector.load %arg1[%c0, %c0_0, %c0_1] : memref<1x16x32xf32, #tpu.memory_space<vmem>>, vector<1x16x32xf32>
    %1 = vector.shape_cast %0 : vector<1x16x32xf32> to vector<16x32xf32>
    %2 = tpu.iota {dimensions = array<i32: 0>} : vector<16x16xi32>
    %3 = tpu.iota {dimensions = array<i32: 1>} : vector<16x16xi32>
    %4 = arith.cmpi sle, %3, %2 : vector<16x16xi32>
    %cst = arith.constant 0.000000e+00 : f32
    %cst_2 = arith.constant -1.000000e+30 : f32
    %5 = vector.broadcast %cst : f32 to vector<16x16xf32>
    %6 = vector.broadcast %cst_2 : f32 to vector<16x16xf32>
    %7 = arith.select %4, %5, %6 : vector<16x16xi1>, vector<16x16xf32>
    %c0_3 = arith.constant 0 : index
    %c0_4 = arith.constant 0 : index
    %c0_5 = arith.constant 0 : index
    %8 = vector.load %arg5[%c0_3, %c0_4, %c0_5] : memref<2x1x32xf32, #tpu.memory_space<vmem>>, vector<1x1x32xf32>
    %9 = vector.shape_cast %8 : vector<1x1x32xf32> to vector<1x32xf32>
    %c0_6 = arith.constant 0 : index
    %c0_7 = arith.constant 0 : index
    %c0_8 = arith.constant 0 : index
    %10 = vector.load %arg6[%c0_6, %c0_7, %c0_8] : memref<2x1x32xf32, #tpu.memory_space<vmem>>, vector<1x1x32xf32>
    %11 = vector.shape_cast %10 : vector<1x1x32xf32> to vector<1x32xf32>
    %cst_9 = arith.constant dense<0.000000e+00> : vector<16xf32>
    %12 = vector.multi_reduction <add>, %1, %cst_9 [1] : vector<16x32xf32> to vector<16xf32>
    %13 = vector.shape_cast %12 : vector<16xf32> to vector<16x1xf32>
    %cst_10 = arith.constant 3.200000e+01 : f32
    %14 = vector.broadcast %cst_10 : f32 to vector<16x1xf32>
    %15 = arith.divf %13, %14 : vector<16x1xf32>
    %16 = vector.broadcast %15 : vector<16x1xf32> to vector<16x32xf32>
    %17 = arith.subf %1, %16 : vector<16x32xf32>
    %18 = arith.mulf %17, %17 : vector<16x32xf32>
    %cst_11 = arith.constant dense<0.000000e+00> : vector<16xf32>
    %19 = vector.multi_reduction <add>, %18, %cst_11 [1] : vector<16x32xf32> to vector<16xf32>
    %20 = vector.shape_cast %19 : vector<16xf32> to vector<16x1xf32>
    %cst_12 = arith.constant 3.200000e+01 : f32
    %21 = vector.broadcast %cst_12 : f32 to vector<16x1xf32>
    %22 = arith.divf %20, %21 : vector<16x1xf32>
    %23 = vector.broadcast %15 : vector<16x1xf32> to vector<16x32xf32>
    %24 = arith.subf %1, %23 : vector<16x32xf32>
    %cst_13 = arith.constant 9.99999974E-6 : f32
    %25 = vector.broadcast %cst_13 : f32 to vector<16x1xf32>
    %26 = arith.addf %22, %25 : vector<16x1xf32>
    %27 = math.rsqrt %26 : vector<16x1xf32>
    %28 = vector.broadcast %27 : vector<16x1xf32> to vector<16x32xf32>
    %29 = arith.mulf %24, %28 : vector<16x32xf32>
    %30 = vector.broadcast %9 : vector<1x32xf32> to vector<16x32xf32>
    %31 = arith.mulf %29, %30 : vector<16x32xf32>
    %32 = vector.broadcast %11 : vector<1x32xf32> to vector<16x32xf32>
    %33 = arith.addf %31, %32 : vector<16x32xf32>
    %34 = arith.truncf %33 : vector<16x32xf32> to vector<16x32xbf16>
    %c0_14 = arith.constant 0 : index
    %c0_15 = arith.constant 0 : index
    %c0_16 = arith.constant 0 : index
    %35 = vector.load %arg2[%c0_14, %c0_15, %c0_16] : memref<2x32x128xbf16, #tpu.memory_space<vmem>>, vector<1x32x128xbf16>
    %36 = vector.shape_cast %35 : vector<1x32x128xbf16> to vector<32x128xbf16>
    %cst_17 = arith.constant dense<0.000000e+00> : vector<16x128xf32>
    %37 = tpu.matmul %34, %36, %cst_17 {dimension_numbers = #tpu.dot_dimension_numbers<[1], [0], [0], [1], [0, 0, 1, 1], [], []>} : vector<16x32xbf16>, vector<32x128xbf16>, vector<16x128xf32> -> vector<16x128xf32>
    %38 = vector.extract_strided_slice %37 {offsets = [0, 0], sizes = [16, 8], strides = [1, 1]} : vector<16x128xf32> to vector<16x8xf32>
    %39 = vector.shape_cast %38 : vector<16x8xf32> to vector<1x16x8xf32>
    %40 = vector.extract_strided_slice %37 {offsets = [0, 8], sizes = [16, 8], strides = [1, 1]} : vector<16x128xf32> to vector<16x8xf32>
    %41 = vector.shape_cast %40 : vector<16x8xf32> to vector<1x16x8xf32>
    %42 = vector.extract_strided_slice %37 {offsets = [0, 16], sizes = [16, 8], strides = [1, 1]} : vector<16x128xf32> to vector<16x8xf32>
    %43 = vector.shape_cast %42 : vector<16x8xf32> to vector<1x16x8xf32>
    %44 = vector.extract_strided_slice %37 {offsets = [0, 24], sizes = [16, 8], strides = [1, 1]} : vector<16x128xf32> to vector<16x8xf32>
    %45 = vector.shape_cast %44 : vector<16x8xf32> to vector<1x16x8xf32>
    %46 = tpu.concatenate %39, %41, %43, %45 in 0 : vector<1x16x8xf32>, vector<1x16x8xf32>, vector<1x16x8xf32>, vector<1x16x8xf32> -> vector<4x16x8xf32>
    %47 = vector.extract_strided_slice %37 {offsets = [0, 32], sizes = [16, 8], strides = [1, 1]} : vector<16x128xf32> to vector<16x8xf32>
    %48 = vector.shape_cast %47 : vector<16x8xf32> to vector<1x16x8xf32>
    %49 = vector.extract_strided_slice %37 {offsets = [0, 40], sizes = [16, 8], strides = [1, 1]} : vector<16x128xf32> to vector<16x8xf32>
    %50 = vector.shape_cast %49 : vector<16x8xf32> to vector<1x16x8xf32>
    %51 = vector.extract_strided_slice %37 {offsets = [0, 48], sizes = [16, 8], strides = [1, 1]} : vector<16x128xf32> to vector<16x8xf32>
    %52 = vector.shape_cast %51 : vector<16x8xf32> to vector<1x16x8xf32>
    %53 = vector.extract_strided_slice %37 {offsets = [0, 56], sizes = [16, 8], strides = [1, 1]} : vector<16x128xf32> to vector<16x8xf32>
    %54 = vector.shape_cast %53 : vector<16x8xf32> to vector<1x16x8xf32>
    %55 = tpu.concatenate %48, %50, %52, %54 in 0 : vector<1x16x8xf32>, vector<1x16x8xf32>, vector<1x16x8xf32>, vector<1x16x8xf32> -> vector<4x16x8xf32>
    %56 = vector.extract_strided_slice %37 {offsets = [0, 64], sizes = [16, 8], strides = [1, 1]} : vector<16x128xf32> to vector<16x8xf32>
    %57 = vector.shape_cast %56 : vector<16x8xf32> to vector<1x16x8xf32>
    %58 = vector.extract_strided_slice %37 {offsets = [0, 72], sizes = [16, 8], strides = [1, 1]} : vector<16x128xf32> to vector<16x8xf32>
    %59 = vector.shape_cast %58 : vector<16x8xf32> to vector<1x16x8xf32>
    %60 = vector.extract_strided_slice %37 {offsets = [0, 80], sizes = [16, 8], strides = [1, 1]} : vector<16x128xf32> to vector<16x8xf32>
    %61 = vector.shape_cast %60 : vector<16x8xf32> to vector<1x16x8xf32>
    %62 = vector.extract_strided_slice %37 {offsets = [0, 88], sizes = [16, 8], strides = [1, 1]} : vector<16x128xf32> to vector<16x8xf32>
    %63 = vector.shape_cast %62 : vector<16x8xf32> to vector<1x16x8xf32>
    %64 = tpu.concatenate %57, %59, %61, %63 in 0 : vector<1x16x8xf32>, vector<1x16x8xf32>, vector<1x16x8xf32>, vector<1x16x8xf32> -> vector<4x16x8xf32>
    %65 = arith.truncf %46 : vector<4x16x8xf32> to vector<4x16x8xbf16>
    %66 = arith.truncf %55 : vector<4x16x8xf32> to vector<4x16x8xbf16>
    "tpu.trace_start"() <{level = 10 : i32, message = "gqd,gkd->gqk"}> : () -> ()
    %cst_18 = arith.constant dense<0.000000e+00> : vector<4x16x16xf32>
    %67 = tpu.matmul %65, %66, %cst_18 {dimension_numbers = #tpu.dot_dimension_numbers<[2], [2], [1], [1], [0, 0, 0, 1, 1, 1], [0], [0]>} : vector<4x16x8xbf16>, vector<4x16x8xbf16>, vector<4x16x16xf32> -> vector<4x16x16xf32>
    "tpu.trace_stop"() : () -> ()
    %cst_19 = arith.constant 0.353553385 : f32
    %68 = vector.broadcast %cst_19 : f32 to vector<4x16x16xf32>
    %69 = arith.mulf %67, %68 : vector<4x16x16xf32>
    %70 = vector.shape_cast %7 : vector<16x16xf32> to vector<1x16x16xf32>
    %71 = vector.broadcast %70 : vector<1x16x16xf32> to vector<4x16x16xf32>
    %72 = arith.addf %69, %71 : vector<4x16x16xf32>
    %cst_20 = arith.constant dense<0xFF800000> : vector<4x16xf32>
    %73 = vector.multi_reduction <maximumf>, %72, %cst_20 [2] : vector<4x16x16xf32> to vector<4x16xf32>
    %74 = vector.shape_cast %73 : vector<4x16xf32> to vector<4x16x1xf32>
    %75 = vector.broadcast %74 : vector<4x16x1xf32> to vector<4x16x16xf32>
    %76 = arith.subf %72, %75 : vector<4x16x16xf32>
    %77 = math.exp %76 : vector<4x16x16xf32>
    %cst_21 = arith.constant dense<0.000000e+00> : vector<4x16xf32>
    %78 = vector.multi_reduction <add>, %77, %cst_21 [2] : vector<4x16x16xf32> to vector<4x16xf32>
    %79 = vector.shape_cast %78 : vector<4x16xf32> to vector<4x16x1xf32>
    %80 = tpu.reciprocal %79 {approx = true} : vector<4x16x1xf32> -> vector<4x16x1xf32>
    %81 = vector.broadcast %80 : vector<4x16x1xf32> to vector<4x16x16xf32>
    %82 = arith.mulf %77, %81 : vector<4x16x16xf32>
    %83 = arith.truncf %82 : vector<4x16x16xf32> to vector<4x16x16xbf16>
    %84 = arith.truncf %64 : vector<4x16x8xf32> to vector<4x16x8xbf16>
    "tpu.trace_start"() <{level = 10 : i32, message = "gqk,gkd->gqd"}> : () -> ()
    %cst_22 = arith.constant dense<0.000000e+00> : vector<4x16x8xf32>
    %85 = tpu.matmul %83, %84, %cst_22 {dimension_numbers = #tpu.dot_dimension_numbers<[2], [1], [1], [2], [0, 0, 0, 1, 1, 2], [0], [0]>} : vector<4x16x16xbf16>, vector<4x16x8xbf16>, vector<4x16x8xf32> -> vector<4x16x8xf32>
    "tpu.trace_stop"() : () -> ()
    %86 = vector.extract_strided_slice %85 {offsets = [0, 0, 0], sizes = [1, 16, 8], strides = [1, 1, 1]} : vector<4x16x8xf32> to vector<1x16x8xf32>
    %87 = vector.shape_cast %86 : vector<1x16x8xf32> to vector<16x8xf32>
    %88 = vector.extract_strided_slice %85 {offsets = [1, 0, 0], sizes = [1, 16, 8], strides = [1, 1, 1]} : vector<4x16x8xf32> to vector<1x16x8xf32>
    %89 = vector.shape_cast %88 : vector<1x16x8xf32> to vector<16x8xf32>
    %90 = vector.extract_strided_slice %85 {offsets = [2, 0, 0], sizes = [1, 16, 8], strides = [1, 1, 1]} : vector<4x16x8xf32> to vector<1x16x8xf32>
    %91 = vector.shape_cast %90 : vector<1x16x8xf32> to vector<16x8xf32>
    %92 = vector.extract_strided_slice %85 {offsets = [3, 0, 0], sizes = [1, 16, 8], strides = [1, 1, 1]} : vector<4x16x8xf32> to vector<1x16x8xf32>
    %93 = vector.shape_cast %92 : vector<1x16x8xf32> to vector<16x8xf32>
    %94 = tpu.concatenate %87, %89, %91, %93 in 1 : vector<16x8xf32>, vector<16x8xf32>, vector<16x8xf32>, vector<16x8xf32> -> vector<16x32xf32>
    %95 = arith.truncf %94 : vector<16x32xf32> to vector<16x32xbf16>
    %c0_23 = arith.constant 0 : index
    %c0_24 = arith.constant 0 : index
    %c0_25 = arith.constant 0 : index
    %96 = vector.load %arg3[%c0_23, %c0_24, %c0_25] : memref<2x32x32xbf16, #tpu.memory_space<vmem>>, vector<1x32x32xbf16>
    %97 = vector.shape_cast %96 : vector<1x32x32xbf16> to vector<32x32xbf16>
    %cst_26 = arith.constant dense<0.000000e+00> : vector<16x32xf32>
    %98 = tpu.matmul %95, %97, %cst_26 {dimension_numbers = #tpu.dot_dimension_numbers<[1], [0], [0], [1], [0, 0, 1, 1], [], []>} : vector<16x32xbf16>, vector<32x32xbf16>, vector<16x32xf32> -> vector<16x32xf32>
    %c0_27 = arith.constant 0 : index
    %c0_28 = arith.constant 0 : index
    %c0_29 = arith.constant 0 : index
    %99 = vector.load %arg4[%c0_27, %c0_28, %c0_29] : memref<2x1x32xf32, #tpu.memory_space<vmem>>, vector<1x1x32xf32>
    %100 = vector.shape_cast %99 : vector<1x1x32xf32> to vector<1x32xf32>
    %101 = vector.broadcast %100 : vector<1x32xf32> to vector<16x32xf32>
    %102 = arith.addf %98, %101 : vector<16x32xf32>
    %103 = arith.addf %1, %102 : vector<16x32xf32>
    %c0_30 = arith.constant 0 : index
    %c0_31 = arith.constant 0 : index
    %c0_32 = arith.constant 0 : index
    %104 = vector.load %arg7[%c0_30, %c0_31, %c0_32] : memref<2x1x32xf32, #tpu.memory_space<vmem>>, vector<1x1x32xf32>
    %105 = vector.shape_cast %104 : vector<1x1x32xf32> to vector<1x32xf32>
    %c0_33 = arith.constant 0 : index
    %c0_34 = arith.constant 0 : index
    %c0_35 = arith.constant 0 : index
    %106 = vector.load %arg8[%c0_33, %c0_34, %c0_35] : memref<2x1x32xf32, #tpu.memory_space<vmem>>, vector<1x1x32xf32>
    %107 = vector.shape_cast %106 : vector<1x1x32xf32> to vector<1x32xf32>
    %cst_36 = arith.constant dense<0.000000e+00> : vector<16xf32>
    %108 = vector.multi_reduction <add>, %103, %cst_36 [1] : vector<16x32xf32> to vector<16xf32>
    %109 = vector.shape_cast %108 : vector<16xf32> to vector<16x1xf32>
    %cst_37 = arith.constant 3.200000e+01 : f32
    %110 = vector.broadcast %cst_37 : f32 to vector<16x1xf32>
    %111 = arith.divf %109, %110 : vector<16x1xf32>
    %112 = vector.broadcast %111 : vector<16x1xf32> to vector<16x32xf32>
    %113 = arith.subf %103, %112 : vector<16x32xf32>
    %114 = arith.mulf %113, %113 : vector<16x32xf32>
    %cst_38 = arith.constant dense<0.000000e+00> : vector<16xf32>
    %115 = vector.multi_reduction <add>, %114, %cst_38 [1] : vector<16x32xf32> to vector<16xf32>
    %116 = vector.shape_cast %115 : vector<16xf32> to vector<16x1xf32>
    %cst_39 = arith.constant 3.200000e+01 : f32
    %117 = vector.broadcast %cst_39 : f32 to vector<16x1xf32>
    %118 = arith.divf %116, %117 : vector<16x1xf32>
    %119 = vector.broadcast %111 : vector<16x1xf32> to vector<16x32xf32>
    %120 = arith.subf %103, %119 : vector<16x32xf32>
    %cst_40 = arith.constant 9.99999974E-6 : f32
    %121 = vector.broadcast %cst_40 : f32 to vector<16x1xf32>
    %122 = arith.addf %118, %121 : vector<16x1xf32>
    %123 = math.rsqrt %122 : vector<16x1xf32>
    %124 = vector.broadcast %123 : vector<16x1xf32> to vector<16x32xf32>
    %125 = arith.mulf %120, %124 : vector<16x32xf32>
    %126 = vector.broadcast %105 : vector<1x32xf32> to vector<16x32xf32>
    %127 = arith.mulf %125, %126 : vector<16x32xf32>
    %128 = vector.broadcast %107 : vector<1x32xf32> to vector<16x32xf32>
    %129 = arith.addf %127, %128 : vector<16x32xf32>
    %130 = arith.truncf %129 : vector<16x32xf32> to vector<16x32xbf16>
    %c0_41 = arith.constant 0 : index
    %c0_42 = arith.constant 0 : index
    %c0_43 = arith.constant 0 : index
    %131 = vector.load %arg9[%c0_41, %c0_42, %c0_43] : memref<2x32x128xbf16, #tpu.memory_space<vmem>>, vector<1x32x128xbf16>
    %132 = vector.shape_cast %131 : vector<1x32x128xbf16> to vector<32x128xbf16>
    %cst_44 = arith.constant dense<0.000000e+00> : vector<16x128xf32>
    %133 = tpu.matmul %130, %132, %cst_44 {dimension_numbers = #tpu.dot_dimension_numbers<[1], [0], [0], [1], [0, 0, 1, 1], [], []>} : vector<16x32xbf16>, vector<32x128xbf16>, vector<16x128xf32> -> vector<16x128xf32>
    %c0_45 = arith.constant 0 : index
    %c0_46 = arith.constant 0 : index
    %c0_47 = arith.constant 0 : index
    %134 = vector.load %arg10[%c0_45, %c0_46, %c0_47] : memref<2x1x128xf32, #tpu.memory_space<vmem>>, vector<1x1x128xf32>
    %135 = vector.shape_cast %134 : vector<1x1x128xf32> to vector<1x128xf32>
    %136 = vector.broadcast %135 : vector<1x128xf32> to vector<16x128xf32>
    %137 = arith.addf %133, %136 : vector<16x128xf32>
    %cst_48 = arith.constant 0.000000e+00 : f32
    %138 = vector.broadcast %cst_48 : f32 to vector<16x128xf32>
    %139 = arith.maximumf %137, %138 : vector<16x128xf32>
    %140 = arith.truncf %139 : vector<16x128xf32> to vector<16x128xbf16>
    %c0_49 = arith.constant 0 : index
    %c0_50 = arith.constant 0 : index
    %c0_51 = arith.constant 0 : index
    %141 = vector.load %arg11[%c0_49, %c0_50, %c0_51] : memref<2x128x32xbf16, #tpu.memory_space<vmem>>, vector<1x128x32xbf16>
    %142 = vector.shape_cast %141 : vector<1x128x32xbf16> to vector<128x32xbf16>
    %cst_52 = arith.constant dense<0.000000e+00> : vector<16x32xf32>
    %143 = tpu.matmul %140, %142, %cst_52 {dimension_numbers = #tpu.dot_dimension_numbers<[1], [0], [0], [1], [0, 0, 1, 1], [], []>} : vector<16x128xbf16>, vector<128x32xbf16>, vector<16x32xf32> -> vector<16x32xf32>
    %c0_53 = arith.constant 0 : index
    %c0_54 = arith.constant 0 : index
    %c0_55 = arith.constant 0 : index
    %144 = vector.load %arg12[%c0_53, %c0_54, %c0_55] : memref<2x1x32xf32, #tpu.memory_space<vmem>>, vector<1x1x32xf32>
    %145 = vector.shape_cast %144 : vector<1x1x32xf32> to vector<1x32xf32>
    %146 = vector.broadcast %145 : vector<1x32xf32> to vector<16x32xf32>
    %147 = arith.addf %143, %146 : vector<16x32xf32>
    %148 = arith.addf %103, %147 : vector<16x32xf32>
    %c1 = arith.constant 1 : index
    %c0_56 = arith.constant 0 : index
    %c0_57 = arith.constant 0 : index
    %149 = vector.load %arg5[%c1, %c0_56, %c0_57] : memref<2x1x32xf32, #tpu.memory_space<vmem>>, vector<1x1x32xf32>
    %150 = vector.shape_cast %149 : vector<1x1x32xf32> to vector<1x32xf32>
    %c1_58 = arith.constant 1 : index
    %c0_59 = arith.constant 0 : index
    %c0_60 = arith.constant 0 : index
    %151 = vector.load %arg6[%c1_58, %c0_59, %c0_60] : memref<2x1x32xf32, #tpu.memory_space<vmem>>, vector<1x1x32xf32>
    %152 = vector.shape_cast %151 : vector<1x1x32xf32> to vector<1x32xf32>
    %cst_61 = arith.constant dense<0.000000e+00> : vector<16xf32>
    %153 = vector.multi_reduction <add>, %148, %cst_61 [1] : vector<16x32xf32> to vector<16xf32>
    %154 = vector.shape_cast %153 : vector<16xf32> to vector<16x1xf32>
    %cst_62 = arith.constant 3.200000e+01 : f32
    %155 = vector.broadcast %cst_62 : f32 to vector<16x1xf32>
    %156 = arith.divf %154, %155 : vector<16x1xf32>
    %157 = vector.broadcast %156 : vector<16x1xf32> to vector<16x32xf32>
    %158 = arith.subf %148, %157 : vector<16x32xf32>
    %159 = arith.mulf %158, %158 : vector<16x32xf32>
    %cst_63 = arith.constant dense<0.000000e+00> : vector<16xf32>
    %160 = vector.multi_reduction <add>, %159, %cst_63 [1] : vector<16x32xf32> to vector<16xf32>
    %161 = vector.shape_cast %160 : vector<16xf32> to vector<16x1xf32>
    %cst_64 = arith.constant 3.200000e+01 : f32
    %162 = vector.broadcast %cst_64 : f32 to vector<16x1xf32>
    %163 = arith.divf %161, %162 : vector<16x1xf32>
    %164 = vector.broadcast %156 : vector<16x1xf32> to vector<16x32xf32>
    %165 = arith.subf %148, %164 : vector<16x32xf32>
    %cst_65 = arith.constant 9.99999974E-6 : f32
    %166 = vector.broadcast %cst_65 : f32 to vector<16x1xf32>
    %167 = arith.addf %163, %166 : vector<16x1xf32>
    %168 = math.rsqrt %167 : vector<16x1xf32>
    %169 = vector.broadcast %168 : vector<16x1xf32> to vector<16x32xf32>
    %170 = arith.mulf %165, %169 : vector<16x32xf32>
    %171 = vector.broadcast %150 : vector<1x32xf32> to vector<16x32xf32>
    %172 = arith.mulf %170, %171 : vector<16x32xf32>
    %173 = vector.broadcast %152 : vector<1x32xf32> to vector<16x32xf32>
    %174 = arith.addf %172, %173 : vector<16x32xf32>
    %175 = arith.truncf %174 : vector<16x32xf32> to vector<16x32xbf16>
    %c1_66 = arith.constant 1 : index
    %c0_67 = arith.constant 0 : index
    %c0_68 = arith.constant 0 : index
    %176 = vector.load %arg2[%c1_66, %c0_67, %c0_68] : memref<2x32x128xbf16, #tpu.memory_space<vmem>>, vector<1x32x128xbf16>
    %177 = vector.shape_cast %176 : vector<1x32x128xbf16> to vector<32x128xbf16>
    %cst_69 = arith.constant dense<0.000000e+00> : vector<16x128xf32>
    %178 = tpu.matmul %175, %177, %cst_69 {dimension_numbers = #tpu.dot_dimension_numbers<[1], [0], [0], [1], [0, 0, 1, 1], [], []>} : vector<16x32xbf16>, vector<32x128xbf16>, vector<16x128xf32> -> vector<16x128xf32>
    %179 = vector.extract_strided_slice %178 {offsets = [0, 0], sizes = [16, 8], strides = [1, 1]} : vector<16x128xf32> to vector<16x8xf32>
    %180 = vector.shape_cast %179 : vector<16x8xf32> to vector<1x16x8xf32>
    %181 = vector.extract_strided_slice %178 {offsets = [0, 8], sizes = [16, 8], strides = [1, 1]} : vector<16x128xf32> to vector<16x8xf32>
    %182 = vector.shape_cast %181 : vector<16x8xf32> to vector<1x16x8xf32>
    %183 = vector.extract_strided_slice %178 {offsets = [0, 16], sizes = [16, 8], strides = [1, 1]} : vector<16x128xf32> to vector<16x8xf32>
    %184 = vector.shape_cast %183 : vector<16x8xf32> to vector<1x16x8xf32>
    %185 = vector.extract_strided_slice %178 {offsets = [0, 24], sizes = [16, 8], strides = [1, 1]} : vector<16x128xf32> to vector<16x8xf32>
    %186 = vector.shape_cast %185 : vector<16x8xf32> to vector<1x16x8xf32>
    %187 = tpu.concatenate %180, %182, %184, %186 in 0 : vector<1x16x8xf32>, vector<1x16x8xf32>, vector<1x16x8xf32>, vector<1x16x8xf32> -> vector<4x16x8xf32>
    %188 = vector.extract_strided_slice %178 {offsets = [0, 32], sizes = [16, 8], strides = [1, 1]} : vector<16x128xf32> to vector<16x8xf32>
    %189 = vector.shape_cast %188 : vector<16x8xf32> to vector<1x16x8xf32>
    %190 = vector.extract_strided_slice %178 {offsets = [0, 40], sizes = [16, 8], strides = [1, 1]} : vector<16x128xf32> to vector<16x8xf32>
    %191 = vector.shape_cast %190 : vector<16x8xf32> to vector<1x16x8xf32>
    %192 = vector.extract_strided_slice %178 {offsets = [0, 48], sizes = [16, 8], strides = [1, 1]} : vector<16x128xf32> to vector<16x8xf32>
    %193 = vector.shape_cast %192 : vector<16x8xf32> to vector<1x16x8xf32>
    %194 = vector.extract_strided_slice %178 {offsets = [0, 56], sizes = [16, 8], strides = [1, 1]} : vector<16x128xf32> to vector<16x8xf32>
    %195 = vector.shape_cast %194 : vector<16x8xf32> to vector<1x16x8xf32>
    %196 = tpu.concatenate %189, %191, %193, %195 in 0 : vector<1x16x8xf32>, vector<1x16x8xf32>, vector<1x16x8xf32>, vector<1x16x8xf32> -> vector<4x16x8xf32>
    %197 = vector.extract_strided_slice %178 {offsets = [0, 64], sizes = [16, 8], strides = [1, 1]} : vector<16x128xf32> to vector<16x8xf32>
    %198 = vector.shape_cast %197 : vector<16x8xf32> to vector<1x16x8xf32>
    %199 = vector.extract_strided_slice %178 {offsets = [0, 72], sizes = [16, 8], strides = [1, 1]} : vector<16x128xf32> to vector<16x8xf32>
    %200 = vector.shape_cast %199 : vector<16x8xf32> to vector<1x16x8xf32>
    %201 = vector.extract_strided_slice %178 {offsets = [0, 80], sizes = [16, 8], strides = [1, 1]} : vector<16x128xf32> to vector<16x8xf32>
    %202 = vector.shape_cast %201 : vector<16x8xf32> to vector<1x16x8xf32>
    %203 = vector.extract_strided_slice %178 {offsets = [0, 88], sizes = [16, 8], strides = [1, 1]} : vector<16x128xf32> to vector<16x8xf32>
    %204 = vector.shape_cast %203 : vector<16x8xf32> to vector<1x16x8xf32>
    %205 = tpu.concatenate %198, %200, %202, %204 in 0 : vector<1x16x8xf32>, vector<1x16x8xf32>, vector<1x16x8xf32>, vector<1x16x8xf32> -> vector<4x16x8xf32>
    %206 = arith.truncf %187 : vector<4x16x8xf32> to vector<4x16x8xbf16>
    %207 = arith.truncf %196 : vector<4x16x8xf32> to vector<4x16x8xbf16>
    "tpu.trace_start"() <{level = 10 : i32, message = "gqd,gkd->gqk"}> : () -> ()
    %cst_70 = arith.constant dense<0.000000e+00> : vector<4x16x16xf32>
    %208 = tpu.matmul %206, %207, %cst_70 {dimension_numbers = #tpu.dot_dimension_numbers<[2], [2], [1], [1], [0, 0, 0, 1, 1, 1], [0], [0]>} : vector<4x16x8xbf16>, vector<4x16x8xbf16>, vector<4x16x16xf32> -> vector<4x16x16xf32>
    "tpu.trace_stop"() : () -> ()
    %cst_71 = arith.constant 0.353553385 : f32
    %209 = vector.broadcast %cst_71 : f32 to vector<4x16x16xf32>
    %210 = arith.mulf %208, %209 : vector<4x16x16xf32>
    %211 = vector.shape_cast %7 : vector<16x16xf32> to vector<1x16x16xf32>
    %212 = vector.broadcast %211 : vector<1x16x16xf32> to vector<4x16x16xf32>
    %213 = arith.addf %210, %212 : vector<4x16x16xf32>
    %cst_72 = arith.constant dense<0xFF800000> : vector<4x16xf32>
    %214 = vector.multi_reduction <maximumf>, %213, %cst_72 [2] : vector<4x16x16xf32> to vector<4x16xf32>
    %215 = vector.shape_cast %214 : vector<4x16xf32> to vector<4x16x1xf32>
    %216 = vector.broadcast %215 : vector<4x16x1xf32> to vector<4x16x16xf32>
    %217 = arith.subf %213, %216 : vector<4x16x16xf32>
    %218 = math.exp %217 : vector<4x16x16xf32>
    %cst_73 = arith.constant dense<0.000000e+00> : vector<4x16xf32>
    %219 = vector.multi_reduction <add>, %218, %cst_73 [2] : vector<4x16x16xf32> to vector<4x16xf32>
    %220 = vector.shape_cast %219 : vector<4x16xf32> to vector<4x16x1xf32>
    %221 = tpu.reciprocal %220 {approx = true} : vector<4x16x1xf32> -> vector<4x16x1xf32>
    %222 = vector.broadcast %221 : vector<4x16x1xf32> to vector<4x16x16xf32>
    %223 = arith.mulf %218, %222 : vector<4x16x16xf32>
    %224 = arith.truncf %223 : vector<4x16x16xf32> to vector<4x16x16xbf16>
    %225 = arith.truncf %205 : vector<4x16x8xf32> to vector<4x16x8xbf16>
    "tpu.trace_start"() <{level = 10 : i32, message = "gqk,gkd->gqd"}> : () -> ()
    %cst_74 = arith.constant dense<0.000000e+00> : vector<4x16x8xf32>
    %226 = tpu.matmul %224, %225, %cst_74 {dimension_numbers = #tpu.dot_dimension_numbers<[2], [1], [1], [2], [0, 0, 0, 1, 1, 2], [0], [0]>} : vector<4x16x16xbf16>, vector<4x16x8xbf16>, vector<4x16x8xf32> -> vector<4x16x8xf32>
    "tpu.trace_stop"() : () -> ()
    %227 = vector.extract_strided_slice %226 {offsets = [0, 0, 0], sizes = [1, 16, 8], strides = [1, 1, 1]} : vector<4x16x8xf32> to vector<1x16x8xf32>
    %228 = vector.shape_cast %227 : vector<1x16x8xf32> to vector<16x8xf32>
    %229 = vector.extract_strided_slice %226 {offsets = [1, 0, 0], sizes = [1, 16, 8], strides = [1, 1, 1]} : vector<4x16x8xf32> to vector<1x16x8xf32>
    %230 = vector.shape_cast %229 : vector<1x16x8xf32> to vector<16x8xf32>
    %231 = vector.extract_strided_slice %226 {offsets = [2, 0, 0], sizes = [1, 16, 8], strides = [1, 1, 1]} : vector<4x16x8xf32> to vector<1x16x8xf32>
    %232 = vector.shape_cast %231 : vector<1x16x8xf32> to vector<16x8xf32>
    %233 = vector.extract_strided_slice %226 {offsets = [3, 0, 0], sizes = [1, 16, 8], strides = [1, 1, 1]} : vector<4x16x8xf32> to vector<1x16x8xf32>
    %234 = vector.shape_cast %233 : vector<1x16x8xf32> to vector<16x8xf32>
    %235 = tpu.concatenate %228, %230, %232, %234 in 1 : vector<16x8xf32>, vector<16x8xf32>, vector<16x8xf32>, vector<16x8xf32> -> vector<16x32xf32>
    %236 = arith.truncf %235 : vector<16x32xf32> to vector<16x32xbf16>
    %c1_75 = arith.constant 1 : index
    %c0_76 = arith.constant 0 : index
    %c0_77 = arith.constant 0 : index
    %237 = vector.load %arg3[%c1_75, %c0_76, %c0_77] : memref<2x32x32xbf16, #tpu.memory_space<vmem>>, vector<1x32x32xbf16>
    %238 = vector.shape_cast %237 : vector<1x32x32xbf16> to vector<32x32xbf16>
    %cst_78 = arith.constant dense<0.000000e+00> : vector<16x32xf32>
    %239 = tpu.matmul %236, %238, %cst_78 {dimension_numbers = #tpu.dot_dimension_numbers<[1], [0], [0], [1], [0, 0, 1, 1], [], []>} : vector<16x32xbf16>, vector<32x32xbf16>, vector<16x32xf32> -> vector<16x32xf32>
    %c1_79 = arith.constant 1 : index
    %c0_80 = arith.constant 0 : index
    %c0_81 = arith.constant 0 : index
    %240 = vector.load %arg4[%c1_79, %c0_80, %c0_81] : memref<2x1x32xf32, #tpu.memory_space<vmem>>, vector<1x1x32xf32>
    %241 = vector.shape_cast %240 : vector<1x1x32xf32> to vector<1x32xf32>
    %242 = vector.broadcast %241 : vector<1x32xf32> to vector<16x32xf32>
    %243 = arith.addf %239, %242 : vector<16x32xf32>
    %244 = arith.addf %148, %243 : vector<16x32xf32>
    %c1_82 = arith.constant 1 : index
    %c0_83 = arith.constant 0 : index
    %c0_84 = arith.constant 0 : index
    %245 = vector.load %arg7[%c1_82, %c0_83, %c0_84] : memref<2x1x32xf32, #tpu.memory_space<vmem>>, vector<1x1x32xf32>
    %246 = vector.shape_cast %245 : vector<1x1x32xf32> to vector<1x32xf32>
    %c1_85 = arith.constant 1 : index
    %c0_86 = arith.constant 0 : index
    %c0_87 = arith.constant 0 : index
    %247 = vector.load %arg8[%c1_85, %c0_86, %c0_87] : memref<2x1x32xf32, #tpu.memory_space<vmem>>, vector<1x1x32xf32>
    %248 = vector.shape_cast %247 : vector<1x1x32xf32> to vector<1x32xf32>
    %cst_88 = arith.constant dense<0.000000e+00> : vector<16xf32>
    %249 = vector.multi_reduction <add>, %244, %cst_88 [1] : vector<16x32xf32> to vector<16xf32>
    %250 = vector.shape_cast %249 : vector<16xf32> to vector<16x1xf32>
    %cst_89 = arith.constant 3.200000e+01 : f32
    %251 = vector.broadcast %cst_89 : f32 to vector<16x1xf32>
    %252 = arith.divf %250, %251 : vector<16x1xf32>
    %253 = vector.broadcast %252 : vector<16x1xf32> to vector<16x32xf32>
    %254 = arith.subf %244, %253 : vector<16x32xf32>
    %255 = arith.mulf %254, %254 : vector<16x32xf32>
    %cst_90 = arith.constant dense<0.000000e+00> : vector<16xf32>
    %256 = vector.multi_reduction <add>, %255, %cst_90 [1] : vector<16x32xf32> to vector<16xf32>
    %257 = vector.shape_cast %256 : vector<16xf32> to vector<16x1xf32>
    %cst_91 = arith.constant 3.200000e+01 : f32
    %258 = vector.broadcast %cst_91 : f32 to vector<16x1xf32>
    %259 = arith.divf %257, %258 : vector<16x1xf32>
    %260 = vector.broadcast %252 : vector<16x1xf32> to vector<16x32xf32>
    %261 = arith.subf %244, %260 : vector<16x32xf32>
    %cst_92 = arith.constant 9.99999974E-6 : f32
    %262 = vector.broadcast %cst_92 : f32 to vector<16x1xf32>
    %263 = arith.addf %259, %262 : vector<16x1xf32>
    %264 = math.rsqrt %263 : vector<16x1xf32>
    %265 = vector.broadcast %264 : vector<16x1xf32> to vector<16x32xf32>
    %266 = arith.mulf %261, %265 : vector<16x32xf32>
    %267 = vector.broadcast %246 : vector<1x32xf32> to vector<16x32xf32>
    %268 = arith.mulf %266, %267 : vector<16x32xf32>
    %269 = vector.broadcast %248 : vector<1x32xf32> to vector<16x32xf32>
    %270 = arith.addf %268, %269 : vector<16x32xf32>
    %271 = arith.truncf %270 : vector<16x32xf32> to vector<16x32xbf16>
    %c1_93 = arith.constant 1 : index
    %c0_94 = arith.constant 0 : index
    %c0_95 = arith.constant 0 : index
    %272 = vector.load %arg9[%c1_93, %c0_94, %c0_95] : memref<2x32x128xbf16, #tpu.memory_space<vmem>>, vector<1x32x128xbf16>
    %273 = vector.shape_cast %272 : vector<1x32x128xbf16> to vector<32x128xbf16>
    %cst_96 = arith.constant dense<0.000000e+00> : vector<16x128xf32>
    %274 = tpu.matmul %271, %273, %cst_96 {dimension_numbers = #tpu.dot_dimension_numbers<[1], [0], [0], [1], [0, 0, 1, 1], [], []>} : vector<16x32xbf16>, vector<32x128xbf16>, vector<16x128xf32> -> vector<16x128xf32>
    %c1_97 = arith.constant 1 : index
    %c0_98 = arith.constant 0 : index
    %c0_99 = arith.constant 0 : index
    %275 = vector.load %arg10[%c1_97, %c0_98, %c0_99] : memref<2x1x128xf32, #tpu.memory_space<vmem>>, vector<1x1x128xf32>
    %276 = vector.shape_cast %275 : vector<1x1x128xf32> to vector<1x128xf32>
    %277 = vector.broadcast %276 : vector<1x128xf32> to vector<16x128xf32>
    %278 = arith.addf %274, %277 : vector<16x128xf32>
    %cst_100 = arith.constant 0.000000e+00 : f32
    %279 = vector.broadcast %cst_100 : f32 to vector<16x128xf32>
    %280 = arith.maximumf %278, %279 : vector<16x128xf32>
    %281 = arith.truncf %280 : vector<16x128xf32> to vector<16x128xbf16>
    %c1_101 = arith.constant 1 : index
    %c0_102 = arith.constant 0 : index
    %c0_103 = arith.constant 0 : index
    %282 = vector.load %arg11[%c1_101, %c0_102, %c0_103] : memref<2x128x32xbf16, #tpu.memory_space<vmem>>, vector<1x128x32xbf16>
    %283 = vector.shape_cast %282 : vector<1x128x32xbf16> to vector<128x32xbf16>
    %cst_104 = arith.constant dense<0.000000e+00> : vector<16x32xf32>
    %284 = tpu.matmul %281, %283, %cst_104 {dimension_numbers = #tpu.dot_dimension_numbers<[1], [0], [0], [1], [0, 0, 1, 1], [], []>} : vector<16x128xbf16>, vector<128x32xbf16>, vector<16x32xf32> -> vector<16x32xf32>
    %c1_105 = arith.constant 1 : index
    %c0_106 = arith.constant 0 : index
    %c0_107 = arith.constant 0 : index
    %285 = vector.load %arg12[%c1_105, %c0_106, %c0_107] : memref<2x1x32xf32, #tpu.memory_space<vmem>>, vector<1x1x32xf32>
    %286 = vector.shape_cast %285 : vector<1x1x32xf32> to vector<1x32xf32>
    %287 = vector.broadcast %286 : vector<1x32xf32> to vector<16x32xf32>
    %288 = arith.addf %284, %287 : vector<16x32xf32>
    %289 = arith.addf %244, %288 : vector<16x32xf32>
    %c0_108 = arith.constant 0 : index
    %c0_109 = arith.constant 0 : index
    %290 = vector.load %arg13[%c0_108, %c0_109] : memref<1x32xf32, #tpu.memory_space<vmem>>, vector<1x32xf32>
    %c0_110 = arith.constant 0 : index
    %c0_111 = arith.constant 0 : index
    %291 = vector.load %arg14[%c0_110, %c0_111] : memref<1x32xf32, #tpu.memory_space<vmem>>, vector<1x32xf32>
    %cst_112 = arith.constant dense<0.000000e+00> : vector<16xf32>
    %292 = vector.multi_reduction <add>, %289, %cst_112 [1] : vector<16x32xf32> to vector<16xf32>
    %293 = vector.shape_cast %292 : vector<16xf32> to vector<16x1xf32>
    %cst_113 = arith.constant 3.200000e+01 : f32
    %294 = vector.broadcast %cst_113 : f32 to vector<16x1xf32>
    %295 = arith.divf %293, %294 : vector<16x1xf32>
    %296 = vector.broadcast %295 : vector<16x1xf32> to vector<16x32xf32>
    %297 = arith.subf %289, %296 : vector<16x32xf32>
    %298 = arith.mulf %297, %297 : vector<16x32xf32>
    %cst_114 = arith.constant dense<0.000000e+00> : vector<16xf32>
    %299 = vector.multi_reduction <add>, %298, %cst_114 [1] : vector<16x32xf32> to vector<16xf32>
    %300 = vector.shape_cast %299 : vector<16xf32> to vector<16x1xf32>
    %cst_115 = arith.constant 3.200000e+01 : f32
    %301 = vector.broadcast %cst_115 : f32 to vector<16x1xf32>
    %302 = arith.divf %300, %301 : vector<16x1xf32>
    %303 = vector.broadcast %295 : vector<16x1xf32> to vector<16x32xf32>
    %304 = arith.subf %289, %303 : vector<16x32xf32>
    %cst_116 = arith.constant 3.200000e+01 : f32
    %305 = vector.broadcast %cst_116 : f32 to vector<16x1xf32>
    %306 = arith.addf %302, %305 : vector<16x1xf32>
    %307 = math.rsqrt %306 : vector<16x1xf32>
    %308 = vector.broadcast %307 : vector<16x1xf32> to vector<16x32xf32>
    %309 = arith.mulf %304, %308 : vector<16x32xf32>
    %310 = vector.broadcast %290 : vector<1x32xf32> to vector<16x32xf32>
    %311 = arith.mulf %309, %310 : vector<16x32xf32>
    %312 = vector.broadcast %291 : vector<1x32xf32> to vector<16x32xf32>
    %313 = arith.addf %311, %312 : vector<16x32xf32>
    %314 = arith.truncf %313 : vector<16x32xf32> to vector<16x32xbf16>
    %c0_117 = arith.constant 0 : index
    %c0_118 = arith.constant 0 : index
    %315 = vector.load %arg15[%c0_117, %c0_118] : memref<32x128xbf16, #tpu.memory_space<vmem>>, vector<32x128xbf16>
    %cst_119 = arith.constant dense<0.000000e+00> : vector<16x128xf32>
    %316 = tpu.matmul %314, %315, %cst_119 {dimension_numbers = #tpu.dot_dimension_numbers<[1], [0], [0], [1], [0, 0, 1, 1], [], []>} : vector<16x32xbf16>, vector<32x128xbf16>, vector<16x128xf32> -> vector<16x128xf32>
    %c0_120 = arith.constant 0 : index
    %c0_121 = arith.constant 0 : index
    %317 = vector.load %arg16[%c0_120, %c0_121] : memref<1x128xf32, #tpu.memory_space<vmem>>, vector<1x128xf32>
    %318 = vector.broadcast %317 : vector<1x128xf32> to vector<16x128xf32>
    %319 = arith.addf %316, %318 : vector<16x128xf32>
    %320 = vector.shape_cast %319 : vector<16x128xf32> to vector<1x16x128xf32>
    %c0_122 = arith.constant 0 : index
    %c0_123 = arith.constant 0 : index
    %c0_124 = arith.constant 0 : index
    %321 = vector.load %arg17[%c0_122, %c0_123, %c0_124] : memref<1x16x128xf32, #tpu.memory_space<vmem>>, vector<1x16x128xf32>
    tpu.vector_store %arg17[%c0_122, %c0_123, %c0_124], %320 {strides = array<i32>} : memref<1x16x128xf32, #tpu.memory_space<vmem>>, vector<1x16x128xf32>,
    return
  }
  func.func @transform_0(%arg0: i32) -> (i32, i32, i32) {
    %c0_i32 = arith.constant 0 : i32
    %c0_i32_0 = arith.constant 0 : i32
    %c0_i32_1 = arith.constant 0 : i32
    return %arg0, %c0_i32, %c0_i32_0 : i32, i32, i32
  }
  func.func @transform_1(%arg0: i32) -> (i32, i32, i32) {
    %c0_i32 = arith.constant 0 : i32
    %c0_i32_0 = arith.constant 0 : i32
    %c0_i32_1 = arith.constant 0 : i32
    %c0_i32_2 = arith.constant 0 : i32
    return %c0_i32, %c0_i32_0, %c0_i32_1 : i32, i32, i32
  }
  func.func @transform_2(%arg0: i32) -> (i32, i32, i32) {
    %c0_i32 = arith.constant 0 : i32
    %c0_i32_0 = arith.constant 0 : i32
    %c0_i32_1 = arith.constant 0 : i32
    %c0_i32_2 = arith.constant 0 : i32
    return %c0_i32, %c0_i32_0, %c0_i32_1 : i32, i32, i32
  }
  func.func @transform_3(%arg0: i32) -> (i32, i32, i32) {
    %c0_i32 = arith.constant 0 : i32
    %c0_i32_0 = arith.constant 0 : i32
    %c0_i32_1 = arith.constant 0 : i32
    %c0_i32_2 = arith.constant 0 : i32
    return %c0_i32, %c0_i32_0, %c0_i32_1 : i32, i32, i32
  }
  func.func @transform_4(%arg0: i32) -> (i32, i32, i32) {
    %c0_i32 = arith.constant 0 : i32
    %c0_i32_0 = arith.constant 0 : i32
    %c0_i32_1 = arith.constant 0 : i32
    %c0_i32_2 = arith.constant 0 : i32
    return %c0_i32, %c0_i32_0, %c0_i32_1 : i32, i32, i32
  }
  func.func @transform_5(%arg0: i32) -> (i32, i32, i32) {
    %c0_i32 = arith.constant 0 : i32
    %c0_i32_0 = arith.constant 0 : i32
    %c0_i32_1 = arith.constant 0 : i32
    %c0_i32_2 = arith.constant 0 : i32
    return %c0_i32, %c0_i32_0, %c0_i32_1 : i32, i32, i32
  }
  func.func @transform_6(%arg0: i32) -> (i32, i32, i32) {
    %c0_i32 = arith.constant 0 : i32
    %c0_i32_0 = arith.constant 0 : i32
    %c0_i32_1 = arith.constant 0 : i32
    %c0_i32_2 = arith.constant 0 : i32
    return %c0_i32, %c0_i32_0, %c0_i32_1 : i32, i32, i32
  }
  func.func @transform_7(%arg0: i32) -> (i32, i32, i32) {
    %c0_i32 = arith.constant 0 : i32
    %c0_i32_0 = arith.constant 0 : i32
    %c0_i32_1 = arith.constant 0 : i32
    %c0_i32_2 = arith.constant 0 : i32
    return %c0_i32, %c0_i32_0, %c0_i32_1 : i32, i32, i32
  }
  func.func @transform_8(%arg0: i32) -> (i32, i32, i32) {
    %c0_i32 = arith.constant 0 : i32
    %c0_i32_0 = arith.constant 0 : i32
    %c0_i32_1 = arith.constant 0 : i32
    %c0_i32_2 = arith.constant 0 : i32
    return %c0_i32, %c0_i32_0, %c0_i32_1 : i32, i32, i32
  }
  func.func @transform_9(%arg0: i32) -> (i32, i32, i32) {
    %c0_i32 = arith.constant 0 : i32
    %c0_i32_0 = arith.constant 0 : i32
    %c0_i32_1 = arith.constant 0 : i32
    %c0_i32_2 = arith.constant 0 : i32
    return %c0_i32, %c0_i32_0, %c0_i32_1 : i32, i32, i32
  }
  func.func @transform_10(%arg0: i32) -> (i32, i32, i32) {
    %c0_i32 = arith.constant 0 : i32
    %c0_i32_0 = arith.constant 0 : i32
    %c0_i32_1 = arith.constant 0 : i32
    %c0_i32_2 = arith.constant 0 : i32
    return %c0_i32, %c0_i32_0, %c0_i32_1 : i32, i32, i32
  }
  func.func @transform_11(%arg0: i32) -> (i32, i32, i32) {
    %c0_i32 = arith.constant 0 : i32
    %c0_i32_0 = arith.constant 0 : i32
    %c0_i32_1 = arith.constant 0 : i32
    %c0_i32_2 = arith.constant 0 : i32
    return %c0_i32, %c0_i32_0, %c0_i32_1 : i32, i32, i32
  }
  func.func @transform_12(%arg0: i32) -> (i32, i32) {
    %c0_i32 = arith.constant 0 : i32
    %c0_i32_0 = arith.constant 0 : i32
    %c0_i32_1 = arith.constant 0 : i32
    return %c0_i32, %c0_i32_0 : i32, i32
  }
  func.func @transform_13(%arg0: i32) -> (i32, i32) {
    %c0_i32 = arith.constant 0 : i32
    %c0_i32_0 = arith.constant 0 : i32
    %c0_i32_1 = arith.constant 0 : i32
    return %c0_i32, %c0_i32_0 : i32, i32
  }
  func.func @transform_14(%arg0: i32) -> (i32, i32) {
    %c0_i32 = arith.constant 0 : i32
    %c0_i32_0 = arith.constant 0 : i32
    %c0_i32_1 = arith.constant 0 : i32
    return %c0_i32, %c0_i32_0 : i32, i32
  }
  func.func @transform_15(%arg0: i32) -> (i32, i32) {
    %c0_i32 = arith.constant 0 : i32
    %c0_i32_0 = arith.constant 0 : i32
    %c0_i32_1 = arith.constant 0 : i32
    return %c0_i32, %c0_i32_0 : i32, i32
  }
  func.func @transform_16(%arg0: i32) -> (i32, i32, i32) {
    %c0_i32 = arith.constant 0 : i32
    %c0_i32_0 = arith.constant 0 : i32
    %c0_i32_1 = arith.constant 0 : i32
    return %arg0, %c0_i32, %c0_i32_0 : i32, i32, i32
  }
}

</mosaic_0001>

<llo_original>
// kernel: tpu_custom_call.1
$region0: #{tpu_custom_call.1}
  #allocation0 [shape = 'u32[]', space=smem, size = 0x4, offset = 0x4, fixed_abs, tag = 'smem constant byte address 0x4 - core index']
  #allocation1 [shape = 'u32[144,128]{1,0:T(1,128)}', space=vmem, size = 0x12000, scoped, tag = 'internal scratch']
  %s0 = inlined_call_operand.vmem [shape: f32[2,16,32], index: 0, kind: input, shape index: {}]
  %s1 = inlined_call_operand.vmem [shape: bf16[2,32,128], index: 1, kind: input, shape index: {}]
  %s2 = inlined_call_operand.vmem [shape: bf16[2,32,32], index: 2, kind: input, shape index: {}]
  %s3 = inlined_call_operand.vmem [shape: f32[2,1,32], index: 3, kind: input, shape index: {}]
  %s4 = inlined_call_operand.vmem [shape: f32[2,1,32], index: 4, kind: input, shape index: {}]
  %s5 = inlined_call_operand.vmem [shape: f32[2,1,32], index: 5, kind: input, shape index: {}]
  %s6 = inlined_call_operand.vmem [shape: f32[2,1,32], index: 6, kind: input, shape index: {}]
  %s7 = inlined_call_operand.vmem [shape: f32[2,1,32], index: 7, kind: input, shape index: {}]
  %s8 = inlined_call_operand.vmem [shape: bf16[2,32,128], index: 8, kind: input, shape index: {}]
  %s9 = inlined_call_operand.vmem [shape: f32[2,1,128], index: 9, kind: input, shape index: {}]
  %s10 = inlined_call_operand.vmem [shape: bf16[2,128,32], index: 10, kind: input, shape index: {}]
  %s11 = inlined_call_operand.vmem [shape: f32[2,1,32], index: 11, kind: input, shape index: {}]
  %s12 = inlined_call_operand.vmem [shape: f32[1,32], index: 12, kind: input, shape index: {}]
  %s13 = inlined_call_operand.vmem [shape: f32[1,32], index: 13, kind: input, shape index: {}]
  %s14 = inlined_call_operand.vmem [shape: bf16[32,128], index: 14, kind: input, shape index: {}]
  %s15 = inlined_call_operand.vmem [shape: f32[1,128], index: 15, kind: input, shape index: {}]
  %s16 = inlined_call_operand.hbm [shape: f32[2,16,128], index: 16, kind: output, shape index: {}]
  %s17 = sld [smem:[#allocation0]]
  $region97: #{tpu_custom_call.1} parent=0
    _
  %s19 = ssub.s32 1, %s17
  %s20 = scalar_select 0, %s19, %s17
  $region1: #{tpu_custom_call.1} parent=0
    #allocation2 [shape = 'u8[16384]{0}', space=vmem, size = 0x4000, scoped, tag = 'output window, operand 0']
    #allocation3 [shape = 's32[2]{0}', space=sflag, size = 0x8, scoped, tag = 'scoped memory for tpu_custom_call.1']
    %21 = vsyncpa [#allocation3], 0
    %s22 = scalar_lea.sflag [#allocation3], 1
    %23 = vsyncpa %s22, 0
    loop: start=0, step=1, limit=4
    $region2: #{tpu_custom_call.1} parent=1 // loop_pre_header
      _
    $region3: #{tpu_custom_call.1} parent=1 // loop_header
      %s25 = sphi 0, %s29
      %p26 = scmp.ge.s32.totalorder %s25, 4
      %s35 = sphi 0, %s37
      %s38 = sphi 0, %s35
      %s39 = sphi 0, %s38
      %s55 = sphi 0, %s39
      %s59 = sphi 0, %s59
      %s61 = sphi 0, %s59
      %s62 = sphi 0, %s61
      %s76 = sphi 0, %s62
      %s80 = sphi 0, %s80
      %s82 = sphi 0, %s80
      %s83 = sphi 0, %s82
      %s97 = sphi 0, %s83
      %s101 = sphi 0, %s101
      %s103 = sphi 0, %s101
      %s104 = sphi 0, %s103
      %s118 = sphi 0, %s104
      %s122 = sphi 0, %s122
      %s124 = sphi 0, %s122
      %s125 = sphi 0, %s124
      %s139 = sphi 0, %s125
      %s143 = sphi 0, %s143
      %s145 = sphi 0, %s143
      %s146 = sphi 0, %s145
      %s160 = sphi 0, %s146
      %s164 = sphi 0, %s164
      %s166 = sphi 0, %s164
      %s167 = sphi 0, %s166
      %s181 = sphi 0, %s167
      %s185 = sphi 0, %s185
      %s187 = sphi 0, %s185
      %s188 = sphi 0, %s187
      %s202 = sphi 0, %s188
      %s206 = sphi 0, %s206
      %s208 = sphi 0, %s206
      %s209 = sphi 0, %s208
      %s223 = sphi 0, %s209
      %s227 = sphi 0, %s227
      %s229 = sphi 0, %s227
      %s230 = sphi 0, %s229
      %s244 = sphi 0, %s230
      %s248 = sphi 0, %s248
      %s250 = sphi 0, %s248
      %s251 = sphi 0, %s250
      %s265 = sphi 0, %s251
      %s269 = sphi 0, %s269
      %s271 = sphi 0, %s269
      %s272 = sphi 0, %s271
      %s286 = sphi 0, %s272
      %s290 = sphi 0, %s290
      %s292 = sphi 0, %s290
      %s293 = sphi 0, %s292
      %s307 = sphi 0, %s293
      %s311 = sphi 0, %s311
      %s313 = sphi 0, %s311
      %s314 = sphi 0, %s313
      %s328 = sphi 0, %s314
      %s332 = sphi 0, %s332
      %s334 = sphi 0, %s332
      %s335 = sphi 0, %s334
      %s349 = sphi 0, %s335
      %s353 = sphi 0, %s353
      %s355 = sphi 0, %s353
      %s356 = sphi 0, %s355
      %s370 = sphi 0, %s356
      %s376 = sphi 0, %s378
      %s379 = sphi 0, %s376
      %s380 = sphi 0, %s379
      %s396 = sphi 0, %s380
    $region4: #{tpu_custom_call.1} parent=1 // loop_header_branch
      %28 = sbr.rel (%p26) target = $region8
    $region5: #{tpu_custom_call.1} parent=1 // loop_body
      %s30 = ssub.s32 %s25, 1
      %s31 = ssub.s32 %s25, 2
      %s32 = sadd.s32 %s25, 1
      %s33 = ssub.s32 %s25, %s32
      %p34 = scmp.eq.s32.totalorder %s33, 0
      %s36 = sadd.s32 %s35, 1
      %s37 = scalar_select %p34, %s35, %s36
      %p40 = pneg %p34
      %p41 = scmp.eq.s32.totalorder %s25, 1
      %p42 = por %p40, %p41
      %p43 = scmp.ne.s32.totalorder %s35, %s38
      %p44 = scmp.eq.s32.totalorder %s25, 0
      %p45 = por %p43, %p44
      %p46 = scmp.ne.s32.totalorder %s35, %s38
      %p47 = scmp.eq.s32.totalorder %s30, 1
      %p48 = por %p46, %p47
      %p49 = scmp.ne.s32.totalorder %s38, %s39
      %p50 = scmp.eq.s32.totalorder %s30, 0
      %p51 = por %p49, %p50
      %p52 = scmp.ne.s32.totalorder %s38, %s39
      %p53 = scmp.eq.s32.totalorder %s31, 1
      %p54 = por %p52, %p53
      %p56 = scmp.ne.s32.totalorder %s39, %s55
      %p57 = scmp.eq.s32.totalorder %s31, 0
      %p58 = por %p56, %p57
      %s60 = sadd.s32 %s59, 1
      %p63 = scmp.eq.s32.totalorder %s25, 1
      %p64 = scmp.ne.s32.totalorder %s59, %s61
      %p65 = scmp.eq.s32.totalorder %s25, 0
      %p66 = por %p64, %p65
      %p67 = scmp.ne.s32.totalorder %s59, %s61
      %p68 = scmp.eq.s32.totalorder %s30, 1
      %p69 = por %p67, %p68
      %p70 = scmp.ne.s32.totalorder %s61, %s62
      %p71 = scmp.eq.s32.totalorder %s30, 0
      %p72 = por %p70, %p71
      %p73 = scmp.ne.s32.totalorder %s61, %s62
      %p74 = scmp.eq.s32.totalorder %s31, 1
      %p75 = por %p73, %p74
      %p77 = scmp.ne.s32.totalorder %s62, %s76
      %p78 = scmp.eq.s32.totalorder %s31, 0
      %p79 = por %p77, %p78
      %s81 = sadd.s32 %s80, 1
      %p84 = scmp.eq.s32.totalorder %s25, 1
      %p85 = scmp.ne.s32.totalorder %s80, %s82
      %p86 = scmp.eq.s32.totalorder %s25, 0
      %p87 = por %p85, %p86
      %p88 = scmp.ne.s32.totalorder %s80, %s82
      %p89 = scmp.eq.s32.totalorder %s30, 1
      %p90 = por %p88, %p89
      %p91 = scmp.ne.s32.totalorder %s82, %s83
      %p92 = scmp.eq.s32.totalorder %s30, 0
      %p93 = por %p91, %p92
      %p94 = scmp.ne.s32.totalorder %s82, %s83
      %p95 = scmp.eq.s32.totalorder %s31, 1
      %p96 = por %p94, %p95
      %p98 = scmp.ne.s32.totalorder %s83, %s97
      %p99 = scmp.eq.s32.totalorder %s31, 0
      %p100 = por %p98, %p99
      %s102 = sadd.s32 %s101, 1
      %p105 = scmp.eq.s32.totalorder %s25, 1
      %p106 = scmp.ne.s32.totalorder %s101, %s103
      %p107 = scmp.eq.s32.totalorder %s25, 0
      %p108 = por %p106, %p107
      %p109 = scmp.ne.s32.totalorder %s101, %s103
      %p110 = scmp.eq.s32.totalorder %s30, 1
      %p111 = por %p109, %p110
      %p112 = scmp.ne.s32.totalorder %s103, %s104
      %p113 = scmp.eq.s32.totalorder %s30, 0
      %p114 = por %p112, %p113
      %p115 = scmp.ne.s32.totalorder %s103, %s104
      %p116 = scmp.eq.s32.totalorder %s31, 1
      %p117 = por %p115, %p116
      %p119 = scmp.ne.s32.totalorder %s104, %s118
      %p120 = scmp.eq.s32.totalorder %s31, 0
      %p121 = por %p119, %p120
      %s123 = sadd.s32 %s122, 1
      %p126 = scmp.eq.s32.totalorder %s25, 1
      %p127 = scmp.ne.s32.totalorder %s122, %s124
      %p128 = scmp.eq.s32.totalorder %s25, 0
      %p129 = por %p127, %p128
      %p130 = scmp.ne.s32.totalorder %s122, %s124
      %p131 = scmp.eq.s32.totalorder %s30, 1
      %p132 = por %p130, %p131
      %p133 = scmp.ne.s32.totalorder %s124, %s125
      %p134 = scmp.eq.s32.totalorder %s30, 0
      %p135 = por %p133, %p134
      %p136 = scmp.ne.s32.totalorder %s124, %s125
      %p137 = scmp.eq.s32.totalorder %s31, 1
      %p138 = por %p136, %p137
      %p140 = scmp.ne.s32.totalorder %s125, %s139
      %p141 = scmp.eq.s32.totalorder %s31, 0
      %p142 = por %p140, %p141
      %s144 = sadd.s32 %s143, 1
      %p147 = scmp.eq.s32.totalorder %s25, 1
      %p148 = scmp.ne.s32.totalorder %s143, %s145
      %p149 = scmp.eq.s32.totalorder %s25, 0
      %p150 = por %p148, %p149
      %p151 = scmp.ne.s32.totalorder %s143, %s145
      %p152 = scmp.eq.s32.totalorder %s30, 1
      %p153 = por %p151, %p152
      %p154 = scmp.ne.s32.totalorder %s145, %s146
      %p155 = scmp.eq.s32.totalorder %s30, 0
      %p156 = por %p154, %p155
      %p157 = scmp.ne.s32.totalorder %s145, %s146
      %p158 = scmp.eq.s32.totalorder %s31, 1
      %p159 = por %p157, %p158
      %p161 = scmp.ne.s32.totalorder %s146, %s160
      %p162 = scmp.eq.s32.totalorder %s31, 0
      %p163 = por %p161, %p162
      %s165 = sadd.s32 %s164, 1
      %p168 = scmp.eq.s32.totalorder %s25, 1
      %p169 = scmp.ne.s32.totalorder %s164, %s166
      %p170 = scmp.eq.s32.totalorder %s25, 0
      %p171 = por %p169, %p170
      %p172 = scmp.ne.s32.totalorder %s164, %s166
      %p173 = scmp.eq.s32.totalorder %s30, 1
      %p174 = por %p172, %p173
      %p175 = scmp.ne.s32.totalorder %s166, %s167
      %p176 = scmp.eq.s32.totalorder %s30, 0
      %p177 = por %p175, %p176
      %p178 = scmp.ne.s32.totalorder %s166, %s167
      %p179 = scmp.eq.s32.totalorder %s31, 1
      %p180 = por %p178, %p179
      %p182 = scmp.ne.s32.totalorder %s167, %s181
      %p183 = scmp.eq.s32.totalorder %s31, 0
      %p184 = por %p182, %p183
      %s186 = sadd.s32 %s185, 1
      %p189 = scmp.eq.s32.totalorder %s25, 1
      %p190 = scmp.ne.s32.totalorder %s185, %s187
      %p191 = scmp.eq.s32.totalorder %s25, 0
      %p192 = por %p190, %p191
      %p193 = scmp.ne.s32.totalorder %s185, %s187
      %p194 = scmp.eq.s32.totalorder %s30, 1
      %p195 = por %p193, %p194
      %p196 = scmp.ne.s32.totalorder %s187, %s188
      %p197 = scmp.eq.s32.totalorder %s30, 0
      %p198 = por %p196, %p197
      %p199 = scmp.ne.s32.totalorder %s187, %s188
      %p200 = scmp.eq.s32.totalorder %s31, 1
      %p201 = por %p199, %p200
      %p203 = scmp.ne.s32.totalorder %s188, %s202
      %p204 = scmp.eq.s32.totalorder %s31, 0
      %p205 = por %p203, %p204
      %s207 = sadd.s32 %s206, 1
      %p210 = scmp.eq.s32.totalorder %s25, 1
      %p211 = scmp.ne.s32.totalorder %s206, %s208
      %p212 = scmp.eq.s32.totalorder %s25, 0
      %p213 = por %p211, %p212
      %p214 = scmp.ne.s32.totalorder %s206, %s208
      %p215 = scmp.eq.s32.totalorder %s30, 1
      %p216 = por %p214, %p215
      %p217 = scmp.ne.s32.totalorder %s208, %s209
      %p218 = scmp.eq.s32.totalorder %s30, 0
      %p219 = por %p217, %p218
      %p220 = scmp.ne.s32.totalorder %s208, %s209
      %p221 = scmp.eq.s32.totalorder %s31, 1
      %p222 = por %p220, %p221
      %p224 = scmp.ne.s32.totalorder %s209, %s223
      %p225 = scmp.eq.s32.totalorder %s31, 0
      %p226 = por %p224, %p225
      %s228 = sadd.s32 %s227, 1
      %p231 = scmp.eq.s32.totalorder %s25, 1
      %p232 = scmp.ne.s32.totalorder %s227, %s229
      %p233 = scmp.eq.s32.totalorder %s25, 0
      %p234 = por %p232, %p233
      %p235 = scmp.ne.s32.totalorder %s227, %s229
      %p236 = scmp.eq.s32.totalorder %s30, 1
      %p237 = por %p235, %p236
      %p238 = scmp.ne.s32.totalorder %s229, %s230
      %p239 = scmp.eq.s32.totalorder %s30, 0
      %p240 = por %p238, %p239
      %p241 = scmp.ne.s32.totalorder %s229, %s230
      %p242 = scmp.eq.s32.totalorder %s31, 1
      %p243 = por %p241, %p242
      %p245 = scmp.ne.s32.totalorder %s230, %s244
      %p246 = scmp.eq.s32.totalorder %s31, 0
      %p247 = por %p245, %p246
      %s249 = sadd.s32 %s248, 1
      %p252 = scmp.eq.s32.totalorder %s25, 1
      %p253 = scmp.ne.s32.totalorder %s248, %s250
      %p254 = scmp.eq.s32.totalorder %s25, 0
      %p255 = por %p253, %p254
      %p256 = scmp.ne.s32.totalorder %s248, %s250
      %p257 = scmp.eq.s32.totalorder %s30, 1
      %p258 = por %p256, %p257
      %p259 = scmp.ne.s32.totalorder %s250, %s251
      %p260 = scmp.eq.s32.totalorder %s30, 0
      %p261 = por %p259, %p260
      %p262 = scmp.ne.s32.totalorder %s250, %s251
      %p263 = scmp.eq.s32.totalorder %s31, 1
      %p264 = por %p262, %p263
      %p266 = scmp.ne.s32.totalorder %s251, %s265
      %p267 = scmp.eq.s32.totalorder %s31, 0
      %p268 = por %p266, %p267
      %s270 = sadd.s32 %s269, 1
      %p273 = scmp.eq.s32.totalorder %s25, 1
      %p274 = scmp.ne.s32.totalorder %s269, %s271
      %p275 = scmp.eq.s32.totalorder %s25, 0
      %p276 = por %p274, %p275
      %p277 = scmp.ne.s32.totalorder %s269, %s271
      %p278 = scmp.eq.s32.totalorder %s30, 1
      %p279 = por %p277, %p278
      %p280 = scmp.ne.s32.totalorder %s271, %s272
      %p281 = scmp.eq.s32.totalorder %s30, 0
      %p282 = por %p280, %p281
      %p283 = scmp.ne.s32.totalorder %s271, %s272
      %p284 = scmp.eq.s32.totalorder %s31, 1
      %p285 = por %p283, %p284
      %p287 = scmp.ne.s32.totalorder %s272, %s286
      %p288 = scmp.eq.s32.totalorder %s31, 0
      %p289 = por %p287, %p288
      %s291 = sadd.s32 %s290, 1
      %p294 = scmp.eq.s32.totalorder %s25, 1
      %p295 = scmp.ne.s32.totalorder %s290, %s292
      %p296 = scmp.eq.s32.totalorder %s25, 0
      %p297 = por %p295, %p296
      %p298 = scmp.ne.s32.totalorder %s290, %s292
      %p299 = scmp.eq.s32.totalorder %s30, 1
      %p300 = por %p298, %p299
      %p301 = scmp.ne.s32.totalorder %s292, %s293
      %p302 = scmp.eq.s32.totalorder %s30, 0
      %p303 = por %p301, %p302
      %p304 = scmp.ne.s32.totalorder %s292, %s293
      %p305 = scmp.eq.s32.totalorder %s31, 1
      %p306 = por %p304, %p305
      %p308 = scmp.ne.s32.totalorder %s293, %s307
      %p309 = scmp.eq.s32.totalorder %s31, 0
      %p310 = por %p308, %p309
      %s312 = sadd.s32 %s311, 1
      %p315 = scmp.eq.s32.totalorder %s25, 1
      %p316 = scmp.ne.s32.totalorder %s311, %s313
      %p317 = scmp.eq.s32.totalorder %s25, 0
      %p318 = por %p316, %p317
      %p319 = scmp.ne.s32.totalorder %s311, %s313
      %p320 = scmp.eq.s32.totalorder %s30, 1
      %p321 = por %p319, %p320
      %p322 = scmp.ne.s32.totalorder %s313, %s314
      %p323 = scmp.eq.s32.totalorder %s30, 0
      %p324 = por %p322, %p323
      %p325 = scmp.ne.s32.totalorder %s313, %s314
      %p326 = scmp.eq.s32.totalorder %s31, 1
      %p327 = por %p325, %p326
      %p329 = scmp.ne.s32.totalorder %s314, %s328
      %p330 = scmp.eq.s32.totalorder %s31, 0
      %p331 = por %p329, %p330
      %s333 = sadd.s32 %s332, 1
      %p336 = scmp.eq.s32.totalorder %s25, 1
      %p337 = scmp.ne.s32.totalorder %s332, %s334
      %p338 = scmp.eq.s32.totalorder %s25, 0
      %p339 = por %p337, %p338
      %p340 = scmp.ne.s32.totalorder %s332, %s334
      %p341 = scmp.eq.s32.totalorder %s30, 1
      %p342 = por %p340, %p341
      %p343 = scmp.ne.s32.totalorder %s334, %s335
      %p344 = scmp.eq.s32.totalorder %s30, 0
      %p345 = por %p343, %p344
      %p346 = scmp.ne.s32.totalorder %s334, %s335
      %p347 = scmp.eq.s32.totalorder %s31, 1
      %p348 = por %p346, %p347
      %p350 = scmp.ne.s32.totalorder %s335, %s349
      %p351 = scmp.eq.s32.totalorder %s31, 0
      %p352 = por %p350, %p351
      %s354 = sadd.s32 %s353, 1
      %p357 = scmp.eq.s32.totalorder %s25, 1
      %p358 = scmp.ne.s32.totalorder %s353, %s355
      %p359 = scmp.eq.s32.totalorder %s25, 0
      %p360 = por %p358, %p359
      %p361 = scmp.ne.s32.totalorder %s353, %s355
      %p362 = scmp.eq.s32.totalorder %s30, 1
      %p363 = por %p361, %p362
      %p364 = scmp.ne.s32.totalorder %s355, %s356
      %p365 = scmp.eq.s32.totalorder %s30, 0
      %p366 = por %p364, %p365
      %p367 = scmp.ne.s32.totalorder %s355, %s356
      %p368 = scmp.eq.s32.totalorder %s31, 1
      %p369 = por %p367, %p368
      %p371 = scmp.ne.s32.totalorder %s356, %s370
      %p372 = scmp.eq.s32.totalorder %s31, 0
      %p373 = por %p371, %p372
      %s374 = ssub.s32 %s25, %s32
      %p375 = scmp.eq.s32.totalorder %s374, 0
      %s377 = sadd.s32 %s376, 1
      %s378 = scalar_select %p375, %s376, %s377
      %p381 = pneg %p375
      %p382 = scmp.eq.s32.totalorder %s25, 1
      %p383 = por %p381, %p382
      %p384 = scmp.ne.s32.totalorder %s376, %s379
      %p385 = scmp.eq.s32.totalorder %s25, 0
      %p386 = por %p384, %p385
      %p387 = scmp.ne.s32.totalorder %s376, %s379
      %p388 = scmp.eq.s32.totalorder %s30, 1
      %p389 = por %p387, %p388
      %p390 = scmp.ne.s32.totalorder %s379, %s380
      %p391 = scmp.eq.s32.totalorder %s30, 0
      %p392 = por %p390, %p391
      %p393 = scmp.ne.s32.totalorder %s379, %s380
      %p394 = scmp.eq.s32.totalorder %s31, 1
      %p395 = por %p393, %p394
      %p397 = scmp.ne.s32.totalorder %s380, %s396
      %p398 = scmp.eq.s32.totalorder %s31, 0
      %p399 = por %p397, %p398
      %p400 = scmp.le.s32.totalorder 1, %s25
      %p401 = scmp.lt.s32.totalorder %s25, 3
      %p402 = pnand %p400, %p401
      %p403 = pneg %p402
      // Predicated region
      $region9: #{tpu_custom_call.1} parent=5 // pred_check
        _
      $region10: #{tpu_custom_call.1} parent=5 // pred_check_branch
        %405 = sbr.rel (%p402) target = $region12
      $region11: #{tpu_custom_call.1} parent=5 // pred_region
        %s406 = ssub.s32 %s25, 1
        // Predicated region
        $region13: #{tpu_custom_call.1} parent=11 // pred_check
          %p407 = pneg %p72
        $region14: #{tpu_custom_call.1} parent=11 // pred_check_branch
          %409 = sbr.rel (%p407) target = $region16
        $region15: #{tpu_custom_call.1} parent=11 // pred_region
          _
        $region16: #{tpu_custom_call.1} parent=11 // pred_fallthru
          _
        // Predicated region
        $region17: #{tpu_custom_call.1} parent=11 // pred_check
          %p410 = pneg %p93
        $region18: #{tpu_custom_call.1} parent=11 // pred_check_branch
          %412 = sbr.rel (%p410) target = $region20
        $region19: #{tpu_custom_call.1} parent=11 // pred_region
          _
        $region20: #{tpu_custom_call.1} parent=11 // pred_fallthru
          _
        // Predicated region
        $region21: #{tpu_custom_call.1} parent=11 // pred_check
          %p413 = pneg %p114
        $region22: #{tpu_custom_call.1} parent=11 // pred_check_branch
          %415 = sbr.rel (%p413) target = $region24
        $region23: #{tpu_custom_call.1} parent=11 // pred_region
          _
        $region24: #{tpu_custom_call.1} parent=11 // pred_fallthru
          _
        // Predicated region
        $region25: #{tpu_custom_call.1} parent=11 // pred_check
          %p416 = pneg %p135
        $region26: #{tpu_custom_call.1} parent=11 // pred_check_branch
          %418 = sbr.rel (%p416) target = $region28
        $region27: #{tpu_custom_call.1} parent=11 // pred_region
          _
        $region28: #{tpu_custom_call.1} parent=11 // pred_fallthru
          _
        // Predicated region
        $region29: #{tpu_custom_call.1} parent=11 // pred_check
          %p419 = pneg %p156
        $region30: #{tpu_custom_call.1} parent=11 // pred_check_branch
          %421 = sbr.rel (%p419) target = $region32
        $region31: #{tpu_custom_call.1} parent=11 // pred_region
          _
        $region32: #{tpu_custom_call.1} parent=11 // pred_fallthru
          _
        // Predicated region
        $region33: #{tpu_custom_call.1} parent=11 // pred_check
          %p422 = pneg %p177
        $region34: #{tpu_custom_call.1} parent=11 // pred_check_branch
          %424 = sbr.rel (%p422) target = $region36
        $region35: #{tpu_custom_call.1} parent=11 // pred_region
          _
        $region36: #{tpu_custom_call.1} parent=11 // pred_fallthru
          _
        // Predicated region
        $region37: #{tpu_custom_call.1} parent=11 // pred_check
          %p425 = pneg %p198
        $region38: #{tpu_custom_call.1} parent=11 // pred_check_branch
          %427 = sbr.rel (%p425) target = $region40
        $region39: #{tpu_custom_call.1} parent=11 // pred_region
          _
        $region40: #{tpu_custom_call.1} parent=11 // pred_fallthru
          _
        // Predicated region
        $region41: #{tpu_custom_call.1} parent=11 // pred_check
          %p428 = pneg %p219
        $region42: #{tpu_custom_call.1} parent=11 // pred_check_branch
          %430 = sbr.rel (%p428) target = $region44
        $region43: #{tpu_custom_call.1} parent=11 // pred_region
          _
        $region44: #{tpu_custom_call.1} parent=11 // pred_fallthru
          _
        // Predicated region
        $region45: #{tpu_custom_call.1} parent=11 // pred_check
          %p431 = pneg %p240
        $region46: #{tpu_custom_call.1} parent=11 // pred_check_branch
          %433 = sbr.rel (%p431) target = $region48
        $region47: #{tpu_custom_call.1} parent=11 // pred_region
          _
        $region48: #{tpu_custom_call.1} parent=11 // pred_fallthru
          _
        // Predicated region
        $region49: #{tpu_custom_call.1} parent=11 // pred_check
          %p434 = pneg %p261
        $region50: #{tpu_custom_call.1} parent=11 // pred_check_branch
          %436 = sbr.rel (%p434) target = $region52
        $region51: #{tpu_custom_call.1} parent=11 // pred_region
          _
        $region52: #{tpu_custom_call.1} parent=11 // pred_fallthru
          _
        // Predicated region
        $region53: #{tpu_custom_call.1} parent=11 // pred_check
          %p437 = pneg %p282
        $region54: #{tpu_custom_call.1} parent=11 // pred_check_branch
          %439 = sbr.rel (%p437) target = $region56
        $region55: #{tpu_custom_call.1} parent=11 // pred_region
          _
        $region56: #{tpu_custom_call.1} parent=11 // pred_fallthru
          _
        // Predicated region
        $region57: #{tpu_custom_call.1} parent=11 // pred_check
          %p440 = pneg %p303
        $region58: #{tpu_custom_call.1} parent=11 // pred_check_branch
          %442 = sbr.rel (%p440) target = $region60
        $region59: #{tpu_custom_call.1} parent=11 // pred_region
          _
        $region60: #{tpu_custom_call.1} parent=11 // pred_fallthru
          _
        // Predicated region
        $region61: #{tpu_custom_call.1} parent=11 // pred_check
          %p443 = pneg %p324
        $region62: #{tpu_custom_call.1} parent=11 // pred_check_branch
          %445 = sbr.rel (%p443) target = $region64
        $region63: #{tpu_custom_call.1} parent=11 // pred_region
          _
        $region64: #{tpu_custom_call.1} parent=11 // pred_fallthru
          _
        // Predicated region
        $region65: #{tpu_custom_call.1} parent=11 // pred_check
          %p446 = pneg %p345
        $region66: #{tpu_custom_call.1} parent=11 // pred_check_branch
          %448 = sbr.rel (%p446) target = $region68
        $region67: #{tpu_custom_call.1} parent=11 // pred_region
          _
        $region68: #{tpu_custom_call.1} parent=11 // pred_fallthru
          _
        // Predicated region
        $region69: #{tpu_custom_call.1} parent=11 // pred_check
          %p449 = pneg %p366
        $region70: #{tpu_custom_call.1} parent=11 // pred_check_branch
          %451 = sbr.rel (%p449) target = $region72
        $region71: #{tpu_custom_call.1} parent=11 // pred_region
          _
        $region72: #{tpu_custom_call.1} parent=11 // pred_fallthru
          _
      $region12: #{tpu_custom_call.1} parent=5 // pred_fallthru
        _
      %p452 = scmp.lt.s32.totalorder %s25, 2
      // Predicated region
      $region73: #{tpu_custom_call.1} parent=5 // pred_check
        %p453 = pneg %p452
      $region74: #{tpu_custom_call.1} parent=5 // pred_check_branch
        %455 = sbr.rel (%p453) target = $region76
      $region75: #{tpu_custom_call.1} parent=5 // pred_region
        // Predicated region
        $region77: #{tpu_custom_call.1} parent=75 // pred_check
          %p456 = pneg %p45
        $region78: #{tpu_custom_call.1} parent=75 // pred_check_branch
          %458 = sbr.rel (%p456) target = $region80
        $region79: #{tpu_custom_call.1} parent=75 // pred_region
          %p459 = scmp.lt.s32.totalorder %s25, 1
          %s460 = scalar_select %p459, %s25, 1
          %s461 = smul.addr %s460, 2
          %s462 = smul.addr %s461, 8
          %s463 = scalar_lea.vmem %s0, %s462
        $region80: #{tpu_custom_call.1} parent=75 // pred_fallthru
          _
      $region76: #{tpu_custom_call.1} parent=5 // pred_fallthru
        _
      %p464 = scmp.le.s32.totalorder 1, %s25
      %p465 = scmp.lt.s32.totalorder %s25, 3
      %p466 = pnand %p464, %p465
      %p467 = pneg %p466
      // Predicated region
      $region81: #{tpu_custom_call.1} parent=5 // pred_check
        _
      $region82: #{tpu_custom_call.1} parent=5 // pred_check_branch
        %469 = sbr.rel (%p466) target = $region84
      $region83: #{tpu_custom_call.1} parent=5 // pred_region
        %s470 = ssub.s32 %s25, 1
        %p471 = scmp.lt.s32.totalorder %s30, 1
        %s472 = scalar_select %p471, %s30, 1
        %s473 = smul.addr %s472, 2
        %s474 = smul.addr %s473, 8
        %s475 = scalar_lea.vmem %s0, %s474
        %p476 = pneg %p51
        %p477 = pneg %p48
        %p478 = pneg %p72
        %p479 = pneg %p69
        %p480 = pneg %p93
        %p481 = pneg %p90
        %p482 = pneg %p114
        %p483 = pneg %p111
        %p484 = pneg %p135
        %p485 = pneg %p132
        %p486 = pneg %p156
        %p487 = pneg %p153
        %p488 = pneg %p177
        %p489 = pneg %p174
        %p490 = pneg %p198
        %p491 = pneg %p195
        %p492 = pneg %p219
        %p493 = pneg %p216
        %p494 = pneg %p240
        %p495 = pneg %p237
        %p496 = pneg %p261
        %p497 = pneg %p258
        %p498 = pneg %p282
        %p499 = pneg %p279
        %p500 = pneg %p303
        %p501 = pneg %p300
        %p502 = pneg %p324
        %p503 = pneg %p321
        %p504 = pneg %p345
        %p505 = pneg %p342
        %p506 = pneg %p366
        %p507 = pneg %p363
        %p508 = pneg %p392
        %p509 = pneg %p389
        %s510 = sand.u32 %s379, 1
        %s511 = scalar_lea.sflag [#allocation3], %s510
        %s512 = sand.u32 %s379, 1
        %s513 = smul.addr %s512, 16
        %s514 = scalar_lea.vmem [#allocation2], %s513
        %p515 = scmp.lt.s32.totalorder %s30, 1
        %s516 = scalar_select %p515, %s30, 1
        %s517 = smul.addr %s516, 2
        %s518 = smul.addr %s517, 8
        %s519 = scalar_lea.vmem %s0, %s518
        %v521 = vld [vmem:[%s519] sm:$0xff]
        %v522 = vld [vmem:[%s519 + $0x8] sm:$0xff]
        %v523 = vlaneseq
        %v524 = vshrl.u32 %v523, 7
        %v525 = vadd.s32 %v524, 8
        %v526 = vlaneseq
        %v527 = vand.u32 %v526, 127
        %vm528 = vcmp.le.s32.totalorder %v527, %v524
        %vm529 = vcmp.le.s32.totalorder %v527, %v525
        %v530 = vsel %vm528, 0.0, -1e+30
        %v531 = vsel %vm529, 0.0, -1e+30
        %v532 = vld [vmem:[%s4] sm:$0x1]
        %v533 = vld [vmem:[%s5] sm:$0x1]
        %vm534 = vcmask 261120
        %v535 = vsel %vm534, %v521, 0.0
        %536 = vadd.xlane.f32.xlu0 %v535
        %v537 = vpop.xlane.xlu0 %536
        %v538 = vsel %vm534, %v522, 0.0
        %539 = vadd.xlane.f32.xlu0 %v538
        %v540 = vpop.xlane.xlu0 %539
        %v541 = vrcp.pop 32.0
        %v542 = vmul.f32 %v537, %v541
        %v543 = vmul.f32 %v540, %v541
        %v544 = vsub.f32 %v521, %v542
        %v545 = vsub.f32 %v522, %v543
        %v546 = vmul.f32 %v544, %v544
        %v547 = vmul.f32 %v545, %v545
        %v548 = vsel %vm534, %v546, 0.0
        %549 = vadd.xlane.f32.xlu0 %v548
        %v550 = vpop.xlane.xlu0 %549
        %v551 = vsel %vm534, %v547, 0.0
        %552 = vadd.xlane.f32.xlu0 %v551
        %v553 = vpop.xlane.xlu0 %552
        %v554 = vmul.f32 %v550, %v541
        %v555 = vmul.f32 %v553, %v541
        %v556 = vadd.f32 %v554, 1e-05
        %v557 = vadd.f32 %v555, 1e-05
        %v558 = vrsqrt.pop %v556
        %v559 = vrsqrt.pop %v557
        %v560 = vmul.f32 %v544, %v558
        %v561 = vmul.f32 %v545, %v559
        %v563 = vlaneseq
        %v564 = vshrl.u32 %v563, 7
        %v565 = vsub.s32 0, %v564
        %v566 = vrot.slane %v532, %v565
        %v568 = vmul.f32 %v560, %v566
        %v569 = vmul.f32 %v561, %v566
        %v571 = vlaneseq
        %v572 = vshrl.u32 %v571, 7
        %v573 = vsub.s32 0, %v572
        %v574 = vrot.slane %v533, %v573
        %v576 = vadd.f32 %v568, %v574
        %v577 = vadd.f32 %v569, %v574
        %v578 = vpack.c.bf16 %v577, %v576
        %v579 = vld [vmem:[%s1] sm:$0xf]
        %v580 = vld [vmem:[%s1 + $0x4] sm:$0xf]
        %v581 = vld [vmem:[%s1 + $0x8] sm:$0xf]
        %v582 = vld [vmem:[%s1 + $0xc] sm:$0xf]
        %v587 = vunpack.c.l.b16 %v579
        %v588 = vunpack.c.l.b16 %v580
        %v589 = vunpack.c.l.b16 %v581
        %v590 = vunpack.c.l.b16 %v582
        %v591 = vpack.c.b16 %v588, %v587
        %v592 = vpack.c.b16 %v590, %v589
        %v596 = vsel %vm534, %v578, 0
        %598 = vmatprep.subr.bf16.mxu0 0
        %599 = vmatpush1.bf16.msra.mxu0 0
        %600 = vmatprep.subr.bf16.mxu0 0
        %601 = vmatpush1.bf16.msra.mxu0 0
        %602 = vmatprep.subr.bf16.mxu0 0
        %603 = vmatpush1.bf16.msra.mxu0 0
        %604 = vmatprep.subr.bf16.mxu0 0
        %605 = vmatpush1.bf16.msra.mxu0 0
        %606 = vmatprep.subr.bf16.mxu0 0
        %607 = vmatpush1.bf16.msra.mxu0 0
        %608 = vmatprep.subr.bf16.mxu0 0
        %609 = vmatpush1.bf16.msra.mxu0 0
        %610 = vmatprep.subr.bf16.mxu0 0
        %611 = vmatpush1.bf16.msra.mxu0 %v592
        %612 = vmatprep.subr.bf16.mxu0 0
        %613 = vmatpush1.bf16.msra.mxu0 %v591
        %614 = vmatprep.subr.bf16.mxu0 0
        %615 = vmatpush2.bf16.msra.mxu0 0
        %616 = vmatprep.subr.bf16.mxu0 0
        %617 = vmatpush2.bf16.msra.mxu0 0
        %618 = vmatprep.subr.bf16.mxu0 0
        %619 = vmatpush2.bf16.msra.mxu0 0
        %620 = vmatprep.subr.bf16.mxu0 0
        %621 = vmatpush2.bf16.msra.mxu0 0
        %622 = vmatprep.subr.bf16.mxu0 0
        %623 = vmatpush2.bf16.msra.mxu0 0
        %624 = vmatprep.subr.bf16.mxu0 0
        %625 = vmatpush2.bf16.msra.mxu0 0
        %626 = vmatprep.subr.bf16.mxu0 0
        %627 = vmatpush2.bf16.msra.mxu0 0
        %628 = vmatprep.subr.bf16.mxu0 0
        %629 = vmatpush2.bf16.msra.mxu0 0
        %630 = vmatprep.mubr.bf16.mxu0 0
        %631 = vmatmul.mubr.bf16.gmra.mxu0 %v596
        %v632 = vpop.f32.mrf.mxu0
        %v633 = vadd.f32 0.0, %v632
        %v634 = vpop.f32.mrf.mxu0
        %v635 = vpop.f32.mrf.mxu0
        %v636 = vadd.f32 0.0, %v635
        %v637 = vpop.f32.mrf.mxu0
        %638 = vdwg.mxu0
        %641 = vrot.lane.b32.xlu0 %v633, 120
        %v642 = vpop.permute.xlu0 %641
        %643 = vrot.lane.b32.xlu0 %v636, 120
        %v644 = vpop.permute.xlu0 %643
        %647 = vrot.lane.b32.xlu0 %v633, 112
        %v648 = vpop.permute.xlu0 %647
        %649 = vrot.lane.b32.xlu0 %v636, 112
        %v650 = vpop.permute.xlu0 %649
        %653 = vrot.lane.b32.xlu0 %v633, 104
        %v654 = vpop.permute.xlu0 %653
        %655 = vrot.lane.b32.xlu0 %v636, 104
        %v656 = vpop.permute.xlu0 %655
        %v659 = vpack.c.bf16 %v636, %v633
        %v660 = vpack.c.bf16 %v644, %v642
        %v661 = vpack.c.bf16 %v650, %v648
        %v662 = vpack.c.bf16 %v656, %v654
        %664 = vrot.lane.b32.xlu0 %v659, 96
        %v665 = vpop.permute.xlu0 %664
        %vm666 = vcmask 64512
        %v668 = vsel %vm666, %v659, 0
        %v671 = vsel %vm666, %v665, 0
        %673 = vmatprep.subr.bf16.mxu0 0
        %674 = vmatpush1.bf16.xpose.msra.mxu0 0
        %675 = vmatprep.subr.bf16.mxu0 0
        %676 = vmatpush1.bf16.xpose.msra.mxu0 0
        %677 = vmatprep.subr.bf16.mxu0 0
        %678 = vmatpush1.bf16.xpose.msra.mxu0 0
        %679 = vmatprep.subr.bf16.mxu0 0
        %680 = vmatpush1.bf16.xpose.msra.mxu0 0
        %681 = vmatprep.subr.bf16.mxu0 0
        %682 = vmatpush1.bf16.xpose.msra.mxu0 0
        %683 = vmatprep.subr.bf16.mxu0 0
        %684 = vmatpush1.bf16.xpose.msra.mxu0 0
        %685 = vmatprep.subr.bf16.mxu0 0
        %686 = vmatpush1.bf16.xpose.msra.mxu0 0
        %687 = vmatprep.subr.bf16.mxu0 0
        %688 = vmatpush1.bf16.xpose.msra.mxu0 %v671
        %689 = vmatprep.subr.bf16.mxu0 0
        %690 = vmatpush2.bf16.xpose.msra.mxu0 0
        %691 = vmatprep.subr.bf16.mxu0 0
        %692 = vmatpush2.bf16.xpose.msra.mxu0 0
        %693 = vmatprep.subr.bf16.mxu0 0
        %694 = vmatpush2.bf16.xpose.msra.mxu0 0
        %695 = vmatprep.subr.bf16.mxu0 0
        %696 = vmatpush2.bf16.xpose.msra.mxu0 0
        %697 = vmatprep.subr.bf16.mxu0 0
        %698 = vmatpush2.bf16.xpose.msra.mxu0 0
        %699 = vmatprep.subr.bf16.mxu0 0
        %700 = vmatpush2.bf16.xpose.msra.mxu0 0
        %701 = vmatprep.subr.bf16.mxu0 0
        %702 = vmatpush2.bf16.xpose.msra.mxu0 0
        %703 = vmatprep.subr.bf16.mxu0 0
        %704 = vmatpush2.bf16.xpose.msra.mxu0 0
        %705 = vmatprep.mubr.bf16.mxu0 0
        %706 = vmatmul.mubr.bf16.gmra.mxu0 %v668
        %v707 = vpop.f32.mrf.mxu0
        %v708 = vadd.f32 0.0, %v707
        %v709 = vpop.f32.mrf.mxu0
        %v710 = vpop.f32.mrf.mxu0
        %v711 = vadd.f32 0.0, %v710
        %v712 = vpop.f32.mrf.mxu0
        %713 = vdwg.mxu0
        %715 = vrot.lane.b32.xlu0 %v660, 96
        %v716 = vpop.permute.xlu0 %715
        %v718 = vsel %vm666, %v660, 0
        %v721 = vsel %vm666, %v716, 0
        %723 = vmatprep.subr.bf16.mxu0 0
        %724 = vmatpush1.bf16.xpose.msra.mxu0 0
        %725 = vmatprep.subr.bf16.mxu0 0
        %726 = vmatpush1.bf16.xpose.msra.mxu0 0
        %727 = vmatprep.subr.bf16.mxu0 0
        %728 = vmatpush1.bf16.xpose.msra.mxu0 0
        %729 = vmatprep.subr.bf16.mxu0 0
        %730 = vmatpush1.bf16.xpose.msra.mxu0 0
        %731 = vmatprep.subr.bf16.mxu0 0
        %732 = vmatpush1.bf16.xpose.msra.mxu0 0
        %733 = vmatprep.subr.bf16.mxu0 0
        %734 = vmatpush1.bf16.xpose.msra.mxu0 0
        %735 = vmatprep.subr.bf16.mxu0 0
        %736 = vmatpush1.bf16.xpose.msra.mxu0 0
        %737 = vmatprep.subr.bf16.mxu0 0
        %738 = vmatpush1.bf16.xpose.msra.mxu0 %v721
        %739 = vmatprep.subr.bf16.mxu0 0
        %740 = vmatpush2.bf16.xpose.msra.mxu0 0
        %741 = vmatprep.subr.bf16.mxu0 0
        %742 = vmatpush2.bf16.xpose.msra.mxu0 0
        %743 = vmatprep.subr.bf16.mxu0 0
        %744 = vmatpush2.bf16.xpose.msra.mxu0 0
        %745 = vmatprep.subr.bf16.mxu0 0
        %746 = vmatpush2.bf16.xpose.msra.mxu0 0
        %747 = vmatprep.subr.bf16.mxu0 0
        %748 = vmatpush2.bf16.xpose.msra.mxu0 0
        %749 = vmatprep.subr.bf16.mxu0 0
        %750 = vmatpush2.bf16.xpose.msra.mxu0 0
        %751 = vmatprep.subr.bf16.mxu0 0
        %752 = vmatpush2.bf16.xpose.msra.mxu0 0
        %753 = vmatprep.subr.bf16.mxu0 0
        %754 = vmatpush2.bf16.xpose.msra.mxu0 0
        %755 = vmatprep.mubr.bf16.mxu0 0
        %756 = vmatmul.mubr.bf16.gmra.mxu0 %v718
        %v757 = vpop.f32.mrf.mxu0
        %v758 = vadd.f32 0.0, %v757
        %v759 = vpop.f32.mrf.mxu0
        %v760 = vpop.f32.mrf.mxu0
        %v761 = vadd.f32 0.0, %v760
        %v762 = vpop.f32.mrf.mxu0
        %763 = vdwg.mxu0
        %765 = vrot.lane.b32.xlu0 %v661, 96
        %v766 = vpop.permute.xlu0 %765
        %v768 = vsel %vm666, %v661, 0
        %v771 = vsel %vm666, %v766, 0
        %773 = vmatprep.subr.bf16.mxu0 0
        %774 = vmatpush1.bf16.xpose.msra.mxu0 0
        %775 = vmatprep.subr.bf16.mxu0 0
        %776 = vmatpush1.bf16.xpose.msra.mxu0 0
        %777 = vmatprep.subr.bf16.mxu0 0
        %778 = vmatpush1.bf16.xpose.msra.mxu0 0
        %779 = vmatprep.subr.bf16.mxu0 0
        %780 = vmatpush1.bf16.xpose.msra.mxu0 0
        %781 = vmatprep.subr.bf16.mxu0 0
        %782 = vmatpush1.bf16.xpose.msra.mxu0 0
        %783 = vmatprep.subr.bf16.mxu0 0
        %784 = vmatpush1.bf16.xpose.msra.mxu0 0
        %785 = vmatprep.subr.bf16.mxu0 0
        %786 = vmatpush1.bf16.xpose.msra.mxu0 0
        %787 = vmatprep.subr.bf16.mxu0 0
        %788 = vmatpush1.bf16.xpose.msra.mxu0 %v771
        %789 = vmatprep.subr.bf16.mxu0 0
        %790 = vmatpush2.bf16.xpose.msra.mxu0 0
        %791 = vmatprep.subr.bf16.mxu0 0
        %792 = vmatpush2.bf16.xpose.msra.mxu0 0
        %793 = vmatprep.subr.bf16.mxu0 0
        %794 = vmatpush2.bf16.xpose.msra.mxu0 0
        %795 = vmatprep.subr.bf16.mxu0 0
        %796 = vmatpush2.bf16.xpose.msra.mxu0 0
        %797 = vmatprep.subr.bf16.mxu0 0
        %798 = vmatpush2.bf16.xpose.msra.mxu0 0
        %799 = vmatprep.subr.bf16.mxu0 0
        %800 = vmatpush2.bf16.xpose.msra.mxu0 0
        %801 = vmatprep.subr.bf16.mxu0 0
        %802 = vmatpush2.bf16.xpose.msra.mxu0 0
        %803 = vmatprep.subr.bf16.mxu0 0
        %804 = vmatpush2.bf16.xpose.msra.mxu0 0
        %805 = vmatprep.mubr.bf16.mxu0 0
        %806 = vmatmul.mubr.bf16.gmra.mxu0 %v768
        %v807 = vpop.f32.mrf.mxu0
        %v808 = vadd.f32 0.0, %v807
        %v809 = vpop.f32.mrf.mxu0
        %v810 = vpop.f32.mrf.mxu0
        %v811 = vadd.f32 0.0, %v810
        %v812 = vpop.f32.mrf.mxu0
        %813 = vdwg.mxu0
        %815 = vrot.lane.b32.xlu0 %v662, 96
        %v816 = vpop.permute.xlu0 %815
        %v818 = vsel %vm666, %v662, 0
        %v821 = vsel %vm666, %v816, 0
        %823 = vmatprep.subr.bf16.mxu0 0
        %824 = vmatpush1.bf16.xpose.msra.mxu0 0
        %825 = vmatprep.subr.bf16.mxu0 0
        %826 = vmatpush1.bf16.xpose.msra.mxu0 0
        %827 = vmatprep.subr.bf16.mxu0 0
        %828 = vmatpush1.bf16.xpose.msra.mxu0 0
        %829 = vmatprep.subr.bf16.mxu0 0
        %830 = vmatpush1.bf16.xpose.msra.mxu0 0
        %831 = vmatprep.subr.bf16.mxu0 0
        %832 = vmatpush1.bf16.xpose.msra.mxu0 0
        %833 = vmatprep.subr.bf16.mxu0 0
        %834 = vmatpush1.bf16.xpose.msra.mxu0 0
        %835 = vmatprep.subr.bf16.mxu0 0
        %836 = vmatpush1.bf16.xpose.msra.mxu0 0
        %837 = vmatprep.subr.bf16.mxu0 0
        %838 = vmatpush1.bf16.xpose.msra.mxu0 %v821
        %839 = vmatprep.subr.bf16.mxu0 0
        %840 = vmatpush2.bf16.xpose.msra.mxu0 0
        %841 = vmatprep.subr.bf16.mxu0 0
        %842 = vmatpush2.bf16.xpose.msra.mxu0 0
        %843 = vmatprep.subr.bf16.mxu0 0
        %844 = vmatpush2.bf16.xpose.msra.mxu0 0
        %845 = vmatprep.subr.bf16.mxu0 0
        %846 = vmatpush2.bf16.xpose.msra.mxu0 0
        %847 = vmatprep.subr.bf16.mxu0 0
        %848 = vmatpush2.bf16.xpose.msra.mxu0 0
        %849 = vmatprep.subr.bf16.mxu0 0
        %850 = vmatpush2.bf16.xpose.msra.mxu0 0
        %851 = vmatprep.subr.bf16.mxu0 0
        %852 = vmatpush2.bf16.xpose.msra.mxu0 0
        %853 = vmatprep.subr.bf16.mxu0 0
        %854 = vmatpush2.bf16.xpose.msra.mxu0 0
        %855 = vmatprep.mubr.bf16.mxu0 0
        %856 = vmatmul.mubr.bf16.gmra.mxu0 %v818
        %v857 = vpop.f32.mrf.mxu0
        %v858 = vadd.f32 0.0, %v857
        %v859 = vpop.f32.mrf.mxu0
        %v860 = vpop.f32.mrf.mxu0
        %v861 = vadd.f32 0.0, %v860
        %v862 = vpop.f32.mrf.mxu0
        %863 = vdwg.mxu0
        %v864 = vmul.f32 %v708, 0.35355338
        %v865 = vmul.f32 %v711, 0.35355338
        %v866 = vmul.f32 %v758, 0.35355338
        %v867 = vmul.f32 %v761, 0.35355338
        %v868 = vmul.f32 %v808, 0.35355338
        %v869 = vmul.f32 %v811, 0.35355338
        %v870 = vmul.f32 %v858, 0.35355338
        %v871 = vmul.f32 %v861, 0.35355338
        %v872 = vadd.f32 %v864, %v530
        %v873 = vadd.f32 %v865, %v531
        %v874 = vadd.f32 %v866, %v530
        %v875 = vadd.f32 %v867, %v531
        %v876 = vadd.f32 %v868, %v530
        %v877 = vadd.f32 %v869, %v531
        %v878 = vadd.f32 %v870, %v530
        %v879 = vadd.f32 %v871, %v531
        %vm880 = vcmask 130048
        %v881 = vsel %vm880, %v872, -inf
        %882 = vmax.xlane.f32.xlu0 %v881
        %v883 = vpop.xlane.xlu0 %882
        %v884 = vsel %vm880, %v873, -inf
        %885 = vmax.xlane.f32.xlu0 %v884
        %v886 = vpop.xlane.xlu0 %885
        %v887 = vsel %vm880, %v874, -inf
        %888 = vmax.xlane.f32.xlu0 %v887
        %v889 = vpop.xlane.xlu0 %888
        %v890 = vsel %vm880, %v875, -inf
        %891 = vmax.xlane.f32.xlu0 %v890
        %v892 = vpop.xlane.xlu0 %891
        %v893 = vsel %vm880, %v876, -inf
        %894 = vmax.xlane.f32.xlu0 %v893
        %v895 = vpop.xlane.xlu0 %894
        %v896 = vsel %vm880, %v877, -inf
        %897 = vmax.xlane.f32.xlu0 %v896
        %v898 = vpop.xlane.xlu0 %897
        %v899 = vsel %vm880, %v878, -inf
        %900 = vmax.xlane.f32.xlu0 %v899
        %v901 = vpop.xlane.xlu0 %900
        %v902 = vsel %vm880, %v879, -inf
        %903 = vmax.xlane.f32.xlu0 %v902
        %v904 = vpop.xlane.xlu0 %903
        %v905 = vsub.f32 %v872, %v883
        %v906 = vsub.f32 %v873, %v886
        %v907 = vsub.f32 %v874, %v889
        %v908 = vsub.f32 %v875, %v892
        %v909 = vsub.f32 %v876, %v895
        %v910 = vsub.f32 %v877, %v898
        %v911 = vsub.f32 %v878, %v901
        %v912 = vsub.f32 %v879, %v904
        %v913 = vmul.f32 %v905, 1.442695
        %v914 = vpow.pop %v913
        %v915 = vmul.f32 %v906, 1.442695
        %v916 = vpow.pop %v915
        %v917 = vmul.f32 %v907, 1.442695
        %v918 = vpow.pop %v917
        %v919 = vmul.f32 %v908, 1.442695
        %v920 = vpow.pop %v919
        %v921 = vmul.f32 %v909, 1.442695
        %v922 = vpow.pop %v921
        %v923 = vmul.f32 %v910, 1.442695
        %v924 = vpow.pop %v923
        %v925 = vmul.f32 %v911, 1.442695
        %v926 = vpow.pop %v925
        %v927 = vmul.f32 %v912, 1.442695
        %v928 = vpow.pop %v927
        %v929 = vsel %vm880, %v914, 0.0
        %930 = vadd.xlane.f32.xlu0 %v929
        %v931 = vpop.xlane.xlu0 %930
        %v932 = vsel %vm880, %v916, 0.0
        %933 = vadd.xlane.f32.xlu0 %v932
        %v934 = vpop.xlane.xlu0 %933
        %v935 = vsel %vm880, %v918, 0.0
        %936 = vadd.xlane.f32.xlu0 %v935
        %v937 = vpop.xlane.xlu0 %936
        %v938 = vsel %vm880, %v920, 0.0
        %939 = vadd.xlane.f32.xlu0 %v938
        %v940 = vpop.xlane.xlu0 %939
        %v941 = vsel %vm880, %v922, 0.0
        %942 = vadd.xlane.f32.xlu0 %v941
        %v943 = vpop.xlane.xlu0 %942
        %v944 = vsel %vm880, %v924, 0.0
        %945 = vadd.xlane.f32.xlu0 %v944
        %v946 = vpop.xlane.xlu0 %945
        %v947 = vsel %vm880, %v926, 0.0
        %948 = vadd.xlane.f32.xlu0 %v947
        %v949 = vpop.xlane.xlu0 %948
        %v950 = vsel %vm880, %v928, 0.0
        %951 = vadd.xlane.f32.xlu0 %v950
        %v952 = vpop.xlane.xlu0 %951
        %v953 = vrcp.pop %v931
        %v954 = vrcp.pop %v934
        %v955 = vrcp.pop %v937
        %v956 = vrcp.pop %v940
        %v957 = vrcp.pop %v943
        %v958 = vrcp.pop %v946
        %v959 = vrcp.pop %v949
        %v960 = vrcp.pop %v952
        %v961 = vmul.f32 %v914, %v953
        %v962 = vmul.f32 %v916, %v954
        %v963 = vmul.f32 %v918, %v955
        %v964 = vmul.f32 %v920, %v956
        %v965 = vmul.f32 %v922, %v957
        %v966 = vmul.f32 %v924, %v958
        %v967 = vmul.f32 %v926, %v959
        %v968 = vmul.f32 %v928, %v960
        %v969 = vpack.c.bf16 %v962, %v961
        %v970 = vpack.c.bf16 %v964, %v963
        %v971 = vpack.c.bf16 %v966, %v965
        %v972 = vpack.c.bf16 %v968, %v967
        %973 = vrot.lane.b32.xlu0 %v659, 64
        %v974 = vpop.permute.xlu0 %973
        %v977 = vsel %vm880, %v969, 0
        %979 = vmatprep.subr.bf16.mxu0 0
        %980 = vmatpush1.bf16.msra.mxu0 0
        %981 = vmatprep.subr.bf16.mxu0 0
        %982 = vmatpush1.bf16.msra.mxu0 0
        %983 = vmatprep.subr.bf16.mxu0 0
        %984 = vmatpush1.bf16.msra.mxu0 0
        %985 = vmatprep.subr.bf16.mxu0 0
        %986 = vmatpush1.bf16.msra.mxu0 0
        %987 = vmatprep.subr.bf16.mxu0 0
        %988 = vmatpush1.bf16.msra.mxu0 0
        %989 = vmatprep.subr.bf16.mxu0 0
        %990 = vmatpush1.bf16.msra.mxu0 0
        %991 = vmatprep.subr.bf16.mxu0 0
        %992 = vmatpush1.bf16.msra.mxu0 0
        %993 = vmatprep.subr.bf16.mxu0 0
        %994 = vmatpush1.bf16.msra.mxu0 %v974
        %995 = vmatprep.subr.bf16.mxu0 0
        %996 = vmatpush2.bf16.msra.mxu0 0
        %997 = vmatprep.subr.bf16.mxu0 0
        %998 = vmatpush2.bf16.msra.mxu0 0
        %999 = vmatprep.subr.bf16.mxu0 0
        %1000 = vmatpush2.bf16.msra.mxu0 0
        %1001 = vmatprep.subr.bf16.mxu0 0
        %1002 = vmatpush2.bf16.msra.mxu0 0
        %1003 = vmatprep.subr.bf16.mxu0 0
        %1004 = vmatpush2.bf16.msra.mxu0 0
        %1005 = vmatprep.subr.bf16.mxu0 0
        %1006 = vmatpush2.bf16.msra.mxu0 0
        %1007 = vmatprep.subr.bf16.mxu0 0
        %1008 = vmatpush2.bf16.msra.mxu0 0
        %1009 = vmatprep.subr.bf16.mxu0 0
        %1010 = vmatpush2.bf16.msra.mxu0 0
        %1011 = vmatprep.mubr.bf16.mxu0 0
        %1012 = vmatmul.mubr.bf16.gmra.mxu0 %v977
        %v1013 = vpop.f32.mrf.mxu0
        %v1014 = vadd.f32 0.0, %v1013
        %v1015 = vpop.f32.mrf.mxu0
        %v1016 = vpop.f32.mrf.mxu0
        %v1017 = vadd.f32 0.0, %v1016
        %v1018 = vpop.f32.mrf.mxu0
        %1019 = vdwg.mxu0
        %1020 = vrot.lane.b32.xlu0 %v660, 64
        %v1021 = vpop.permute.xlu0 %1020
        %v1024 = vsel %vm880, %v970, 0
        %1026 = vmatprep.subr.bf16.mxu0 0
        %1027 = vmatpush1.bf16.msra.mxu0 0
        %1028 = vmatprep.subr.bf16.mxu0 0
        %1029 = vmatpush1.bf16.msra.mxu0 0
        %1030 = vmatprep.subr.bf16.mxu0 0
        %1031 = vmatpush1.bf16.msra.mxu0 0
        %1032 = vmatprep.subr.bf16.mxu0 0
        %1033 = vmatpush1.bf16.msra.mxu0 0
        %1034 = vmatprep.subr.bf16.mxu0 0
        %1035 = vmatpush1.bf16.msra.mxu0 0
        %1036 = vmatprep.subr.bf16.mxu0 0
        %1037 = vmatpush1.bf16.msra.mxu0 0
        %1038 = vmatprep.subr.bf16.mxu0 0
        %1039 = vmatpush1.bf16.msra.mxu0 0
        %1040 = vmatprep.subr.bf16.mxu0 0
        %1041 = vmatpush1.bf16.msra.mxu0 %v1021
        %1042 = vmatprep.subr.bf16.mxu0 0
        %1043 = vmatpush2.bf16.msra.mxu0 0
        %1044 = vmatprep.subr.bf16.mxu0 0
        %1045 = vmatpush2.bf16.msra.mxu0 0
        %1046 = vmatprep.subr.bf16.mxu0 0
        %1047 = vmatpush2.bf16.msra.mxu0 0
        %1048 = vmatprep.subr.bf16.mxu0 0
        %1049 = vmatpush2.bf16.msra.mxu0 0
        %1050 = vmatprep.subr.bf16.mxu0 0
        %1051 = vmatpush2.bf16.msra.mxu0 0
        %1052 = vmatprep.subr.bf16.mxu0 0
        %1053 = vmatpush2.bf16.msra.mxu0 0
        %1054 = vmatprep.subr.bf16.mxu0 0
        %1055 = vmatpush2.bf16.msra.mxu0 0
        %1056 = vmatprep.subr.bf16.mxu0 0
        %1057 = vmatpush2.bf16.msra.mxu0 0
        %1058 = vmatprep.mubr.bf16.mxu0 0
        %1059 = vmatmul.mubr.bf16.gmra.mxu0 %v1024
        %v1060 = vpop.f32.mrf.mxu0
        %v1061 = vadd.f32 0.0, %v1060
        %v1062 = vpop.f32.mrf.mxu0
        %v1063 = vpop.f32.mrf.mxu0
        %v1064 = vadd.f32 0.0, %v1063
        %v1065 = vpop.f32.mrf.mxu0
        %1066 = vdwg.mxu0
        %1067 = vrot.lane.b32.xlu0 %v661, 64
        %v1068 = vpop.permute.xlu0 %1067
        %v1071 = vsel %vm880, %v971, 0
        %1073 = vmatprep.subr.bf16.mxu0 0
        %1074 = vmatpush1.bf16.msra.mxu0 0
        %1075 = vmatprep.subr.bf16.mxu0 0
        %1076 = vmatpush1.bf16.msra.mxu0 0
        %1077 = vmatprep.subr.bf16.mxu0 0
        %1078 = vmatpush1.bf16.msra.mxu0 0
        %1079 = vmatprep.subr.bf16.mxu0 0
        %1080 = vmatpush1.bf16.msra.mxu0 0
        %1081 = vmatprep.subr.bf16.mxu0 0
        %1082 = vmatpush1.bf16.msra.mxu0 0
        %1083 = vmatprep.subr.bf16.mxu0 0
        %1084 = vmatpush1.bf16.msra.mxu0 0
        %1085 = vmatprep.subr.bf16.mxu0 0
        %1086 = vmatpush1.bf16.msra.mxu0 0
        %1087 = vmatprep.subr.bf16.mxu0 0
        %1088 = vmatpush1.bf16.msra.mxu0 %v1068
        %1089 = vmatprep.subr.bf16.mxu0 0
        %1090 = vmatpush2.bf16.msra.mxu0 0
        %1091 = vmatprep.subr.bf16.mxu0 0
        %1092 = vmatpush2.bf16.msra.mxu0 0
        %1093 = vmatprep.subr.bf16.mxu0 0
        %1094 = vmatpush2.bf16.msra.mxu0 0
        %1095 = vmatprep.subr.bf16.mxu0 0
        %1096 = vmatpush2.bf16.msra.mxu0 0
        %1097 = vmatprep.subr.bf16.mxu0 0
        %1098 = vmatpush2.bf16.msra.mxu0 0
        %1099 = vmatprep.subr.bf16.mxu0 0
        %1100 = vmatpush2.bf16.msra.mxu0 0
        %1101 = vmatprep.subr.bf16.mxu0 0
        %1102 = vmatpush2.bf16.msra.mxu0 0
        %1103 = vmatprep.subr.bf16.mxu0 0
        %1104 = vmatpush2.bf16.msra.mxu0 0
        %1105 = vmatprep.mubr.bf16.mxu0 0
        %1106 = vmatmul.mubr.bf16.gmra.mxu0 %v1071
        %v1107 = vpop.f32.mrf.mxu0
        %v1108 = vadd.f32 0.0, %v1107
        %v1109 = vpop.f32.mrf.mxu0
        %v1110 = vpop.f32.mrf.mxu0
        %v1111 = vadd.f32 0.0, %v1110
        %v1112 = vpop.f32.mrf.mxu0
        %1113 = vdwg.mxu0
        %1114 = vrot.lane.b32.xlu0 %v662, 64
        %v1115 = vpop.permute.xlu0 %1114
        %v1118 = vsel %vm880, %v972, 0
        %1120 = vmatprep.subr.bf16.mxu0 0
        %1121 = vmatpush1.bf16.msra.mxu0 0
        %1122 = vmatprep.subr.bf16.mxu0 0
        %1123 = vmatpush1.bf16.msra.mxu0 0
        %1124 = vmatprep.subr.bf16.mxu0 0
        %1125 = vmatpush1.bf16.msra.mxu0 0
        %1126 = vmatprep.subr.bf16.mxu0 0
        %1127 = vmatpush1.bf16.msra.mxu0 0
        %1128 = vmatprep.subr.bf16.mxu0 0
        %1129 = vmatpush1.bf16.msra.mxu0 0
        %1130 = vmatprep.subr.bf16.mxu0 0
        %1131 = vmatpush1.bf16.msra.mxu0 0
        %1132 = vmatprep.subr.bf16.mxu0 0
        %1133 = vmatpush1.bf16.msra.mxu0 0
        %1134 = vmatprep.subr.bf16.mxu0 0
        %1135 = vmatpush1.bf16.msra.mxu0 %v1115
        %1136 = vmatprep.subr.bf16.mxu0 0
        %1137 = vmatpush2.bf16.msra.mxu0 0
        %1138 = vmatprep.subr.bf16.mxu0 0
        %1139 = vmatpush2.bf16.msra.mxu0 0
        %1140 = vmatprep.subr.bf16.mxu0 0
        %1141 = vmatpush2.bf16.msra.mxu0 0
        %1142 = vmatprep.subr.bf16.mxu0 0
        %1143 = vmatpush2.bf16.msra.mxu0 0
        %1144 = vmatprep.subr.bf16.mxu0 0
        %1145 = vmatpush2.bf16.msra.mxu0 0
        %1146 = vmatprep.subr.bf16.mxu0 0
        %1147 = vmatpush2.bf16.msra.mxu0 0
        %1148 = vmatprep.subr.bf16.mxu0 0
        %1149 = vmatpush2.bf16.msra.mxu0 0
        %1150 = vmatprep.subr.bf16.mxu0 0
        %1151 = vmatpush2.bf16.msra.mxu0 0
        %1152 = vmatprep.mubr.bf16.mxu0 0
        %1153 = vmatmul.mubr.bf16.gmra.mxu0 %v1118
        %v1154 = vpop.f32.mrf.mxu0
        %v1155 = vadd.f32 0.0, %v1154
        %v1156 = vpop.f32.mrf.mxu0
        %v1157 = vpop.f32.mrf.mxu0
        %v1158 = vadd.f32 0.0, %v1157
        %v1159 = vpop.f32.mrf.mxu0
        %1160 = vdwg.mxu0
        %1163 = vrot.lane.b32.xlu0 %v1061, 8
        %v1164 = vpop.permute.xlu0 %1163
        %1165 = vrot.lane.b32.xlu0 %v1064, 8
        %v1166 = vpop.permute.xlu0 %1165
        %1171 = vrot.lane.b32.xlu0 %v1108, 16
        %v1172 = vpop.permute.xlu0 %1171
        %1173 = vrot.lane.b32.xlu0 %v1111, 16
        %v1174 = vpop.permute.xlu0 %1173
        %1179 = vrot.lane.b32.xlu0 %v1155, 24
        %v1180 = vpop.permute.xlu0 %1179
        %1181 = vrot.lane.b32.xlu0 %v1158, 24
        %v1182 = vpop.permute.xlu0 %1181
        %v1185 = vsel %vm666, %v1014, %v1164
        %v1186 = vsel %vm666, %v1017, %v1166
        %v1187 = vsel %vm880, %v1185, %v1172
        %v1188 = vsel %vm880, %v1186, %v1174
        %vm1189 = vcmask 195584
        %v1190 = vsel %vm1189, %v1187, %v1180
        %v1191 = vsel %vm1189, %v1188, %v1182
        %v1192 = vpack.c.bf16 %v1191, %v1190
        %v1193 = vld [vmem:[%s2] sm:$0xf]
        %v1194 = vld [vmem:[%s2 + $0x4] sm:$0xf]
        %v1195 = vld [vmem:[%s2 + $0x8] sm:$0xf]
        %v1196 = vld [vmem:[%s2 + $0xc] sm:$0xf]
        %v1197 = vld [vmem:[%s3] sm:$0x1]
        %v1199 = vlaneseq
        %v1200 = vshrl.u32 %v1199, 7
        %v1201 = vsub.s32 0, %v1200
        %v1202 = vrot.slane %v1197, %v1201
        %v1208 = vunpack.c.l.b16 %v1193
        %v1209 = vunpack.c.l.b16 %v1194
        %v1210 = vunpack.c.l.b16 %v1195
        %v1211 = vunpack.c.l.b16 %v1196
        %v1212 = vpack.c.b16 %v1209, %v1208
        %v1213 = vpack.c.b16 %v1211, %v1210
        %v1217 = vsel %vm534, %v1192, 0
        %1219 = vmatprep.subr.bf16.mxu0 0
        %1220 = vmatpush1.bf16.msra.mxu0 0
        %1221 = vmatprep.subr.bf16.mxu0 0
        %1222 = vmatpush1.bf16.msra.mxu0 0
        %1223 = vmatprep.subr.bf16.mxu0 0
        %1224 = vmatpush1.bf16.msra.mxu0 0
        %1225 = vmatprep.subr.bf16.mxu0 0
        %1226 = vmatpush1.bf16.msra.mxu0 0
        %1227 = vmatprep.subr.bf16.mxu0 0
        %1228 = vmatpush1.bf16.msra.mxu0 0
        %1229 = vmatprep.subr.bf16.mxu0 0
        %1230 = vmatpush1.bf16.msra.mxu0 0
        %1231 = vmatprep.subr.bf16.mxu0 0
        %1232 = vmatpush1.bf16.msra.mxu0 %v1213
        %1233 = vmatprep.subr.bf16.mxu0 0
        %1234 = vmatpush1.bf16.msra.mxu0 %v1212
        %1235 = vmatprep.subr.bf16.mxu0 0
        %1236 = vmatpush2.bf16.msra.mxu0 0
        %1237 = vmatprep.subr.bf16.mxu0 0
        %1238 = vmatpush2.bf16.msra.mxu0 0
        %1239 = vmatprep.subr.bf16.mxu0 0
        %1240 = vmatpush2.bf16.msra.mxu0 0
        %1241 = vmatprep.subr.bf16.mxu0 0
        %1242 = vmatpush2.bf16.msra.mxu0 0
        %1243 = vmatprep.subr.bf16.mxu0 0
        %1244 = vmatpush2.bf16.msra.mxu0 0
        %1245 = vmatprep.subr.bf16.mxu0 0
        %1246 = vmatpush2.bf16.msra.mxu0 0
        %1247 = vmatprep.subr.bf16.mxu0 0
        %1248 = vmatpush2.bf16.msra.mxu0 0
        %1249 = vmatprep.subr.bf16.mxu0 0
        %1250 = vmatpush2.bf16.msra.mxu0 0
        %1251 = vmatprep.mubr.bf16.mxu0 0
        %1252 = vmatmul.mubr.bf16.gmra.mxu0 %v1217
        %v1253 = vpop.f32.mrf.mxu0
        %v1254 = vadd.f32 %v1202, %v1253
        %v1255 = vpop.f32.mrf.mxu0
        %v1256 = vpop.f32.mrf.mxu0
        %v1257 = vadd.f32 %v1202, %v1256
        %v1258 = vpop.f32.mrf.mxu0
        %1259 = vdwg.mxu0
        %v1260 = vadd.f32 %v521, %v1254
        %v1261 = vadd.f32 %v522, %v1257
        %v1262 = vld [vmem:[%s6] sm:$0x1]
        %v1263 = vld [vmem:[%s7] sm:$0x1]
        %v1264 = vsel %vm534, %v1260, 0.0
        %1265 = vadd.xlane.f32.xlu0 %v1264
        %v1266 = vpop.xlane.xlu0 %1265
        %v1267 = vsel %vm534, %v1261, 0.0
        %1268 = vadd.xlane.f32.xlu0 %v1267
        %v1269 = vpop.xlane.xlu0 %1268
        %v1270 = vmul.f32 %v1266, %v541
        %v1271 = vmul.f32 %v1269, %v541
        %v1272 = vsub.f32 %v1260, %v1270
        %v1273 = vsub.f32 %v1261, %v1271
        %v1274 = vmul.f32 %v1272, %v1272
        %v1275 = vmul.f32 %v1273, %v1273
        %v1276 = vsel %vm534, %v1274, 0.0
        %1277 = vadd.xlane.f32.xlu0 %v1276
        %v1278 = vpop.xlane.xlu0 %1277
        %v1279 = vsel %vm534, %v1275, 0.0
        %1280 = vadd.xlane.f32.xlu0 %v1279
        %v1281 = vpop.xlane.xlu0 %1280
        %v1282 = vmul.f32 %v1278, %v541
        %v1283 = vmul.f32 %v1281, %v541
        %v1284 = vadd.f32 %v1282, 1e-05
        %v1285 = vadd.f32 %v1283, 1e-05
        %v1286 = vrsqrt.pop %v1284
        %v1287 = vrsqrt.pop %v1285
        %v1288 = vmul.f32 %v1272, %v1286
        %v1289 = vmul.f32 %v1273, %v1287
        %v1291 = vlaneseq
        %v1292 = vshrl.u32 %v1291, 7
        %v1293 = vsub.s32 0, %v1292
        %v1294 = vrot.slane %v1262, %v1293
        %v1296 = vmul.f32 %v1288, %v1294
        %v1297 = vmul.f32 %v1289, %v1294
        %v1299 = vlaneseq
        %v1300 = vshrl.u32 %v1299, 7
        %v1301 = vsub.s32 0, %v1300
        %v1302 = vrot.slane %v1263, %v1301
        %v1304 = vadd.f32 %v1296, %v1302
        %v1305 = vadd.f32 %v1297, %v1302
        %v1306 = vpack.c.bf16 %v1305, %v1304
        %v1307 = vld [vmem:[%s8] sm:$0xf]
        %v1308 = vld [vmem:[%s8 + $0x4] sm:$0xf]
        %v1309 = vld [vmem:[%s8 + $0x8] sm:$0xf]
        %v1310 = vld [vmem:[%s8 + $0xc] sm:$0xf]
        %v1311 = vld [vmem:[%s9] sm:$0x1]
        %v1313 = vlaneseq
        %v1314 = vshrl.u32 %v1313, 7
        %v1315 = vsub.s32 0, %v1314
        %v1316 = vrot.slane %v1311, %v1315
        %v1322 = vunpack.c.l.b16 %v1307
        %v1323 = vunpack.c.l.b16 %v1308
        %v1324 = vunpack.c.l.b16 %v1309
        %v1325 = vunpack.c.l.b16 %v1310
        %v1326 = vpack.c.b16 %v1323, %v1322
        %v1327 = vpack.c.b16 %v1325, %v1324
        %v1331 = vsel %vm534, %v1306, 0
        %1333 = vmatprep.subr.bf16.mxu0 0
        %1334 = vmatpush1.bf16.msra.mxu0 0
        %1335 = vmatprep.subr.bf16.mxu0 0
        %1336 = vmatpush1.bf16.msra.mxu0 0
        %1337 = vmatprep.subr.bf16.mxu0 0
        %1338 = vmatpush1.bf16.msra.mxu0 0
        %1339 = vmatprep.subr.bf16.mxu0 0
        %1340 = vmatpush1.bf16.msra.mxu0 0
        %1341 = vmatprep.subr.bf16.mxu0 0
        %1342 = vmatpush1.bf16.msra.mxu0 0
        %1343 = vmatprep.subr.bf16.mxu0 0
        %1344 = vmatpush1.bf16.msra.mxu0 0
        %1345 = vmatprep.subr.bf16.mxu0 0
        %1346 = vmatpush1.bf16.msra.mxu0 %v1327
        %1347 = vmatprep.subr.bf16.mxu0 0
        %1348 = vmatpush1.bf16.msra.mxu0 %v1326
        %1349 = vmatprep.subr.bf16.mxu0 0
        %1350 = vmatpush2.bf16.msra.mxu0 0
        %1351 = vmatprep.subr.bf16.mxu0 0
        %1352 = vmatpush2.bf16.msra.mxu0 0
        %1353 = vmatprep.subr.bf16.mxu0 0
        %1354 = vmatpush2.bf16.msra.mxu0 0
        %1355 = vmatprep.subr.bf16.mxu0 0
        %1356 = vmatpush2.bf16.msra.mxu0 0
        %1357 = vmatprep.subr.bf16.mxu0 0
        %1358 = vmatpush2.bf16.msra.mxu0 0
        %1359 = vmatprep.subr.bf16.mxu0 0
        %1360 = vmatpush2.bf16.msra.mxu0 0
        %1361 = vmatprep.subr.bf16.mxu0 0
        %1362 = vmatpush2.bf16.msra.mxu0 0
        %1363 = vmatprep.subr.bf16.mxu0 0
        %1364 = vmatpush2.bf16.msra.mxu0 0
        %1365 = vmatprep.mubr.bf16.mxu0 0
        %1366 = vmatmul.mubr.bf16.gmra.mxu0 %v1331
        %v1367 = vpop.f32.mrf.mxu0
        %v1368 = vadd.f32 %v1316, %v1367
        %v1369 = vpop.f32.mrf.mxu0
        %v1370 = vpop.f32.mrf.mxu0
        %v1371 = vadd.f32 %v1316, %v1370
        %v1372 = vpop.f32.mrf.mxu0
        %1373 = vdwg.mxu0
        %v1374 = vmax.f32 %v1368, 0.0
        %v1375 = vmax.f32 %v1371, 0.0
        %v1376 = vpack.c.bf16 %v1375, %v1374
        %v1377 = vld [vmem:[%s10] sm:$0xf]
        %v1378 = vld [vmem:[%s10 + $0x4] sm:$0xf]
        %v1379 = vld [vmem:[%s10 + $0x8] sm:$0xf]
        %v1380 = vld [vmem:[%s10 + $0xc] sm:$0xf]
        %v1381 = vld [vmem:[%s10 + $0x10] sm:$0xf]
        %v1382 = vld [vmem:[%s10 + $0x14] sm:$0xf]
        %v1383 = vld [vmem:[%s10 + $0x18] sm:$0xf]
        %v1384 = vld [vmem:[%s10 + $0x1c] sm:$0xf]
        %v1385 = vld [vmem:[%s10 + $0x20] sm:$0xf]
        %v1386 = vld [vmem:[%s10 + $0x24] sm:$0xf]
        %v1387 = vld [vmem:[%s10 + $0x28] sm:$0xf]
        %v1388 = vld [vmem:[%s10 + $0x2c] sm:$0xf]
        %v1389 = vld [vmem:[%s10 + $0x30] sm:$0xf]
        %v1390 = vld [vmem:[%s10 + $0x34] sm:$0xf]
        %v1391 = vld [vmem:[%s10 + $0x38] sm:$0xf]
        %v1392 = vld [vmem:[%s10 + $0x3c] sm:$0xf]
        %v1393 = vld [vmem:[%s11] sm:$0x1]
        %v1395 = vlaneseq
        %v1396 = vshrl.u32 %v1395, 7
        %v1397 = vsub.s32 0, %v1396
        %v1398 = vrot.slane %v1393, %v1397
        %v1416 = vunpack.c.l.b16 %v1377
        %v1417 = vunpack.c.l.b16 %v1378
        %v1418 = vunpack.c.l.b16 %v1379
        %v1419 = vunpack.c.l.b16 %v1380
        %v1420 = vunpack.c.l.b16 %v1381
        %v1421 = vunpack.c.l.b16 %v1382
        %v1422 = vunpack.c.l.b16 %v1383
        %v1423 = vunpack.c.l.b16 %v1384
        %v1424 = vunpack.c.l.b16 %v1385
        %v1425 = vunpack.c.l.b16 %v1386
        %v1426 = vunpack.c.l.b16 %v1387
        %v1427 = vunpack.c.l.b16 %v1388
        %v1428 = vunpack.c.l.b16 %v1389
        %v1429 = vunpack.c.l.b16 %v1390
        %v1430 = vunpack.c.l.b16 %v1391
        %v1431 = vunpack.c.l.b16 %v1392
        %v1432 = vpack.c.b16 %v1417, %v1416
        %v1433 = vpack.c.b16 %v1419, %v1418
        %v1434 = vpack.c.b16 %v1421, %v1420
        %v1435 = vpack.c.b16 %v1423, %v1422
        %v1436 = vpack.c.b16 %v1425, %v1424
        %v1437 = vpack.c.b16 %v1427, %v1426
        %v1438 = vpack.c.b16 %v1429, %v1428
        %v1439 = vpack.c.b16 %v1431, %v1430
        %1448 = vmatprep.subr.bf16.mxu0 0
        %1449 = vmatpush1.bf16.msra.mxu0 %v1439
        %1450 = vmatprep.subr.bf16.mxu0 0
        %1451 = vmatpush1.bf16.msra.mxu0 %v1438
        %1452 = vmatprep.subr.bf16.mxu0 0
        %1453 = vmatpush1.bf16.msra.mxu0 %v1437
        %1454 = vmatprep.subr.bf16.mxu0 0
        %1455 = vmatpush1.bf16.msra.mxu0 %v1436
        %1456 = vmatprep.subr.bf16.mxu0 0
        %1457 = vmatpush1.bf16.msra.mxu0 %v1435
        %1458 = vmatprep.subr.bf16.mxu0 0
        %1459 = vmatpush1.bf16.msra.mxu0 %v1434
        %1460 = vmatprep.subr.bf16.mxu0 0
        %1461 = vmatpush1.bf16.msra.mxu0 %v1433
        %1462 = vmatprep.subr.bf16.mxu0 0
        %1463 = vmatpush1.bf16.msra.mxu0 %v1432
        %1464 = vmatprep.subr.bf16.mxu0 0
        %1465 = vmatpush2.bf16.msra.mxu0 0
        %1466 = vmatprep.subr.bf16.mxu0 0
        %1467 = vmatpush2.bf16.msra.mxu0 0
        %1468 = vmatprep.subr.bf16.mxu0 0
        %1469 = vmatpush2.bf16.msra.mxu0 0
        %1470 = vmatprep.subr.bf16.mxu0 0
        %1471 = vmatpush2.bf16.msra.mxu0 0
        %1472 = vmatprep.subr.bf16.mxu0 0
        %1473 = vmatpush2.bf16.msra.mxu0 0
        %1474 = vmatprep.subr.bf16.mxu0 0
        %1475 = vmatpush2.bf16.msra.mxu0 0
        %1476 = vmatprep.subr.bf16.mxu0 0
        %1477 = vmatpush2.bf16.msra.mxu0 0
        %1478 = vmatprep.subr.bf16.mxu0 0
        %1479 = vmatpush2.bf16.msra.mxu0 0
        %1480 = vmatprep.mubr.bf16.mxu0 0
        %1481 = vmatmul.mubr.bf16.gmra.mxu0 %v1376
        %v1482 = vpop.f32.mrf.mxu0
        %v1483 = vadd.f32 %v1398, %v1482
        %v1484 = vpop.f32.mrf.mxu0
        %v1485 = vpop.f32.mrf.mxu0
        %v1486 = vadd.f32 %v1398, %v1485
        %v1487 = vpop.f32.mrf.mxu0
        %1488 = vdwg.mxu0
        %v1489 = vadd.f32 %v1260, %v1483
        %v1490 = vadd.f32 %v1261, %v1486
        %s1491 = scalar_lea.vmem %s4, 1
        %v1492 = vld [vmem:[%s1491] sm:$0x1]
        %s1493 = scalar_lea.vmem %s5, 1
        %v1494 = vld [vmem:[%s1493] sm:$0x1]
        %v1495 = vsel %vm534, %v1489, 0.0
        %1496 = vadd.xlane.f32.xlu0 %v1495
        %v1497 = vpop.xlane.xlu0 %1496
        %v1498 = vsel %vm534, %v1490, 0.0
        %1499 = vadd.xlane.f32.xlu0 %v1498
        %v1500 = vpop.xlane.xlu0 %1499
        %v1501 = vmul.f32 %v1497, %v541
        %v1502 = vmul.f32 %v1500, %v541
        %v1503 = vsub.f32 %v1489, %v1501
        %v1504 = vsub.f32 %v1490, %v1502
        %v1505 = vmul.f32 %v1503, %v1503
        %v1506 = vmul.f32 %v1504, %v1504
        %v1507 = vsel %vm534, %v1505, 0.0
        %1508 = vadd.xlane.f32.xlu0 %v1507
        %v1509 = vpop.xlane.xlu0 %1508
        %v1510 = vsel %vm534, %v1506, 0.0
        %1511 = vadd.xlane.f32.xlu0 %v1510
        %v1512 = vpop.xlane.xlu0 %1511
        %v1513 = vmul.f32 %v1509, %v541
        %v1514 = vmul.f32 %v1512, %v541
        %v1515 = vadd.f32 %v1513, 1e-05
        %v1516 = vadd.f32 %v1514, 1e-05
        %v1517 = vrsqrt.pop %v1515
        %v1518 = vrsqrt.pop %v1516
        %v1519 = vmul.f32 %v1503, %v1517
        %v1520 = vmul.f32 %v1504, %v1518
        %v1522 = vlaneseq
        %v1523 = vshrl.u32 %v1522, 7
        %v1524 = vsub.s32 0, %v1523
        %v1525 = vrot.slane %v1492, %v1524
        %v1527 = vmul.f32 %v1519, %v1525
        %v1528 = vmul.f32 %v1520, %v1525
        %v1530 = vlaneseq
        %v1531 = vshrl.u32 %v1530, 7
        %v1532 = vsub.s32 0, %v1531
        %v1533 = vrot.slane %v1494, %v1532
        %v1535 = vadd.f32 %v1527, %v1533
        %v1536 = vadd.f32 %v1528, %v1533
        %v1537 = vpack.c.bf16 %v1536, %v1535
        %s1538 = scalar_lea.vmem %s1, 16
        %v1539 = vld [vmem:[%s1538] sm:$0xf]
        %v1540 = vld [vmem:[%s1538 + $0x4] sm:$0xf]
        %v1541 = vld [vmem:[%s1538 + $0x8] sm:$0xf]
        %v1542 = vld [vmem:[%s1538 + $0xc] sm:$0xf]
        %v1547 = vunpack.c.l.b16 %v1539
        %v1548 = vunpack.c.l.b16 %v1540
        %v1549 = vunpack.c.l.b16 %v1541
        %v1550 = vunpack.c.l.b16 %v1542
        %v1551 = vpack.c.b16 %v1548, %v1547
        %v1552 = vpack.c.b16 %v1550, %v1549
        %v1556 = vsel %vm534, %v1537, 0
        %1558 = vmatprep.subr.bf16.mxu0 0
        %1559 = vmatpush1.bf16.msra.mxu0 0
        %1560 = vmatprep.subr.bf16.mxu0 0
        %1561 = vmatpush1.bf16.msra.mxu0 0
        %1562 = vmatprep.subr.bf16.mxu0 0
        %1563 = vmatpush1.bf16.msra.mxu0 0
        %1564 = vmatprep.subr.bf16.mxu0 0
        %1565 = vmatpush1.bf16.msra.mxu0 0
        %1566 = vmatprep.subr.bf16.mxu0 0
        %1567 = vmatpush1.bf16.msra.mxu0 0
        %1568 = vmatprep.subr.bf16.mxu0 0
        %1569 = vmatpush1.bf16.msra.mxu0 0
        %1570 = vmatprep.subr.bf16.mxu0 0
        %1571 = vmatpush1.bf16.msra.mxu0 %v1552
        %1572 = vmatprep.subr.bf16.mxu0 0
        %1573 = vmatpush1.bf16.msra.mxu0 %v1551
        %1574 = vmatprep.subr.bf16.mxu0 0
        %1575 = vmatpush2.bf16.msra.mxu0 0
        %1576 = vmatprep.subr.bf16.mxu0 0
        %1577 = vmatpush2.bf16.msra.mxu0 0
        %1578 = vmatprep.subr.bf16.mxu0 0
        %1579 = vmatpush2.bf16.msra.mxu0 0
        %1580 = vmatprep.subr.bf16.mxu0 0
        %1581 = vmatpush2.bf16.msra.mxu0 0
        %1582 = vmatprep.subr.bf16.mxu0 0
        %1583 = vmatpush2.bf16.msra.mxu0 0
        %1584 = vmatprep.subr.bf16.mxu0 0
        %1585 = vmatpush2.bf16.msra.mxu0 0
        %1586 = vmatprep.subr.bf16.mxu0 0
        %1587 = vmatpush2.bf16.msra.mxu0 0
        %1588 = vmatprep.subr.bf16.mxu0 0
        %1589 = vmatpush2.bf16.msra.mxu0 0
        %1590 = vmatprep.mubr.bf16.mxu0 0
        %1591 = vmatmul.mubr.bf16.gmra.mxu0 %v1556
        %v1592 = vpop.f32.mrf.mxu0
        %v1593 = vadd.f32 0.0, %v1592
        %v1594 = vpop.f32.mrf.mxu0
        %v1595 = vpop.f32.mrf.mxu0
        %v1596 = vadd.f32 0.0, %v1595
        %v1597 = vpop.f32.mrf.mxu0
        %1598 = vdwg.mxu0
        %1601 = vrot.lane.b32.xlu0 %v1593, 120
        %v1602 = vpop.permute.xlu0 %1601
        %1603 = vrot.lane.b32.xlu0 %v1596, 120
        %v1604 = vpop.permute.xlu0 %1603
        %1607 = vrot.lane.b32.xlu0 %v1593, 112
        %v1608 = vpop.permute.xlu0 %1607
        %1609 = vrot.lane.b32.xlu0 %v1596, 112
        %v1610 = vpop.permute.xlu0 %1609
        %1613 = vrot.lane.b32.xlu0 %v1593, 104
        %v1614 = vpop.permute.xlu0 %1613
        %1615 = vrot.lane.b32.xlu0 %v1596, 104
        %v1616 = vpop.permute.xlu0 %1615
        %v1619 = vpack.c.bf16 %v1596, %v1593
        %v1620 = vpack.c.bf16 %v1604, %v1602
        %v1621 = vpack.c.bf16 %v1610, %v1608
        %v1622 = vpack.c.bf16 %v1616, %v1614
        %1624 = vrot.lane.b32.xlu0 %v1619, 96
        %v1625 = vpop.permute.xlu0 %1624
        %v1627 = vsel %vm666, %v1619, 0
        %v1630 = vsel %vm666, %v1625, 0
        %1632 = vmatprep.subr.bf16.mxu0 0
        %1633 = vmatpush1.bf16.xpose.msra.mxu0 0
        %1634 = vmatprep.subr.bf16.mxu0 0
        %1635 = vmatpush1.bf16.xpose.msra.mxu0 0
        %1636 = vmatprep.subr.bf16.mxu0 0
        %1637 = vmatpush1.bf16.xpose.msra.mxu0 0
        %1638 = vmatprep.subr.bf16.mxu0 0
        %1639 = vmatpush1.bf16.xpose.msra.mxu0 0
        %1640 = vmatprep.subr.bf16.mxu0 0
        %1641 = vmatpush1.bf16.xpose.msra.mxu0 0
        %1642 = vmatprep.subr.bf16.mxu0 0
        %1643 = vmatpush1.bf16.xpose.msra.mxu0 0
        %1644 = vmatprep.subr.bf16.mxu0 0
        %1645 = vmatpush1.bf16.xpose.msra.mxu0 0
        %1646 = vmatprep.subr.bf16.mxu0 0
        %1647 = vmatpush1.bf16.xpose.msra.mxu0 %v1630
        %1648 = vmatprep.subr.bf16.mxu0 0
        %1649 = vmatpush2.bf16.xpose.msra.mxu0 0
        %1650 = vmatprep.subr.bf16.mxu0 0
        %1651 = vmatpush2.bf16.xpose.msra.mxu0 0
        %1652 = vmatprep.subr.bf16.mxu0 0
        %1653 = vmatpush2.bf16.xpose.msra.mxu0 0
        %1654 = vmatprep.subr.bf16.mxu0 0
        %1655 = vmatpush2.bf16.xpose.msra.mxu0 0
        %1656 = vmatprep.subr.bf16.mxu0 0
        %1657 = vmatpush2.bf16.xpose.msra.mxu0 0
        %1658 = vmatprep.subr.bf16.mxu0 0
        %1659 = vmatpush2.bf16.xpose.msra.mxu0 0
        %1660 = vmatprep.subr.bf16.mxu0 0
        %1661 = vmatpush2.bf16.xpose.msra.mxu0 0
        %1662 = vmatprep.subr.bf16.mxu0 0
        %1663 = vmatpush2.bf16.xpose.msra.mxu0 0
        %1664 = vmatprep.mubr.bf16.mxu0 0
        %1665 = vmatmul.mubr.bf16.gmra.mxu0 %v1627
        %v1666 = vpop.f32.mrf.mxu0
        %v1667 = vadd.f32 0.0, %v1666
        %v1668 = vpop.f32.mrf.mxu0
        %v1669 = vpop.f32.mrf.mxu0
        %v1670 = vadd.f32 0.0, %v1669
        %v1671 = vpop.f32.mrf.mxu0
        %1672 = vdwg.mxu0
        %1674 = vrot.lane.b32.xlu0 %v1620, 96
        %v1675 = vpop.permute.xlu0 %1674
        %v1677 = vsel %vm666, %v1620, 0
        %v1680 = vsel %vm666, %v1675, 0
        %1682 = vmatprep.subr.bf16.mxu0 0
        %1683 = vmatpush1.bf16.xpose.msra.mxu0 0
        %1684 = vmatprep.subr.bf16.mxu0 0
        %1685 = vmatpush1.bf16.xpose.msra.mxu0 0
        %1686 = vmatprep.subr.bf16.mxu0 0
        %1687 = vmatpush1.bf16.xpose.msra.mxu0 0
        %1688 = vmatprep.subr.bf16.mxu0 0
        %1689 = vmatpush1.bf16.xpose.msra.mxu0 0
        %1690 = vmatprep.subr.bf16.mxu0 0
        %1691 = vmatpush1.bf16.xpose.msra.mxu0 0
        %1692 = vmatprep.subr.bf16.mxu0 0
        %1693 = vmatpush1.bf16.xpose.msra.mxu0 0
        %1694 = vmatprep.subr.bf16.mxu0 0
        %1695 = vmatpush1.bf16.xpose.msra.mxu0 0
        %1696 = vmatprep.subr.bf16.mxu0 0
        %1697 = vmatpush1.bf16.xpose.msra.mxu0 %v1680
        %1698 = vmatprep.subr.bf16.mxu0 0
        %1699 = vmatpush2.bf16.xpose.msra.mxu0 0
        %1700 = vmatprep.subr.bf16.mxu0 0
        %1701 = vmatpush2.bf16.xpose.msra.mxu0 0
        %1702 = vmatprep.subr.bf16.mxu0 0
        %1703 = vmatpush2.bf16.xpose.msra.mxu0 0
        %1704 = vmatprep.subr.bf16.mxu0 0
        %1705 = vmatpush2.bf16.xpose.msra.mxu0 0
        %1706 = vmatprep.subr.bf16.mxu0 0
        %1707 = vmatpush2.bf16.xpose.msra.mxu0 0
        %1708 = vmatprep.subr.bf16.mxu0 0
        %1709 = vmatpush2.bf16.xpose.msra.mxu0 0
        %1710 = vmatprep.subr.bf16.mxu0 0
        %1711 = vmatpush2.bf16.xpose.msra.mxu0 0
        %1712 = vmatprep.subr.bf16.mxu0 0
        %1713 = vmatpush2.bf16.xpose.msra.mxu0 0
        %1714 = vmatprep.mubr.bf16.mxu0 0
        %1715 = vmatmul.mubr.bf16.gmra.mxu0 %v1677
        %v1716 = vpop.f32.mrf.mxu0
        %v1717 = vadd.f32 0.0, %v1716
        %v1718 = vpop.f32.mrf.mxu0
        %v1719 = vpop.f32.mrf.mxu0
        %v1720 = vadd.f32 0.0, %v1719
        %v1721 = vpop.f32.mrf.mxu0
        %1722 = vdwg.mxu0
        %1724 = vrot.lane.b32.xlu0 %v1621, 96
        %v1725 = vpop.permute.xlu0 %1724
        %v1727 = vsel %vm666, %v1621, 0
        %v1730 = vsel %vm666, %v1725, 0
        %1732 = vmatprep.subr.bf16.mxu0 0
        %1733 = vmatpush1.bf16.xpose.msra.mxu0 0
        %1734 = vmatprep.subr.bf16.mxu0 0
        %1735 = vmatpush1.bf16.xpose.msra.mxu0 0
        %1736 = vmatprep.subr.bf16.mxu0 0
        %1737 = vmatpush1.bf16.xpose.msra.mxu0 0
        %1738 = vmatprep.subr.bf16.mxu0 0
        %1739 = vmatpush1.bf16.xpose.msra.mxu0 0
        %1740 = vmatprep.subr.bf16.mxu0 0
        %1741 = vmatpush1.bf16.xpose.msra.mxu0 0
        %1742 = vmatprep.subr.bf16.mxu0 0
        %1743 = vmatpush1.bf16.xpose.msra.mxu0 0
        %1744 = vmatprep.subr.bf16.mxu0 0
        %1745 = vmatpush1.bf16.xpose.msra.mxu0 0
        %1746 = vmatprep.subr.bf16.mxu0 0
        %1747 = vmatpush1.bf16.xpose.msra.mxu0 %v1730
        %1748 = vmatprep.subr.bf16.mxu0 0
        %1749 = vmatpush2.bf16.xpose.msra.mxu0 0
        %1750 = vmatprep.subr.bf16.mxu0 0
        %1751 = vmatpush2.bf16.xpose.msra.mxu0 0
        %1752 = vmatprep.subr.bf16.mxu0 0
        %1753 = vmatpush2.bf16.xpose.msra.mxu0 0
        %1754 = vmatprep.subr.bf16.mxu0 0
        %1755 = vmatpush2.bf16.xpose.msra.mxu0 0
        %1756 = vmatprep.subr.bf16.mxu0 0
        %1757 = vmatpush2.bf16.xpose.msra.mxu0 0
        %1758 = vmatprep.subr.bf16.mxu0 0
        %1759 = vmatpush2.bf16.xpose.msra.mxu0 0
        %1760 = vmatprep.subr.bf16.mxu0 0
        %1761 = vmatpush2.bf16.xpose.msra.mxu0 0
        %1762 = vmatprep.subr.bf16.mxu0 0
        %1763 = vmatpush2.bf16.xpose.msra.mxu0 0
        %1764 = vmatprep.mubr.bf16.mxu0 0
        %1765 = vmatmul.mubr.bf16.gmra.mxu0 %v1727
        %v1766 = vpop.f32.mrf.mxu0
        %v1767 = vadd.f32 0.0, %v1766
        %v1768 = vpop.f32.mrf.mxu0
        %v1769 = vpop.f32.mrf.mxu0
        %v1770 = vadd.f32 0.0, %v1769
        %v1771 = vpop.f32.mrf.mxu0
        %1772 = vdwg.mxu0
        %1774 = vrot.lane.b32.xlu0 %v1622, 96
        %v1775 = vpop.permute.xlu0 %1774
        %v1777 = vsel %vm666, %v1622, 0
        %v1780 = vsel %vm666, %v1775, 0
        %1782 = vmatprep.subr.bf16.mxu0 0
        %1783 = vmatpush1.bf16.xpose.msra.mxu0 0
        %1784 = vmatprep.subr.bf16.mxu0 0
        %1785 = vmatpush1.bf16.xpose.msra.mxu0 0
        %1786 = vmatprep.subr.bf16.mxu0 0
        %1787 = vmatpush1.bf16.xpose.msra.mxu0 0
        %1788 = vmatprep.subr.bf16.mxu0 0
        %1789 = vmatpush1.bf16.xpose.msra.mxu0 0
        %1790 = vmatprep.subr.bf16.mxu0 0
        %1791 = vmatpush1.bf16.xpose.msra.mxu0 0
        %1792 = vmatprep.subr.bf16.mxu0 0
        %1793 = vmatpush1.bf16.xpose.msra.mxu0 0
        %1794 = vmatprep.subr.bf16.mxu0 0
        %1795 = vmatpush1.bf16.xpose.msra.mxu0 0
        %1796 = vmatprep.subr.bf16.mxu0 0
        %1797 = vmatpush1.bf16.xpose.msra.mxu0 %v1780
        %1798 = vmatprep.subr.bf16.mxu0 0
        %1799 = vmatpush2.bf16.xpose.msra.mxu0 0
        %1800 = vmatprep.subr.bf16.mxu0 0
        %1801 = vmatpush2.bf16.xpose.msra.mxu0 0
        %1802 = vmatprep.subr.bf16.mxu0 0
        %1803 = vmatpush2.bf16.xpose.msra.mxu0 0
        %1804 = vmatprep.subr.bf16.mxu0 0
        %1805 = vmatpush2.bf16.xpose.msra.mxu0 0
        %1806 = vmatprep.subr.bf16.mxu0 0
        %1807 = vmatpush2.bf16.xpose.msra.mxu0 0
        %1808 = vmatprep.subr.bf16.mxu0 0
        %1809 = vmatpush2.bf16.xpose.msra.mxu0 0
        %1810 = vmatprep.subr.bf16.mxu0 0
        %1811 = vmatpush2.bf16.xpose.msra.mxu0 0
        %1812 = vmatprep.subr.bf16.mxu0 0
        %1813 = vmatpush2.bf16.xpose.msra.mxu0 0
        %1814 = vmatprep.mubr.bf16.mxu0 0
        %1815 = vmatmul.mubr.bf16.gmra.mxu0 %v1777
        %v1816 = vpop.f32.mrf.mxu0
        %v1817 = vadd.f32 0.0, %v1816
        %v1818 = vpop.f32.mrf.mxu0
        %v1819 = vpop.f32.mrf.mxu0
        %v1820 = vadd.f32 0.0, %v1819
        %v1821 = vpop.f32.mrf.mxu0
        %1822 = vdwg.mxu0
        %v1823 = vmul.f32 %v1667, 0.35355338
        %v1824 = vmul.f32 %v1670, 0.35355338
        %v1825 = vmul.f32 %v1717, 0.35355338
        %v1826 = vmul.f32 %v1720, 0.35355338
        %v1827 = vmul.f32 %v1767, 0.35355338
        %v1828 = vmul.f32 %v1770, 0.35355338
        %v1829 = vmul.f32 %v1817, 0.35355338
        %v1830 = vmul.f32 %v1820, 0.35355338
        %v1831 = vadd.f32 %v1823, %v530
        %v1832 = vadd.f32 %v1824, %v531
        %v1833 = vadd.f32 %v1825, %v530
        %v1834 = vadd.f32 %v1826, %v531
        %v1835 = vadd.f32 %v1827, %v530
        %v1836 = vadd.f32 %v1828, %v531
        %v1837 = vadd.f32 %v1829, %v530
        %v1838 = vadd.f32 %v1830, %v531
        %v1839 = vsel %vm880, %v1831, -inf
        %1840 = vmax.xlane.f32.xlu0 %v1839
        %v1841 = vpop.xlane.xlu0 %1840
        %v1842 = vsel %vm880, %v1832, -inf
        %1843 = vmax.xlane.f32.xlu0 %v1842
        %v1844 = vpop.xlane.xlu0 %1843
        %v1845 = vsel %vm880, %v1833, -inf
        %1846 = vmax.xlane.f32.xlu0 %v1845
        %v1847 = vpop.xlane.xlu0 %1846
        %v1848 = vsel %vm880, %v1834, -inf
        %1849 = vmax.xlane.f32.xlu0 %v1848
        %v1850 = vpop.xlane.xlu0 %1849
        %v1851 = vsel %vm880, %v1835, -inf
        %1852 = vmax.xlane.f32.xlu0 %v1851
        %v1853 = vpop.xlane.xlu0 %1852
        %v1854 = vsel %vm880, %v1836, -inf
        %1855 = vmax.xlane.f32.xlu0 %v1854
        %v1856 = vpop.xlane.xlu0 %1855
        %v1857 = vsel %vm880, %v1837, -inf
        %1858 = vmax.xlane.f32.xlu0 %v1857
        %v1859 = vpop.xlane.xlu0 %1858
        %v1860 = vsel %vm880, %v1838, -inf
        %1861 = vmax.xlane.f32.xlu0 %v1860
        %v1862 = vpop.xlane.xlu0 %1861
        %v1863 = vsub.f32 %v1831, %v1841
        %v1864 = vsub.f32 %v1832, %v1844
        %v1865 = vsub.f32 %v1833, %v1847
        %v1866 = vsub.f32 %v1834, %v1850
        %v1867 = vsub.f32 %v1835, %v1853
        %v1868 = vsub.f32 %v1836, %v1856
        %v1869 = vsub.f32 %v1837, %v1859
        %v1870 = vsub.f32 %v1838, %v1862
        %v1871 = vmul.f32 %v1863, 1.442695
        %v1872 = vpow.pop %v1871
        %v1873 = vmul.f32 %v1864, 1.442695
        %v1874 = vpow.pop %v1873
        %v1875 = vmul.f32 %v1865, 1.442695
        %v1876 = vpow.pop %v1875
        %v1877 = vmul.f32 %v1866, 1.442695
        %v1878 = vpow.pop %v1877
        %v1879 = vmul.f32 %v1867, 1.442695
        %v1880 = vpow.pop %v1879
        %v1881 = vmul.f32 %v1868, 1.442695
        %v1882 = vpow.pop %v1881
        %v1883 = vmul.f32 %v1869, 1.442695
        %v1884 = vpow.pop %v1883
        %v1885 = vmul.f32 %v1870, 1.442695
        %v1886 = vpow.pop %v1885
        %v1887 = vsel %vm880, %v1872, 0.0
        %1888 = vadd.xlane.f32.xlu0 %v1887
        %v1889 = vpop.xlane.xlu0 %1888
        %v1890 = vsel %vm880, %v1874, 0.0
        %1891 = vadd.xlane.f32.xlu0 %v1890
        %v1892 = vpop.xlane.xlu0 %1891
        %v1893 = vsel %vm880, %v1876, 0.0
        %1894 = vadd.xlane.f32.xlu0 %v1893
        %v1895 = vpop.xlane.xlu0 %1894
        %v1896 = vsel %vm880, %v1878, 0.0
        %1897 = vadd.xlane.f32.xlu0 %v1896
        %v1898 = vpop.xlane.xlu0 %1897
        %v1899 = vsel %vm880, %v1880, 0.0
        %1900 = vadd.xlane.f32.xlu0 %v1899
        %v1901 = vpop.xlane.xlu0 %1900
        %v1902 = vsel %vm880, %v1882, 0.0
        %1903 = vadd.xlane.f32.xlu0 %v1902
        %v1904 = vpop.xlane.xlu0 %1903
        %v1905 = vsel %vm880, %v1884, 0.0
        %1906 = vadd.xlane.f32.xlu0 %v1905
        %v1907 = vpop.xlane.xlu0 %1906
        %v1908 = vsel %vm880, %v1886, 0.0
        %1909 = vadd.xlane.f32.xlu0 %v1908
        %v1910 = vpop.xlane.xlu0 %1909
        %v1911 = vrcp.pop %v1889
        %v1912 = vrcp.pop %v1892
        %v1913 = vrcp.pop %v1895
        %v1914 = vrcp.pop %v1898
        %v1915 = vrcp.pop %v1901
        %v1916 = vrcp.pop %v1904
        %v1917 = vrcp.pop %v1907
        %v1918 = vrcp.pop %v1910
        %v1919 = vmul.f32 %v1872, %v1911
        %v1920 = vmul.f32 %v1874, %v1912
        %v1921 = vmul.f32 %v1876, %v1913
        %v1922 = vmul.f32 %v1878, %v1914
        %v1923 = vmul.f32 %v1880, %v1915
        %v1924 = vmul.f32 %v1882, %v1916
        %v1925 = vmul.f32 %v1884, %v1917
        %v1926 = vmul.f32 %v1886, %v1918
        %v1927 = vpack.c.bf16 %v1920, %v1919
        %v1928 = vpack.c.bf16 %v1922, %v1921
        %v1929 = vpack.c.bf16 %v1924, %v1923
        %v1930 = vpack.c.bf16 %v1926, %v1925
        %1931 = vrot.lane.b32.xlu0 %v1619, 64
        %v1932 = vpop.permute.xlu0 %1931
        %v1935 = vsel %vm880, %v1927, 0
        %1937 = vmatprep.subr.bf16.mxu0 0
        %1938 = vmatpush1.bf16.msra.mxu0 0
        %1939 = vmatprep.subr.bf16.mxu0 0
        %1940 = vmatpush1.bf16.msra.mxu0 0
        %1941 = vmatprep.subr.bf16.mxu0 0
        %1942 = vmatpush1.bf16.msra.mxu0 0
        %1943 = vmatprep.subr.bf16.mxu0 0
        %1944 = vmatpush1.bf16.msra.mxu0 0
        %1945 = vmatprep.subr.bf16.mxu0 0
        %1946 = vmatpush1.bf16.msra.mxu0 0
        %1947 = vmatprep.subr.bf16.mxu0 0
        %1948 = vmatpush1.bf16.msra.mxu0 0
        %1949 = vmatprep.subr.bf16.mxu0 0
        %1950 = vmatpush1.bf16.msra.mxu0 0
        %1951 = vmatprep.subr.bf16.mxu0 0
        %1952 = vmatpush1.bf16.msra.mxu0 %v1932
        %1953 = vmatprep.subr.bf16.mxu0 0
        %1954 = vmatpush2.bf16.msra.mxu0 0
        %1955 = vmatprep.subr.bf16.mxu0 0
        %1956 = vmatpush2.bf16.msra.mxu0 0
        %1957 = vmatprep.subr.bf16.mxu0 0
        %1958 = vmatpush2.bf16.msra.mxu0 0
        %1959 = vmatprep.subr.bf16.mxu0 0
        %1960 = vmatpush2.bf16.msra.mxu0 0
        %1961 = vmatprep.subr.bf16.mxu0 0
        %1962 = vmatpush2.bf16.msra.mxu0 0
        %1963 = vmatprep.subr.bf16.mxu0 0
        %1964 = vmatpush2.bf16.msra.mxu0 0
        %1965 = vmatprep.subr.bf16.mxu0 0
        %1966 = vmatpush2.bf16.msra.mxu0 0
        %1967 = vmatprep.subr.bf16.mxu0 0
        %1968 = vmatpush2.bf16.msra.mxu0 0
        %1969 = vmatprep.mubr.bf16.mxu0 0
        %1970 = vmatmul.mubr.bf16.gmra.mxu0 %v1935
        %v1971 = vpop.f32.mrf.mxu0
        %v1972 = vadd.f32 0.0, %v1971
        %v1973 = vpop.f32.mrf.mxu0
        %v1974 = vpop.f32.mrf.mxu0
        %v1975 = vadd.f32 0.0, %v1974
        %v1976 = vpop.f32.mrf.mxu0
        %1977 = vdwg.mxu0
        %1978 = vrot.lane.b32.xlu0 %v1620, 64
        %v1979 = vpop.permute.xlu0 %1978
        %v1982 = vsel %vm880, %v1928, 0
        %1984 = vmatprep.subr.bf16.mxu0 0
        %1985 = vmatpush1.bf16.msra.mxu0 0
        %1986 = vmatprep.subr.bf16.mxu0 0
        %1987 = vmatpush1.bf16.msra.mxu0 0
        %1988 = vmatprep.subr.bf16.mxu0 0
        %1989 = vmatpush1.bf16.msra.mxu0 0
        %1990 = vmatprep.subr.bf16.mxu0 0
        %1991 = vmatpush1.bf16.msra.mxu0 0
        %1992 = vmatprep.subr.bf16.mxu0 0
        %1993 = vmatpush1.bf16.msra.mxu0 0
        %1994 = vmatprep.subr.bf16.mxu0 0
        %1995 = vmatpush1.bf16.msra.mxu0 0
        %1996 = vmatprep.subr.bf16.mxu0 0
        %1997 = vmatpush1.bf16.msra.mxu0 0
        %1998 = vmatprep.subr.bf16.mxu0 0
        %1999 = vmatpush1.bf16.msra.mxu0 %v1979
        %2000 = vmatprep.subr.bf16.mxu0 0
        %2001 = vmatpush2.bf16.msra.mxu0 0
        %2002 = vmatprep.subr.bf16.mxu0 0
        %2003 = vmatpush2.bf16.msra.mxu0 0
        %2004 = vmatprep.subr.bf16.mxu0 0
        %2005 = vmatpush2.bf16.msra.mxu0 0
        %2006 = vmatprep.subr.bf16.mxu0 0
        %2007 = vmatpush2.bf16.msra.mxu0 0
        %2008 = vmatprep.subr.bf16.mxu0 0
        %2009 = vmatpush2.bf16.msra.mxu0 0
        %2010 = vmatprep.subr.bf16.mxu0 0
        %2011 = vmatpush2.bf16.msra.mxu0 0
        %2012 = vmatprep.subr.bf16.mxu0 0
        %2013 = vmatpush2.bf16.msra.mxu0 0
        %2014 = vmatprep.subr.bf16.mxu0 0
        %2015 = vmatpush2.bf16.msra.mxu0 0
        %2016 = vmatprep.mubr.bf16.mxu0 0
        %2017 = vmatmul.mubr.bf16.gmra.mxu0 %v1982
        %v2018 = vpop.f32.mrf.mxu0
        %v2019 = vadd.f32 0.0, %v2018
        %v2020 = vpop.f32.mrf.mxu0
        %v2021 = vpop.f32.mrf.mxu0
        %v2022 = vadd.f32 0.0, %v2021
        %v2023 = vpop.f32.mrf.mxu0
        %2024 = vdwg.mxu0
        %2025 = vrot.lane.b32.xlu0 %v1621, 64
        %v2026 = vpop.permute.xlu0 %2025
        %v2029 = vsel %vm880, %v1929, 0
        %2031 = vmatprep.subr.bf16.mxu0 0
        %2032 = vmatpush1.bf16.msra.mxu0 0
        %2033 = vmatprep.subr.bf16.mxu0 0
        %2034 = vmatpush1.bf16.msra.mxu0 0
        %2035 = vmatprep.subr.bf16.mxu0 0
        %2036 = vmatpush1.bf16.msra.mxu0 0
        %2037 = vmatprep.subr.bf16.mxu0 0
        %2038 = vmatpush1.bf16.msra.mxu0 0
        %2039 = vmatprep.subr.bf16.mxu0 0
        %2040 = vmatpush1.bf16.msra.mxu0 0
        %2041 = vmatprep.subr.bf16.mxu0 0
        %2042 = vmatpush1.bf16.msra.mxu0 0
        %2043 = vmatprep.subr.bf16.mxu0 0
        %2044 = vmatpush1.bf16.msra.mxu0 0
        %2045 = vmatprep.subr.bf16.mxu0 0
        %2046 = vmatpush1.bf16.msra.mxu0 %v2026
        %2047 = vmatprep.subr.bf16.mxu0 0
        %2048 = vmatpush2.bf16.msra.mxu0 0
        %2049 = vmatprep.subr.bf16.mxu0 0
        %2050 = vmatpush2.bf16.msra.mxu0 0
        %2051 = vmatprep.subr.bf16.mxu0 0
        %2052 = vmatpush2.bf16.msra.mxu0 0
        %2053 = vmatprep.subr.bf16.mxu0 0
        %2054 = vmatpush2.bf16.msra.mxu0 0
        %2055 = vmatprep.subr.bf16.mxu0 0
        %2056 = vmatpush2.bf16.msra.mxu0 0
        %2057 = vmatprep.subr.bf16.mxu0 0
        %2058 = vmatpush2.bf16.msra.mxu0 0
        %2059 = vmatprep.subr.bf16.mxu0 0
        %2060 = vmatpush2.bf16.msra.mxu0 0
        %2061 = vmatprep.subr.bf16.mxu0 0
        %2062 = vmatpush2.bf16.msra.mxu0 0
        %2063 = vmatprep.mubr.bf16.mxu0 0
        %2064 = vmatmul.mubr.bf16.gmra.mxu0 %v2029
        %v2065 = vpop.f32.mrf.mxu0
        %v2066 = vadd.f32 0.0, %v2065
        %v2067 = vpop.f32.mrf.mxu0
        %v2068 = vpop.f32.mrf.mxu0
        %v2069 = vadd.f32 0.0, %v2068
        %v2070 = vpop.f32.mrf.mxu0
        %2071 = vdwg.mxu0
        %2072 = vrot.lane.b32.xlu0 %v1622, 64
        %v2073 = vpop.permute.xlu0 %2072
        %v2076 = vsel %vm880, %v1930, 0
        %2078 = vmatprep.subr.bf16.mxu0 0
        %2079 = vmatpush1.bf16.msra.mxu0 0
        %2080 = vmatprep.subr.bf16.mxu0 0
        %2081 = vmatpush1.bf16.msra.mxu0 0
        %2082 = vmatprep.subr.bf16.mxu0 0
        %2083 = vmatpush1.bf16.msra.mxu0 0
        %2084 = vmatprep.subr.bf16.mxu0 0
        %2085 = vmatpush1.bf16.msra.mxu0 0
        %2086 = vmatprep.subr.bf16.mxu0 0
        %2087 = vmatpush1.bf16.msra.mxu0 0
        %2088 = vmatprep.subr.bf16.mxu0 0
        %2089 = vmatpush1.bf16.msra.mxu0 0
        %2090 = vmatprep.subr.bf16.mxu0 0
        %2091 = vmatpush1.bf16.msra.mxu0 0
        %2092 = vmatprep.subr.bf16.mxu0 0
        %2093 = vmatpush1.bf16.msra.mxu0 %v2073
        %2094 = vmatprep.subr.bf16.mxu0 0
        %2095 = vmatpush2.bf16.msra.mxu0 0
        %2096 = vmatprep.subr.bf16.mxu0 0
        %2097 = vmatpush2.bf16.msra.mxu0 0
        %2098 = vmatprep.subr.bf16.mxu0 0
        %2099 = vmatpush2.bf16.msra.mxu0 0
        %2100 = vmatprep.subr.bf16.mxu0 0
        %2101 = vmatpush2.bf16.msra.mxu0 0
        %2102 = vmatprep.subr.bf16.mxu0 0
        %2103 = vmatpush2.bf16.msra.mxu0 0
        %2104 = vmatprep.subr.bf16.mxu0 0
        %2105 = vmatpush2.bf16.msra.mxu0 0
        %2106 = vmatprep.subr.bf16.mxu0 0
        %2107 = vmatpush2.bf16.msra.mxu0 0
        %2108 = vmatprep.subr.bf16.mxu0 0
        %2109 = vmatpush2.bf16.msra.mxu0 0
        %2110 = vmatprep.mubr.bf16.mxu0 0
        %2111 = vmatmul.mubr.bf16.gmra.mxu0 %v2076
        %v2112 = vpop.f32.mrf.mxu0
        %v2113 = vadd.f32 0.0, %v2112
        %v2114 = vpop.f32.mrf.mxu0
        %v2115 = vpop.f32.mrf.mxu0
        %v2116 = vadd.f32 0.0, %v2115
        %v2117 = vpop.f32.mrf.mxu0
        %2118 = vdwg.mxu0
        %2121 = vrot.lane.b32.xlu0 %v2019, 8
        %v2122 = vpop.permute.xlu0 %2121
        %2123 = vrot.lane.b32.xlu0 %v2022, 8
        %v2124 = vpop.permute.xlu0 %2123
        %2129 = vrot.lane.b32.xlu0 %v2066, 16
        %v2130 = vpop.permute.xlu0 %2129
        %2131 = vrot.lane.b32.xlu0 %v2069, 16
        %v2132 = vpop.permute.xlu0 %2131
        %2137 = vrot.lane.b32.xlu0 %v2113, 24
        %v2138 = vpop.permute.xlu0 %2137
        %2139 = vrot.lane.b32.xlu0 %v2116, 24
        %v2140 = vpop.permute.xlu0 %2139
        %v2143 = vsel %vm666, %v1972, %v2122
        %v2144 = vsel %vm666, %v1975, %v2124
        %v2145 = vsel %vm880, %v2143, %v2130
        %v2146 = vsel %vm880, %v2144, %v2132
        %v2147 = vsel %vm1189, %v2145, %v2138
        %v2148 = vsel %vm1189, %v2146, %v2140
        %v2149 = vpack.c.bf16 %v2148, %v2147
        %s2150 = scalar_lea.vmem %s2, 16
        %v2151 = vld [vmem:[%s2150] sm:$0xf]
        %v2152 = vld [vmem:[%s2150 + $0x4] sm:$0xf]
        %v2153 = vld [vmem:[%s2150 + $0x8] sm:$0xf]
        %v2154 = vld [vmem:[%s2150 + $0xc] sm:$0xf]
        %s2155 = scalar_lea.vmem %s3, 1
        %v2156 = vld [vmem:[%s2155] sm:$0x1]
        %v2158 = vlaneseq
        %v2159 = vshrl.u32 %v2158, 7
        %v2160 = vsub.s32 0, %v2159
        %v2161 = vrot.slane %v2156, %v2160
        %v2167 = vunpack.c.l.b16 %v2151
        %v2168 = vunpack.c.l.b16 %v2152
        %v2169 = vunpack.c.l.b16 %v2153
        %v2170 = vunpack.c.l.b16 %v2154
        %v2171 = vpack.c.b16 %v2168, %v2167
        %v2172 = vpack.c.b16 %v2170, %v2169
        %v2176 = vsel %vm534, %v2149, 0
        %2178 = vmatprep.subr.bf16.mxu0 0
        %2179 = vmatpush1.bf16.msra.mxu0 0
        %2180 = vmatprep.subr.bf16.mxu0 0
        %2181 = vmatpush1.bf16.msra.mxu0 0
        %2182 = vmatprep.subr.bf16.mxu0 0
        %2183 = vmatpush1.bf16.msra.mxu0 0
        %2184 = vmatprep.subr.bf16.mxu0 0
        %2185 = vmatpush1.bf16.msra.mxu0 0
        %2186 = vmatprep.subr.bf16.mxu0 0
        %2187 = vmatpush1.bf16.msra.mxu0 0
        %2188 = vmatprep.subr.bf16.mxu0 0
        %2189 = vmatpush1.bf16.msra.mxu0 0
        %2190 = vmatprep.subr.bf16.mxu0 0
        %2191 = vmatpush1.bf16.msra.mxu0 %v2172
        %2192 = vmatprep.subr.bf16.mxu0 0
        %2193 = vmatpush1.bf16.msra.mxu0 %v2171
        %2194 = vmatprep.subr.bf16.mxu0 0
        %2195 = vmatpush2.bf16.msra.mxu0 0
        %2196 = vmatprep.subr.bf16.mxu0 0
        %2197 = vmatpush2.bf16.msra.mxu0 0
        %2198 = vmatprep.subr.bf16.mxu0 0
        %2199 = vmatpush2.bf16.msra.mxu0 0
        %2200 = vmatprep.subr.bf16.mxu0 0
        %2201 = vmatpush2.bf16.msra.mxu0 0
        %2202 = vmatprep.subr.bf16.mxu0 0
        %2203 = vmatpush2.bf16.msra.mxu0 0
        %2204 = vmatprep.subr.bf16.mxu0 0
        %2205 = vmatpush2.bf16.msra.mxu0 0
        %2206 = vmatprep.subr.bf16.mxu0 0
        %2207 = vmatpush2.bf16.msra.mxu0 0
        %2208 = vmatprep.subr.bf16.mxu0 0
        %2209 = vmatpush2.bf16.msra.mxu0 0
        %2210 = vmatprep.mubr.bf16.mxu0 0
        %2211 = vmatmul.mubr.bf16.gmra.mxu0 %v2176
        %v2212 = vpop.f32.mrf.mxu0
        %v2213 = vadd.f32 %v2161, %v2212
        %v2214 = vpop.f32.mrf.mxu0
        %v2215 = vpop.f32.mrf.mxu0
        %v2216 = vadd.f32 %v2161, %v2215
        %v2217 = vpop.f32.mrf.mxu0
        %2218 = vdwg.mxu0
        %v2219 = vadd.f32 %v1489, %v2213
        %v2220 = vadd.f32 %v1490, %v2216
        %s2221 = scalar_lea.vmem %s6, 1
        %v2222 = vld [vmem:[%s2221] sm:$0x1]
        %s2223 = scalar_lea.vmem %s7, 1
        %v2224 = vld [vmem:[%s2223] sm:$0x1]
        %v2225 = vsel %vm534, %v2219, 0.0
        %2226 = vadd.xlane.f32.xlu0 %v2225
        %v2227 = vpop.xlane.xlu0 %2226
        %v2228 = vsel %vm534, %v2220, 0.0
        %2229 = vadd.xlane.f32.xlu0 %v2228
        %v2230 = vpop.xlane.xlu0 %2229
        %v2231 = vmul.f32 %v2227, %v541
        %v2232 = vmul.f32 %v2230, %v541
        %v2233 = vsub.f32 %v2219, %v2231
        %v2234 = vsub.f32 %v2220, %v2232
        %v2235 = vmul.f32 %v2233, %v2233
        %v2236 = vmul.f32 %v2234, %v2234
        %v2237 = vsel %vm534, %v2235, 0.0
        %2238 = vadd.xlane.f32.xlu0 %v2237
        %v2239 = vpop.xlane.xlu0 %2238
        %v2240 = vsel %vm534, %v2236, 0.0
        %2241 = vadd.xlane.f32.xlu0 %v2240
        %v2242 = vpop.xlane.xlu0 %2241
        %v2243 = vmul.f32 %v2239, %v541
        %v2244 = vmul.f32 %v2242, %v541
        %v2245 = vadd.f32 %v2243, 1e-05
        %v2246 = vadd.f32 %v2244, 1e-05
        %v2247 = vrsqrt.pop %v2245
        %v2248 = vrsqrt.pop %v2246
        %v2249 = vmul.f32 %v2233, %v2247
        %v2250 = vmul.f32 %v2234, %v2248
        %v2252 = vlaneseq
        %v2253 = vshrl.u32 %v2252, 7
        %v2254 = vsub.s32 0, %v2253
        %v2255 = vrot.slane %v2222, %v2254
        %v2257 = vmul.f32 %v2249, %v2255
        %v2258 = vmul.f32 %v2250, %v2255
        %v2260 = vlaneseq
        %v2261 = vshrl.u32 %v2260, 7
        %v2262 = vsub.s32 0, %v2261
        %v2263 = vrot.slane %v2224, %v2262
        %v2265 = vadd.f32 %v2257, %v2263
        %v2266 = vadd.f32 %v2258, %v2263
        %v2267 = vpack.c.bf16 %v2266, %v2265
        %s2268 = scalar_lea.vmem %s8, 16
        %v2269 = vld [vmem:[%s2268] sm:$0xf]
        %v2270 = vld [vmem:[%s2268 + $0x4] sm:$0xf]
        %v2271 = vld [vmem:[%s2268 + $0x8] sm:$0xf]
        %v2272 = vld [vmem:[%s2268 + $0xc] sm:$0xf]
        %s2273 = scalar_lea.vmem %s9, 1
        %v2274 = vld [vmem:[%s2273] sm:$0x1]
        %v2276 = vlaneseq
        %v2277 = vshrl.u32 %v2276, 7
        %v2278 = vsub.s32 0, %v2277
        %v2279 = vrot.slane %v2274, %v2278
        %v2285 = vunpack.c.l.b16 %v2269
        %v2286 = vunpack.c.l.b16 %v2270
        %v2287 = vunpack.c.l.b16 %v2271
        %v2288 = vunpack.c.l.b16 %v2272
        %v2289 = vpack.c.b16 %v2286, %v2285
        %v2290 = vpack.c.b16 %v2288, %v2287
        %v2294 = vsel %vm534, %v2267, 0
        %2296 = vmatprep.subr.bf16.mxu0 0
        %2297 = vmatpush1.bf16.msra.mxu0 0
        %2298 = vmatprep.subr.bf16.mxu0 0
        %2299 = vmatpush1.bf16.msra.mxu0 0
        %2300 = vmatprep.subr.bf16.mxu0 0
        %2301 = vmatpush1.bf16.msra.mxu0 0
        %2302 = vmatprep.subr.bf16.mxu0 0
        %2303 = vmatpush1.bf16.msra.mxu0 0
        %2304 = vmatprep.subr.bf16.mxu0 0
        %2305 = vmatpush1.bf16.msra.mxu0 0
        %2306 = vmatprep.subr.bf16.mxu0 0
        %2307 = vmatpush1.bf16.msra.mxu0 0
        %2308 = vmatprep.subr.bf16.mxu0 0
        %2309 = vmatpush1.bf16.msra.mxu0 %v2290
        %2310 = vmatprep.subr.bf16.mxu0 0
        %2311 = vmatpush1.bf16.msra.mxu0 %v2289
        %2312 = vmatprep.subr.bf16.mxu0 0
        %2313 = vmatpush2.bf16.msra.mxu0 0
        %2314 = vmatprep.subr.bf16.mxu0 0
        %2315 = vmatpush2.bf16.msra.mxu0 0
        %2316 = vmatprep.subr.bf16.mxu0 0
        %2317 = vmatpush2.bf16.msra.mxu0 0
        %2318 = vmatprep.subr.bf16.mxu0 0
        %2319 = vmatpush2.bf16.msra.mxu0 0
        %2320 = vmatprep.subr.bf16.mxu0 0
        %2321 = vmatpush2.bf16.msra.mxu0 0
        %2322 = vmatprep.subr.bf16.mxu0 0
        %2323 = vmatpush2.bf16.msra.mxu0 0
        %2324 = vmatprep.subr.bf16.mxu0 0
        %2325 = vmatpush2.bf16.msra.mxu0 0
        %2326 = vmatprep.subr.bf16.mxu0 0
        %2327 = vmatpush2.bf16.msra.mxu0 0
        %2328 = vmatprep.mubr.bf16.mxu0 0
        %2329 = vmatmul.mubr.bf16.gmra.mxu0 %v2294
        %v2330 = vpop.f32.mrf.mxu0
        %v2331 = vadd.f32 %v2279, %v2330
        %v2332 = vpop.f32.mrf.mxu0
        %v2333 = vpop.f32.mrf.mxu0
        %v2334 = vadd.f32 %v2279, %v2333
        %v2335 = vpop.f32.mrf.mxu0
        %2336 = vdwg.mxu0
        %v2337 = vmax.f32 %v2331, 0.0
        %v2338 = vmax.f32 %v2334, 0.0
        %v2339 = vpack.c.bf16 %v2338, %v2337
        %s2340 = scalar_lea.vmem %s10, 64
        %v2341 = vld [vmem:[%s2340] sm:$0xf]
        %v2342 = vld [vmem:[%s2340 + $0x4] sm:$0xf]
        %v2343 = vld [vmem:[%s2340 + $0x8] sm:$0xf]
        %v2344 = vld [vmem:[%s2340 + $0xc] sm:$0xf]
        %v2345 = vld [vmem:[%s2340 + $0x10] sm:$0xf]
        %v2346 = vld [vmem:[%s2340 + $0x14] sm:$0xf]
        %v2347 = vld [vmem:[%s2340 + $0x18] sm:$0xf]
        %v2348 = vld [vmem:[%s2340 + $0x1c] sm:$0xf]
        %v2349 = vld [vmem:[%s2340 + $0x20] sm:$0xf]
        %v2350 = vld [vmem:[%s2340 + $0x24] sm:$0xf]
        %v2351 = vld [vmem:[%s2340 + $0x28] sm:$0xf]
        %v2352 = vld [vmem:[%s2340 + $0x2c] sm:$0xf]
        %v2353 = vld [vmem:[%s2340 + $0x30] sm:$0xf]
        %v2354 = vld [vmem:[%s2340 + $0x34] sm:$0xf]
        %v2355 = vld [vmem:[%s2340 + $0x38] sm:$0xf]
        %v2356 = vld [vmem:[%s2340 + $0x3c] sm:$0xf]
        %s2357 = scalar_lea.vmem %s11, 1
        %v2358 = vld [vmem:[%s2357] sm:$0x1]
        %v2360 = vlaneseq
        %v2361 = vshrl.u32 %v2360, 7
        %v2362 = vsub.s32 0, %v2361
        %v2363 = vrot.slane %v2358, %v2362
        %v2381 = vunpack.c.l.b16 %v2341
        %v2382 = vunpack.c.l.b16 %v2342
        %v2383 = vunpack.c.l.b16 %v2343
        %v2384 = vunpack.c.l.b16 %v2344
        %v2385 = vunpack.c.l.b16 %v2345
        %v2386 = vunpack.c.l.b16 %v2346
        %v2387 = vunpack.c.l.b16 %v2347
        %v2388 = vunpack.c.l.b16 %v2348
        %v2389 = vunpack.c.l.b16 %v2349
        %v2390 = vunpack.c.l.b16 %v2350
        %v2391 = vunpack.c.l.b16 %v2351
        %v2392 = vunpack.c.l.b16 %v2352
        %v2393 = vunpack.c.l.b16 %v2353
        %v2394 = vunpack.c.l.b16 %v2354
        %v2395 = vunpack.c.l.b16 %v2355
        %v2396 = vunpack.c.l.b16 %v2356
        %v2397 = vpack.c.b16 %v2382, %v2381
        %v2398 = vpack.c.b16 %v2384, %v2383
        %v2399 = vpack.c.b16 %v2386, %v2385
        %v2400 = vpack.c.b16 %v2388, %v2387
        %v2401 = vpack.c.b16 %v2390, %v2389
        %v2402 = vpack.c.b16 %v2392, %v2391
        %v2403 = vpack.c.b16 %v2394, %v2393
        %v2404 = vpack.c.b16 %v2396, %v2395
        %2413 = vmatprep.subr.bf16.mxu0 0
        %2414 = vmatpush1.bf16.msra.mxu0 %v2404
        %2415 = vmatprep.subr.bf16.mxu0 0
        %2416 = vmatpush1.bf16.msra.mxu0 %v2403
        %2417 = vmatprep.subr.bf16.mxu0 0
        %2418 = vmatpush1.bf16.msra.mxu0 %v2402
        %2419 = vmatprep.subr.bf16.mxu0 0
        %2420 = vmatpush1.bf16.msra.mxu0 %v2401
        %2421 = vmatprep.subr.bf16.mxu0 0
        %2422 = vmatpush1.bf16.msra.mxu0 %v2400
        %2423 = vmatprep.subr.bf16.mxu0 0
        %2424 = vmatpush1.bf16.msra.mxu0 %v2399
        %2425 = vmatprep.subr.bf16.mxu0 0
        %2426 = vmatpush1.bf16.msra.mxu0 %v2398
        %2427 = vmatprep.subr.bf16.mxu0 0
        %2428 = vmatpush1.bf16.msra.mxu0 %v2397
        %2429 = vmatprep.subr.bf16.mxu0 0
        %2430 = vmatpush2.bf16.msra.mxu0 0
        %2431 = vmatprep.subr.bf16.mxu0 0
        %2432 = vmatpush2.bf16.msra.mxu0 0
        %2433 = vmatprep.subr.bf16.mxu0 0
        %2434 = vmatpush2.bf16.msra.mxu0 0
        %2435 = vmatprep.subr.bf16.mxu0 0
        %2436 = vmatpush2.bf16.msra.mxu0 0
        %2437 = vmatprep.subr.bf16.mxu0 0
        %2438 = vmatpush2.bf16.msra.mxu0 0
        %2439 = vmatprep.subr.bf16.mxu0 0
        %2440 = vmatpush2.bf16.msra.mxu0 0
        %2441 = vmatprep.subr.bf16.mxu0 0
        %2442 = vmatpush2.bf16.msra.mxu0 0
        %2443 = vmatprep.subr.bf16.mxu0 0
        %2444 = vmatpush2.bf16.msra.mxu0 0
        %2445 = vmatprep.mubr.bf16.mxu0 0
        %2446 = vmatmul.mubr.bf16.gmra.mxu0 %v2339
        %v2447 = vpop.f32.mrf.mxu0
        %v2448 = vadd.f32 %v2363, %v2447
        %v2449 = vpop.f32.mrf.mxu0
        %v2450 = vpop.f32.mrf.mxu0
        %v2451 = vadd.f32 %v2363, %v2450
        %v2452 = vpop.f32.mrf.mxu0
        %2453 = vdwg.mxu0
        %v2454 = vadd.f32 %v2219, %v2448
        %v2455 = vadd.f32 %v2220, %v2451
        %v2456 = vld [vmem:[%s12] sm:$0x1]
        %v2457 = vld [vmem:[%s13] sm:$0x1]
        %v2458 = vsel %vm534, %v2454, 0.0
        %2459 = vadd.xlane.f32.xlu0 %v2458
        %v2460 = vpop.xlane.xlu0 %2459
        %v2461 = vsel %vm534, %v2455, 0.0
        %2462 = vadd.xlane.f32.xlu0 %v2461
        %v2463 = vpop.xlane.xlu0 %2462
        %v2464 = vmul.f32 %v2460, %v541
        %v2465 = vmul.f32 %v2463, %v541
        %v2466 = vsub.f32 %v2454, %v2464
        %v2467 = vsub.f32 %v2455, %v2465
        %v2468 = vmul.f32 %v2466, %v2466
        %v2469 = vmul.f32 %v2467, %v2467
        %v2470 = vsel %vm534, %v2468, 0.0
        %2471 = vadd.xlane.f32.xlu0 %v2470
        %v2472 = vpop.xlane.xlu0 %2471
        %v2473 = vsel %vm534, %v2469, 0.0
        %2474 = vadd.xlane.f32.xlu0 %v2473
        %v2475 = vpop.xlane.xlu0 %2474
        %v2476 = vmul.f32 %v2472, %v541
        %v2477 = vmul.f32 %v2475, %v541
        %v2478 = vadd.f32 %v2476, 32.0
        %v2479 = vadd.f32 %v2477, 32.0
        %v2480 = vrsqrt.pop %v2478
        %v2481 = vrsqrt.pop %v2479
        %v2482 = vmul.f32 %v2466, %v2480
        %v2483 = vmul.f32 %v2467, %v2481
        %v2485 = vlaneseq
        %v2486 = vshrl.u32 %v2485, 7
        %v2487 = vsub.s32 0, %v2486
        %v2488 = vrot.slane %v2456, %v2487
        %v2490 = vmul.f32 %v2482, %v2488
        %v2491 = vmul.f32 %v2483, %v2488
        %v2493 = vlaneseq
        %v2494 = vshrl.u32 %v2493, 7
        %v2495 = vsub.s32 0, %v2494
        %v2496 = vrot.slane %v2457, %v2495
        %v2498 = vadd.f32 %v2490, %v2496
        %v2499 = vadd.f32 %v2491, %v2496
        %v2500 = vpack.c.bf16 %v2499, %v2498
        %v2501 = vld [vmem:[%s14] sm:$0xf]
        %v2502 = vld [vmem:[%s14 + $0x4] sm:$0xf]
        %v2503 = vld [vmem:[%s14 + $0x8] sm:$0xf]
        %v2504 = vld [vmem:[%s14 + $0xc] sm:$0xf]
        %v2505 = vld [vmem:[%s15] sm:$0x1]
        %v2507 = vlaneseq
        %v2508 = vshrl.u32 %v2507, 7
        %v2509 = vsub.s32 0, %v2508
        %v2510 = vrot.slane %v2505, %v2509
        %v2516 = vunpack.c.l.b16 %v2501
        %v2517 = vunpack.c.l.b16 %v2502
        %v2518 = vunpack.c.l.b16 %v2503
        %v2519 = vunpack.c.l.b16 %v2504
        %v2520 = vpack.c.b16 %v2517, %v2516
        %v2521 = vpack.c.b16 %v2519, %v2518
        %v2525 = vsel %vm534, %v2500, 0
        %2527 = vmatprep.subr.bf16.mxu0 0
        %2528 = vmatpush1.bf16.msra.mxu0 0
        %2529 = vmatprep.subr.bf16.mxu0 0
        %2530 = vmatpush1.bf16.msra.mxu0 0
        %2531 = vmatprep.subr.bf16.mxu0 0
        %2532 = vmatpush1.bf16.msra.mxu0 0
        %2533 = vmatprep.subr.bf16.mxu0 0
        %2534 = vmatpush1.bf16.msra.mxu0 0
        %2535 = vmatprep.subr.bf16.mxu0 0
        %2536 = vmatpush1.bf16.msra.mxu0 0
        %2537 = vmatprep.subr.bf16.mxu0 0
        %2538 = vmatpush1.bf16.msra.mxu0 0
        %2539 = vmatprep.subr.bf16.mxu0 0
        %2540 = vmatpush1.bf16.msra.mxu0 %v2521
        %2541 = vmatprep.subr.bf16.mxu0 0
        %2542 = vmatpush1.bf16.msra.mxu0 %v2520
        %2543 = vmatprep.subr.bf16.mxu0 0
        %2544 = vmatpush2.bf16.msra.mxu0 0
        %2545 = vmatprep.subr.bf16.mxu0 0
        %2546 = vmatpush2.bf16.msra.mxu0 0
        %2547 = vmatprep.subr.bf16.mxu0 0
        %2548 = vmatpush2.bf16.msra.mxu0 0
        %2549 = vmatprep.subr.bf16.mxu0 0
        %2550 = vmatpush2.bf16.msra.mxu0 0
        %2551 = vmatprep.subr.bf16.mxu0 0
        %2552 = vmatpush2.bf16.msra.mxu0 0
        %2553 = vmatprep.subr.bf16.mxu0 0
        %2554 = vmatpush2.bf16.msra.mxu0 0
        %2555 = vmatprep.subr.bf16.mxu0 0
        %2556 = vmatpush2.bf16.msra.mxu0 0
        %2557 = vmatprep.subr.bf16.mxu0 0
        %2558 = vmatpush2.bf16.msra.mxu0 0
        %2559 = vmatprep.mubr.bf16.mxu0 0
        %2560 = vmatmul.mubr.bf16.gmra.mxu0 %v2525
        %v2561 = vpop.f32.mrf.mxu0
        %v2562 = vadd.f32 %v2510, %v2561
        %v2563 = vpop.f32.mrf.mxu0
        %v2564 = vpop.f32.mrf.mxu0
        %v2565 = vadd.f32 %v2510, %v2564
        %v2566 = vpop.f32.mrf.mxu0
        %2567 = vdwg.mxu0
        %2568 = vst [vmem:[%s514] sm:$0xff] %v2562
        %2569 = vst [vmem:[%s514 + $0x8] sm:$0xff] %v2565
        %s2570 = sand.u32 %s379, 1
        %s2571 = scalar_lea.sflag [#allocation3], %s2570
        %s2572 = sand.u32 %s379, 1
        %s2573 = smul.addr %s2572, 16
        %s2574 = scalar_lea.vmem [#allocation2], %s2573
        // Predicated region
        $region85: #{tpu_custom_call.1} parent=83 // pred_check
          %p2575 = pneg %p389
        $region86: #{tpu_custom_call.1} parent=83 // pred_check_branch
          %2577 = sbr.rel (%p2575) target = $region88
        $region87: #{tpu_custom_call.1} parent=83 // pred_region
          %s2579 = ssub.s32 256, 256
          %2580 = vsyncadd %s2571, %s2579
          %s2581 = smul.addr %s30, 2
          %s2582 = smul.addr %s2581, 128
          %s2583 = scalar_lea.hbm %s16, %s2582
          %s2584 = sshll.u32 %s2574, 4
          %s2585 = int_to_ptr.vmem [resolvable:$true] %s2584
          %2590 = dma.vmem_to_hbm [thread:$0]  %s2585, 256, %s2583, %s2571, 128, 128, 8
        $region88: #{tpu_custom_call.1} parent=83 // pred_fallthru
          _
      $region84: #{tpu_custom_call.1} parent=5 // pred_fallthru
        _
      %p2591 = scmp.le.s32.totalorder 2, %s25
      // Predicated region
      $region89: #{tpu_custom_call.1} parent=5 // pred_check
        %p2592 = pneg %p2591
      $region90: #{tpu_custom_call.1} parent=5 // pred_check_branch
        %2594 = sbr.rel (%p2592) target = $region92
      $region91: #{tpu_custom_call.1} parent=5 // pred_region
        %s2595 = ssub.s32 %s25, 2
        // Predicated region
        $region93: #{tpu_custom_call.1} parent=91 // pred_check
          %p2596 = pneg %p395
        $region94: #{tpu_custom_call.1} parent=91 // pred_check_branch
          %2598 = sbr.rel (%p2596) target = $region96
        $region95: #{tpu_custom_call.1} parent=91 // pred_region
          %s2599 = sand.u32 %s380, 1
          %s2600 = scalar_lea.sflag [#allocation3], %s2599
          %s2601 = sand.u32 %s380, 1
          %s2602 = smul.addr %s2601, 16
          %s2603 = scalar_lea.vmem [#allocation2], %s2602
          %2604 = dma.done %s2600, 256
        $region96: #{tpu_custom_call.1} parent=91 // pred_fallthru
          _
      $region92: #{tpu_custom_call.1} parent=5 // pred_fallthru
        _
    $region6: #{tpu_custom_call.1} parent=1 // loop_footer
      %s29 = sadd.s32 1, %s25
    $region7: #{tpu_custom_call.1} parent=1 // loop_footer_branch
      %24 = sbr.rel target = $region3
    $region8: #{tpu_custom_call.1} parent=1 // loop_exit
      _
    %2605 = vsyncpa [#allocation3], 1
    %s2606 = scalar_lea.sflag [#allocation3], 1
    %2607 = vsyncpa %s2606, 1

</llo_original>
